<compile_context>
chip_gen: v6e
topology: v6e:2x2x1
jax: 0.10.0
libtpu: 0.0.40
codegen_flags: <defaults>
</compile_context>

<pallas_src>
import jax
import jax.numpy as jnp
from jax.experimental import pallas as pl
from jax.experimental.pallas import tpu as pltpu

# ----------------------------- config ------------------------------------
PAD, BOS, EOS = 0, 1, 2
V_SRC, V_TGT = 40, 48
EMBED, HIDDEN = 32, 32
BATCH, T_SRC, T_TGT = 2, 8, 8        # decoder runs T_TGT - 1 steps
BP = 8                               # padded batch = f32 sublane count
VPAD = 128                           # vocab padded to a full lane tile

F32 = jnp.float32
NEG = -1e30


def _mm(a, b):
    """a @ b (contract a dim 1 with b dim 0), f32 accumulate."""
    return jax.lax.dot_general(a, b, (((1,), (0,)), ((), ())),
                               preferred_element_type=F32)


def _mm_t(a, b):
    """a @ b.T (contract dim 1 of both), f32 accumulate."""
    return jax.lax.dot_general(a, b, (((1,), (1,)), ((), ())),
                               preferred_element_type=F32)


# ====================== fused NMT forward kernel ==========================
def nmt_kernel(x_ref, m_ref, attb_ref, y_ref, selT_ref, g_ref,
               wih_ref, whh_ref, be_ref, whproj_ref, watt_ref,
               wy_ref, woh_ref, bd_ref, wcomb_ref, wvoc_ref, vb_ref,
               out_ref):
    Bp = attb_ref.shape[0]
    T = x_ref.shape[0] // Bp
    Tm = y_ref.shape[0] // Bp
    H = whproj_ref.shape[1]

    # ------------- encoder: fwd+bwd LSTM fused into one recurrence ---------
    # hoisted input projection: [x_fwd | x_bwd] @ blockdiag(Wih_f, Wih_b)
    xg = _mm(x_ref[...], wih_ref[...]) + be_ref[...]          # (T*Bp, 8H)
    m_all = m_ref[...]                                        # (T*Bp, 2H)
    whh = whh_ref[...]                                        # (2H, 8H)

    h = jnp.zeros((Bp, 2 * H), F32)                           # [h_fwd | h_bwd]
    c = jnp.zeros((Bp, 2 * H), F32)
    step_h = []
    for t in range(T):                                        # static unroll
        gates = xg[t * Bp:(t + 1) * Bp, :] + _mm(h, whh)      # (Bp, 8H)
        # gate column order: [i_f i_b | f_f f_b | o_f o_b | g_f g_b]
        sg = jax.nn.sigmoid(gates[:, 0:6 * H])
        i_g = sg[:, 0:2 * H]
        f_g = sg[:, 2 * H:4 * H]
        o_g = sg[:, 4 * H:6 * H]
        g_g = jnp.tanh(gates[:, 6 * H:8 * H])
        c_new = f_g * c + i_g * g_g
        h_new = o_g * jnp.tanh(c_new)
        m_t = m_all[t * Bp:(t + 1) * Bp, :]                   # (Bp, 2H)
        h_msk = m_t * h_new                                   # packed-seq emu
        h = h_msk + (1.0 - m_t) * h
        c = m_t * c_new + (1.0 - m_t) * c
        step_h.append(h_msk)     # fwd half valid for time t, bwd half for T-1-t

    # enc_hiddens, time-major flattened (row = t*Bp + b), cols [fwd | bwd]
    enc = jnp.concatenate(
        [jnp.concatenate([step_h[t][:, 0:H], step_h[T - 1 - t][:, H:2 * H]],
                         axis=1) for t in range(T)], axis=0)  # (T*Bp, 2H)

    # -------- decoder init (reference quirk: h_projection for cell too) ----
    whproj = whproj_ref[...]                                  # (2H, H)
    h_d = _mm(h, whproj)                                      # (Bp, H)
    c_d = _mm(c, whproj)
    o_prev = jnp.zeros((Bp, H), F32)

    # hoisted: att_projection of all encoder states + decoder input proj
    enc_projT = _mm_t(watt_ref[...], enc)                     # (H, T*Bp)
    yg = _mm(y_ref[...], wy_ref[...]) + bd_ref[...]           # (Tm*Bp, 4H)
    attb = attb_ref[...]                                      # (Bp, T*Bp)
    woh = woh_ref[...]                                        # (2H, 4H)
    wcomb = wcomb_ref[...]                                    # (3H, H)

    # ---------------- decoder LSTMCell + attention, unrolled ----------------
    co_list = []
    for t in range(Tm):                                       # static unroll
        oh = jnp.concatenate([o_prev, h_d], axis=1)           # (Bp, 2H)
        gates = yg[t * Bp:(t + 1) * Bp, :] + _mm(oh, woh)     # (Bp, 4H) i,f,o,g
        sg = jax.nn.sigmoid(gates[:, 0:3 * H])
        i_g = sg[:, 0:H]
        f_g = sg[:, H:2 * H]
        o_g = sg[:, 2 * H:3 * H]
        g_g = jnp.tanh(gates[:, 3 * H:4 * H])
        c_d = f_g * c_d + i_g * g_g
        h_d = o_g * jnp.tanh(c_d)

        # dense scores over the flattened encoder states; additive -1e30 mask
        # zeroes out cross-example and padded columns (block-diagonal trick)
        e = _mm(h_d, enc_projT) + attb                        # (Bp, T*Bp)
        e_max = jnp.max(e, axis=-1, keepdims=True)
        p = jnp.exp(e - e_max)
        alpha = p * pl.reciprocal(jnp.sum(p, axis=-1, keepdims=True),
                                  approx=True)
        a_t = _mm(alpha, enc)                                 # (Bp, 2H)
        ah = jnp.concatenate([a_t, h_d], axis=1)              # (Bp, 3H)
        o_prev = jnp.tanh(_mm(ah, wcomb))   # dropout == identity (eval mode)
        co_list.append(o_prev)

    co = jnp.concatenate(co_list, axis=0)                     # (Tm*Bp, H)

    # ------ vocab projection (lane-dense, padded to 128) + log_softmax ------
    logits = _mm(co, wvoc_ref[...]) + vb_ref[...]             # (Tm*Bp, VPAD)
    mx = jnp.max(logits, axis=-1, keepdims=True)
    lse = jnp.log(jnp.sum(jnp.exp(logits - mx), axis=-1, keepdims=True)) + mx
    logp = logits - lse
    # gold gather + target-mask + per-example sum as one MXU push:
    #   out[b, v] = sum_r selT[b, r] * logp[r, v] * G[r, v]
    # wrapper finishes with scores[b] = out[b, :].sum()
    out_ref[...] = _mm(selT_ref[...], logp * g_ref[...])


def nmt_fused_call(inputs):
    in_specs = [pl.BlockSpec(a.shape, lambda i: (0, 0)) for a in inputs]
    return pl.pallas_call(
        nmt_kernel,
        grid=(1,),
        in_specs=in_specs,
        out_specs=pl.BlockSpec((BP, VPAD), lambda i: (0, 0)),
        out_shape=jax.ShapeDtypeStruct((BP, VPAD), F32),
        compiler_params=pltpu.CompilerParams(
            dimension_semantics=("arbitrary",)),
    )(*inputs)


# ======================= weight fusion / reordering ========================
def _enc_fused_weights(p):
    H, E = HIDDEN, EMBED

    def fuse(w_f, w_b, in_dim):
        # w_*: (4H, in_dim) in PyTorch row order i,f,g,o.  Returns (2*in_dim, 8H)
        # block-diagonal weight with interleaved gate-column order
        # [i_f i_b | f_f f_b | o_f o_b | g_f g_b] (sigmoid block first).
        Z = jnp.zeros((in_dim, H), F32)
        gf = [w_f[k * H:(k + 1) * H, :].T for k in range(4)]  # i, f, g, o
        gb = [w_b[k * H:(k + 1) * H, :].T for k in range(4)]
        top = jnp.concatenate([gf[0], Z, gf[1], Z, gf[3], Z, gf[2], Z], axis=1)
        bot = jnp.concatenate([Z, gb[0], Z, gb[1], Z, gb[3], Z, gb[2]], axis=1)
        return jnp.concatenate([top, bot], axis=0)

    w_ih = fuse(p["w_ih_f"], p["w_ih_b"], E)                  # (2E, 8H)
    w_hh = fuse(p["w_hh_f"], p["w_hh_b"], H)                  # (2H, 8H)

    def b4(b):
        return b[0:H], b[H:2 * H], b[2 * H:3 * H], b[3 * H:4 * H]
    bi_f, bf_f, bg_f, bo_f = b4(p["b_f"][0])
    bi_b, bf_b, bg_b, bo_b = b4(p["b_b"][0])
    b_enc = jnp.concatenate([bi_f, bi_b, bf_f, bf_b,
                             bo_f, bo_b, bg_f, bg_b])[None, :]   # (1, 8H)
    return w_ih, w_hh, b_enc


def _dec_fused_weights(p):
    H, E = HIDDEN, EMBED

    def reord(w):   # rows i,f,g,o -> i,f,o,g (sigmoid block first, tanh last)
        return jnp.concatenate([w[0:H], w[H:2 * H],
                                w[3 * H:4 * H], w[2 * H:3 * H]], axis=0)
    wih = reord(p["dec_w_ih"])                                # (4H, E+H)
    whh = reord(p["dec_w_hh"])                                # (4H, H)
    w_y = wih[:, :E].T                                        # (E, 4H) hoisted
    w_oh = jnp.concatenate([wih[:, E:].T, whh.T], axis=0)     # (2H, 4H): [o|h]
    b = p["dec_b"][0]
    b_dec = jnp.concatenate([b[0:H], b[H:2 * H], b[3 * H:4 * H],
                             b[2 * H:3 * H]])[None, :]        # (1, 4H)
    return w_y, w_oh, b_dec


# ================================ glue =====================================
def nmt_forward(params, src_ids, src_lengths, tgt_ids):
    """src_ids: (T_src, B) int32, tgt_ids: (T_tgt, B) int32 (time-major, like
    vocab.to_input_tensor). Returns per-example scores (B,)."""
    T, B = src_ids.shape
    Tm = tgt_ids.shape[0] - 1
    E, H = EMBED, HIDDEN
    pad_b = BP - B

    # --- pad batch to BP=8 so every per-step tile is a full (8, lanes) tile ---
    src_p = jnp.pad(src_ids, ((0, 0), (0, pad_b)), constant_values=PAD)
    tgt_p = jnp.pad(tgt_ids, ((0, 0), (0, pad_b)), constant_values=PAD)
    lens_p = jnp.pad(src_lengths, (0, pad_b), constant_values=1)  # avoid all-masked rows

    # --- encoder inputs, time-major flattened (row = t*BP + b) ---
    X = params["src_emb"][src_p]                              # (T, BP, E)
    x_enc = jnp.concatenate([X, X[::-1]], axis=-1).reshape(T * BP, 2 * E)

    valid = (jnp.arange(T)[:, None] < lens_p[None, :]).astype(F32)   # (T, BP)
    m_enc = jnp.concatenate(
        [jnp.broadcast_to(valid[:, :, None], (T, BP, H)),
         jnp.broadcast_to(valid[::-1][:, :, None], (T, BP, H))],
        axis=-1).reshape(T * BP, 2 * H)

    # additive attention bias over flattened (t*BP + b') columns:
    # 0 where attendable (own example & not pad), -1e30 otherwise
    col_b = jnp.arange(T * BP, dtype=jnp.int32) % BP
    col_t = jnp.arange(T * BP, dtype=jnp.int32) // BP
    attend = ((col_b[None, :] == jnp.arange(BP, dtype=jnp.int32)[:, None])
              & (col_t[None, :] < lens_p[:, None]))
    att_bias = jnp.where(attend, 0.0, NEG).astype(F32)        # (BP, T*BP)

    # --- decoder inputs ---
    Y = params["tgt_emb"][tgt_p[:-1]]                         # (Tm, BP, E)
    y_dec = Y.reshape(Tm * BP, E)

    gold = tgt_p[1:].reshape(Tm * BP)                         # (Tm*BP,)
    tmask = (gold != PAD).astype(F32)
    G = jax.nn.one_hot(gold, VPAD, dtype=F32) * tmask[:, None]    # (Tm*BP, VPAD)
    selT = (jnp.arange(Tm * BP, dtype=jnp.int32)[None, :] % BP
            == jnp.arange(BP, dtype=jnp.int32)[:, None]).astype(F32)  # (BP, Tm*BP)

    # --- fused / pre-transposed weights (every in-kernel dot is x @ W) ---
    w_ih_enc, w_hh_enc, b_enc = _enc_fused_weights(params)
    w_y, w_oh, b_dec = _dec_fused_weights(params)
    w_hproj = params["w_hproj"].T                             # (2H, H)
    w_att = params["w_att"]                                   # (H, 2H)
    w_comb = params["w_comb"].T                               # (3H, H): rows [a | h]
    w_voc = jnp.zeros((H, VPAD), F32).at[:, :V_TGT].set(params["w_vocab"].T)
    v_bias = jnp.where(jnp.arange(VPAD) < V_TGT, 0.0, NEG).astype(F32)[None, :]

    inputs = [x_enc, m_enc, att_bias, y_dec, selT, G,
              w_ih_enc, w_hh_enc, b_enc, w_hproj, w_att,
              w_y, w_oh, b_dec, w_comb, w_voc, v_bias]

    slab = nmt_fused_call(inputs)                             # (BP, VPAD)
    return jnp.sum(slab, axis=-1)[:B]                         # (B,)


def init_params(key):
    ks = jax.random.split(key, 16)
    w = lambda k, shape: jax.random.normal(k, shape, F32) * 0.1
    p = {}
    p["src_emb"] = w(ks[0], (V_SRC, EMBED)).at[PAD].set(0.0)
    p["tgt_emb"] = w(ks[1], (V_TGT, EMBED)).at[PAD].set(0.0)
    # encoder bidirectional LSTM (bias_ih + bias_hh folded into one bias)
    p["w_ih_f"] = w(ks[2], (4 * HIDDEN, EMBED))
    p["w_hh_f"] = w(ks[3], (4 * HIDDEN, HIDDEN))
    p["b_f"] = w(ks[4], (1, 4 * HIDDEN))
    p["w_ih_b"] = w(ks[5], (4 * HIDDEN, EMBED))
    p["w_hh_b"] = w(ks[6], (4 * HIDDEN, HIDDEN))
    p["b_b"] = w(ks[7], (1, 4 * HIDDEN))
    # projections
    p["w_hproj"] = w(ks[8], (HIDDEN, 2 * HIDDEN))
    p["w_cproj"] = w(ks[9], (HIDDEN, 2 * HIDDEN))   # unused: ref uses h_projection for cell too
    p["w_att"] = w(ks[10], (HIDDEN, 2 * HIDDEN))
    # decoder LSTMCell
    p["dec_w_ih"] = w(ks[11], (4 * HIDDEN, EMBED + HIDDEN))
    p["dec_w_hh"] = w(ks[12], (4 * HIDDEN, HIDDEN))
    p["dec_b"] = w(ks[13], (1, 4 * HIDDEN))
    p["w_comb"] = w(ks[14], (HIDDEN, 3 * HIDDEN))
    p["w_vocab"] = w(ks[15], (V_TGT, HIDDEN))
    return p


if __name__ == "__main__":
    key = jax.random.PRNGKey(0)
    kp, k_src, k_tgt = jax.random.split(key, 3)
    params = init_params(kp)

    # source: lengths sorted descending (pack_padded_sequence convention)
    src_lengths = jnp.array([T_SRC, T_SRC - 2], dtype=jnp.int32)
    src_ids = jax.random.randint(k_src, (T_SRC, BATCH), 3, V_SRC, dtype=jnp.int32)
    src_ids = jnp.where(jnp.arange(T_SRC)[:, None] < src_lengths[None, :],
                        src_ids, PAD)

    # target: starts with <s>, padded tail for the shorter example
    tgt_lengths = jnp.array([T_TGT, T_TGT - 2], dtype=jnp.int32)
    tgt_ids = jax.random.randint(k_tgt, (T_TGT, BATCH), 3, V_TGT, dtype=jnp.int32)
    tgt_ids = tgt_ids.at[0, :].set(BOS)
    tgt_ids = jnp.where(jnp.arange(T_TGT)[:, None] < tgt_lengths[None, :],
                        tgt_ids, PAD)

    scores = jax.jit(nmt_forward)(params, src_ids, src_lengths, tgt_ids)
    jax.block_until_ready(scores)
    assert scores.shape == (BATCH,)
    assert bool(jnp.all(jnp.isfinite(scores)))
    print("KERNEL_OK")
</pallas_src>

<mosaic_0001>
module attributes {stable_mosaic.version = 11 : i64} {
  func.func @nmt_kernel(%arg0: i32, %arg1: memref<64x64xf32, #tpu.memory_space<vmem>>, %arg2: memref<64x64xf32, #tpu.memory_space<vmem>>, %arg3: memref<8x64xf32, #tpu.memory_space<vmem>>, %arg4: memref<56x32xf32, #tpu.memory_space<vmem>>, %arg5: memref<8x56xf32, #tpu.memory_space<vmem>>, %arg6: memref<56x128xf32, #tpu.memory_space<vmem>>, %arg7: memref<64x256xf32, #tpu.memory_space<vmem>>, %arg8: memref<64x256xf32, #tpu.memory_space<vmem>>, %arg9: memref<1x256xf32, #tpu.memory_space<vmem>>, %arg10: memref<64x32xf32, #tpu.memory_space<vmem>>, %arg11: memref<32x64xf32, #tpu.memory_space<vmem>>, %arg12: memref<32x128xf32, #tpu.memory_space<vmem>>, %arg13: memref<64x128xf32, #tpu.memory_space<vmem>>, %arg14: memref<1x128xf32, #tpu.memory_space<vmem>>, %arg15: memref<96x32xf32, #tpu.memory_space<vmem>>, %arg16: memref<32x128xf32, #tpu.memory_space<vmem>>, %arg17: memref<1x128xf32, #tpu.memory_space<vmem>>, %arg18: memref<8x128xf32, #tpu.memory_space<vmem>>) attributes {dimension_semantics = [#tpu.dimension_semantics<arbitrary>], iteration_bounds = array<i64: 1>, scalar_prefetch = 0 : i64, scratch_operands = 0 : i64, tpu.core_type = #tpu.core_type<tc>, window_params = [{pipeline_mode = #tpu.pipeline_mode<synchronous>, transform_indices = @transform_0, window_bounds = array<i64: 64, 64>}, {pipeline_mode = #tpu.pipeline_mode<synchronous>, transform_indices = @transform_1, window_bounds = array<i64: 64, 64>}, {pipeline_mode = #tpu.pipeline_mode<synchronous>, transform_indices = @transform_2, window_bounds = array<i64: 8, 64>}, {pipeline_mode = #tpu.pipeline_mode<synchronous>, transform_indices = @transform_3, window_bounds = array<i64: 56, 32>}, {pipeline_mode = #tpu.pipeline_mode<synchronous>, transform_indices = @transform_4, window_bounds = array<i64: 8, 56>}, {pipeline_mode = #tpu.pipeline_mode<synchronous>, transform_indices = @transform_5, window_bounds = array<i64: 56, 128>}, {pipeline_mode = #tpu.pipeline_mode<synchronous>, transform_indices = @transform_6, window_bounds = array<i64: 64, 256>}, {pipeline_mode = #tpu.pipeline_mode<synchronous>, transform_indices = @transform_7, window_bounds = array<i64: 64, 256>}, {pipeline_mode = #tpu.pipeline_mode<synchronous>, transform_indices = @transform_8, window_bounds = array<i64: 1, 256>}, {pipeline_mode = #tpu.pipeline_mode<synchronous>, transform_indices = @transform_9, window_bounds = array<i64: 64, 32>}, {pipeline_mode = #tpu.pipeline_mode<synchronous>, transform_indices = @transform_10, window_bounds = array<i64: 32, 64>}, {pipeline_mode = #tpu.pipeline_mode<synchronous>, transform_indices = @transform_11, window_bounds = array<i64: 32, 128>}, {pipeline_mode = #tpu.pipeline_mode<synchronous>, transform_indices = @transform_12, window_bounds = array<i64: 64, 128>}, {pipeline_mode = #tpu.pipeline_mode<synchronous>, transform_indices = @transform_13, window_bounds = array<i64: 1, 128>}, {pipeline_mode = #tpu.pipeline_mode<synchronous>, transform_indices = @transform_14, window_bounds = array<i64: 96, 32>}, {pipeline_mode = #tpu.pipeline_mode<synchronous>, transform_indices = @transform_15, window_bounds = array<i64: 32, 128>}, {pipeline_mode = #tpu.pipeline_mode<synchronous>, transform_indices = @transform_16, window_bounds = array<i64: 1, 128>}, {pipeline_mode = #tpu.pipeline_mode<synchronous>, transform_indices = @transform_17, window_bounds = array<i64: 8, 128>}]} {
    %c0 = arith.constant 0 : index
    %c0_0 = arith.constant 0 : index
    %0 = vector.load %arg1[%c0, %c0_0] : memref<64x64xf32, #tpu.memory_space<vmem>>, vector<64x64xf32>
    %c0_1 = arith.constant 0 : index
    %c0_2 = arith.constant 0 : index
    %1 = vector.load %arg7[%c0_1, %c0_2] : memref<64x256xf32, #tpu.memory_space<vmem>>, vector<64x256xf32>
    %cst = arith.constant dense<0.000000e+00> : vector<64x256xf32>
    %2 = tpu.matmul %0, %1, %cst {dimension_numbers = #tpu.dot_dimension_numbers<[1], [0], [0], [1], [0, 0, 1, 1], [], []>} : vector<64x64xf32>, vector<64x256xf32>, vector<64x256xf32> -> vector<64x256xf32>
    %c0_3 = arith.constant 0 : index
    %c0_4 = arith.constant 0 : index
    %3 = vector.load %arg9[%c0_3, %c0_4] : memref<1x256xf32, #tpu.memory_space<vmem>>, vector<1x256xf32>
    %4 = vector.broadcast %3 : vector<1x256xf32> to vector<64x256xf32>
    %5 = arith.addf %2, %4 : vector<64x256xf32>
    %c0_5 = arith.constant 0 : index
    %c0_6 = arith.constant 0 : index
    %6 = vector.load %arg2[%c0_5, %c0_6] : memref<64x64xf32, #tpu.memory_space<vmem>>, vector<64x64xf32>
    %c0_7 = arith.constant 0 : index
    %c0_8 = arith.constant 0 : index
    %7 = vector.load %arg8[%c0_7, %c0_8] : memref<64x256xf32, #tpu.memory_space<vmem>>, vector<64x256xf32>
    %cst_9 = arith.constant 0.000000e+00 : f32
    %8 = vector.broadcast %cst_9 : f32 to vector<8x64xf32>
    %cst_10 = arith.constant 0.000000e+00 : f32
    %9 = vector.broadcast %cst_10 : f32 to vector<8x64xf32>
    %10 = vector.extract_strided_slice %5 {offsets = [0, 0], sizes = [8, 256], strides = [1, 1]} : vector<64x256xf32> to vector<8x256xf32>
    %cst_11 = arith.constant dense<0.000000e+00> : vector<8x256xf32>
    %11 = tpu.matmul %8, %7, %cst_11 {dimension_numbers = #tpu.dot_dimension_numbers<[1], [0], [0], [1], [0, 0, 1, 1], [], []>} : vector<8x64xf32>, vector<64x256xf32>, vector<8x256xf32> -> vector<8x256xf32>
    %12 = arith.addf %10, %11 : vector<8x256xf32>
    %13 = vector.extract_strided_slice %12 {offsets = [0, 0], sizes = [8, 192], strides = [1, 1]} : vector<8x256xf32> to vector<8x192xf32>
    %14 = arith.negf %13 : vector<8x192xf32>
    %15 = math.exp %14 : vector<8x192xf32>
    %cst_12 = arith.constant 1.000000e+00 : f32
    %16 = vector.broadcast %cst_12 : f32 to vector<8x192xf32>
    %17 = arith.addf %16, %15 : vector<8x192xf32>
    %18 = arith.divf %16, %17 : vector<8x192xf32>
    %19 = vector.extract_strided_slice %18 {offsets = [0, 0], sizes = [8, 64], strides = [1, 1]} : vector<8x192xf32> to vector<8x64xf32>
    %20 = vector.extract_strided_slice %18 {offsets = [0, 64], sizes = [8, 64], strides = [1, 1]} : vector<8x192xf32> to vector<8x64xf32>
    %21 = vector.extract_strided_slice %18 {offsets = [0, 128], sizes = [8, 64], strides = [1, 1]} : vector<8x192xf32> to vector<8x64xf32>
    %22 = vector.extract_strided_slice %12 {offsets = [0, 192], sizes = [8, 64], strides = [1, 1]} : vector<8x256xf32> to vector<8x64xf32>
    %23 = math.tanh %22 : vector<8x64xf32>
    %24 = arith.mulf %20, %9 : vector<8x64xf32>
    %25 = arith.mulf %19, %23 : vector<8x64xf32>
    %26 = arith.addf %24, %25 : vector<8x64xf32>
    %27 = math.tanh %26 : vector<8x64xf32>
    %28 = arith.mulf %21, %27 : vector<8x64xf32>
    %29 = vector.extract_strided_slice %6 {offsets = [0, 0], sizes = [8, 64], strides = [1, 1]} : vector<64x64xf32> to vector<8x64xf32>
    %30 = arith.mulf %29, %28 : vector<8x64xf32>
    %cst_13 = arith.constant 1.000000e+00 : f32
    %31 = vector.broadcast %cst_13 : f32 to vector<8x64xf32>
    %32 = arith.subf %31, %29 : vector<8x64xf32>
    %33 = arith.mulf %32, %8 : vector<8x64xf32>
    %34 = arith.addf %30, %33 : vector<8x64xf32>
    %35 = arith.mulf %29, %26 : vector<8x64xf32>
    %cst_14 = arith.constant 1.000000e+00 : f32
    %36 = vector.broadcast %cst_14 : f32 to vector<8x64xf32>
    %37 = arith.subf %36, %29 : vector<8x64xf32>
    %38 = arith.mulf %37, %9 : vector<8x64xf32>
    %39 = arith.addf %35, %38 : vector<8x64xf32>
    %40 = vector.extract_strided_slice %5 {offsets = [8, 0], sizes = [8, 256], strides = [1, 1]} : vector<64x256xf32> to vector<8x256xf32>
    %cst_15 = arith.constant dense<0.000000e+00> : vector<8x256xf32>
    %41 = tpu.matmul %34, %7, %cst_15 {dimension_numbers = #tpu.dot_dimension_numbers<[1], [0], [0], [1], [0, 0, 1, 1], [], []>} : vector<8x64xf32>, vector<64x256xf32>, vector<8x256xf32> -> vector<8x256xf32>
    %42 = arith.addf %40, %41 : vector<8x256xf32>
    %43 = vector.extract_strided_slice %42 {offsets = [0, 0], sizes = [8, 192], strides = [1, 1]} : vector<8x256xf32> to vector<8x192xf32>
    %44 = arith.negf %43 : vector<8x192xf32>
    %45 = math.exp %44 : vector<8x192xf32>
    %cst_16 = arith.constant 1.000000e+00 : f32
    %46 = vector.broadcast %cst_16 : f32 to vector<8x192xf32>
    %47 = arith.addf %46, %45 : vector<8x192xf32>
    %48 = arith.divf %46, %47 : vector<8x192xf32>
    %49 = vector.extract_strided_slice %48 {offsets = [0, 0], sizes = [8, 64], strides = [1, 1]} : vector<8x192xf32> to vector<8x64xf32>
    %50 = vector.extract_strided_slice %48 {offsets = [0, 64], sizes = [8, 64], strides = [1, 1]} : vector<8x192xf32> to vector<8x64xf32>
    %51 = vector.extract_strided_slice %48 {offsets = [0, 128], sizes = [8, 64], strides = [1, 1]} : vector<8x192xf32> to vector<8x64xf32>
    %52 = vector.extract_strided_slice %42 {offsets = [0, 192], sizes = [8, 64], strides = [1, 1]} : vector<8x256xf32> to vector<8x64xf32>
    %53 = math.tanh %52 : vector<8x64xf32>
    %54 = arith.mulf %50, %39 : vector<8x64xf32>
    %55 = arith.mulf %49, %53 : vector<8x64xf32>
    %56 = arith.addf %54, %55 : vector<8x64xf32>
    %57 = math.tanh %56 : vector<8x64xf32>
    %58 = arith.mulf %51, %57 : vector<8x64xf32>
    %59 = vector.extract_strided_slice %6 {offsets = [8, 0], sizes = [8, 64], strides = [1, 1]} : vector<64x64xf32> to vector<8x64xf32>
    %60 = arith.mulf %59, %58 : vector<8x64xf32>
    %cst_17 = arith.constant 1.000000e+00 : f32
    %61 = vector.broadcast %cst_17 : f32 to vector<8x64xf32>
    %62 = arith.subf %61, %59 : vector<8x64xf32>
    %63 = arith.mulf %62, %34 : vector<8x64xf32>
    %64 = arith.addf %60, %63 : vector<8x64xf32>
    %65 = arith.mulf %59, %56 : vector<8x64xf32>
    %cst_18 = arith.constant 1.000000e+00 : f32
    %66 = vector.broadcast %cst_18 : f32 to vector<8x64xf32>
    %67 = arith.subf %66, %59 : vector<8x64xf32>
    %68 = arith.mulf %67, %39 : vector<8x64xf32>
    %69 = arith.addf %65, %68 : vector<8x64xf32>
    %70 = vector.extract_strided_slice %5 {offsets = [16, 0], sizes = [8, 256], strides = [1, 1]} : vector<64x256xf32> to vector<8x256xf32>
    %cst_19 = arith.constant dense<0.000000e+00> : vector<8x256xf32>
    %71 = tpu.matmul %64, %7, %cst_19 {dimension_numbers = #tpu.dot_dimension_numbers<[1], [0], [0], [1], [0, 0, 1, 1], [], []>} : vector<8x64xf32>, vector<64x256xf32>, vector<8x256xf32> -> vector<8x256xf32>
    %72 = arith.addf %70, %71 : vector<8x256xf32>
    %73 = vector.extract_strided_slice %72 {offsets = [0, 0], sizes = [8, 192], strides = [1, 1]} : vector<8x256xf32> to vector<8x192xf32>
    %74 = arith.negf %73 : vector<8x192xf32>
    %75 = math.exp %74 : vector<8x192xf32>
    %cst_20 = arith.constant 1.000000e+00 : f32
    %76 = vector.broadcast %cst_20 : f32 to vector<8x192xf32>
    %77 = arith.addf %76, %75 : vector<8x192xf32>
    %78 = arith.divf %76, %77 : vector<8x192xf32>
    %79 = vector.extract_strided_slice %78 {offsets = [0, 0], sizes = [8, 64], strides = [1, 1]} : vector<8x192xf32> to vector<8x64xf32>
    %80 = vector.extract_strided_slice %78 {offsets = [0, 64], sizes = [8, 64], strides = [1, 1]} : vector<8x192xf32> to vector<8x64xf32>
    %81 = vector.extract_strided_slice %78 {offsets = [0, 128], sizes = [8, 64], strides = [1, 1]} : vector<8x192xf32> to vector<8x64xf32>
    %82 = vector.extract_strided_slice %72 {offsets = [0, 192], sizes = [8, 64], strides = [1, 1]} : vector<8x256xf32> to vector<8x64xf32>
    %83 = math.tanh %82 : vector<8x64xf32>
    %84 = arith.mulf %80, %69 : vector<8x64xf32>
    %85 = arith.mulf %79, %83 : vector<8x64xf32>
    %86 = arith.addf %84, %85 : vector<8x64xf32>
    %87 = math.tanh %86 : vector<8x64xf32>
    %88 = arith.mulf %81, %87 : vector<8x64xf32>
    %89 = vector.extract_strided_slice %6 {offsets = [16, 0], sizes = [8, 64], strides = [1, 1]} : vector<64x64xf32> to vector<8x64xf32>
    %90 = arith.mulf %89, %88 : vector<8x64xf32>
    %cst_21 = arith.constant 1.000000e+00 : f32
    %91 = vector.broadcast %cst_21 : f32 to vector<8x64xf32>
    %92 = arith.subf %91, %89 : vector<8x64xf32>
    %93 = arith.mulf %92, %64 : vector<8x64xf32>
    %94 = arith.addf %90, %93 : vector<8x64xf32>
    %95 = arith.mulf %89, %86 : vector<8x64xf32>
    %cst_22 = arith.constant 1.000000e+00 : f32
    %96 = vector.broadcast %cst_22 : f32 to vector<8x64xf32>
    %97 = arith.subf %96, %89 : vector<8x64xf32>
    %98 = arith.mulf %97, %69 : vector<8x64xf32>
    %99 = arith.addf %95, %98 : vector<8x64xf32>
    %100 = vector.extract_strided_slice %5 {offsets = [24, 0], sizes = [8, 256], strides = [1, 1]} : vector<64x256xf32> to vector<8x256xf32>
    %cst_23 = arith.constant dense<0.000000e+00> : vector<8x256xf32>
    %101 = tpu.matmul %94, %7, %cst_23 {dimension_numbers = #tpu.dot_dimension_numbers<[1], [0], [0], [1], [0, 0, 1, 1], [], []>} : vector<8x64xf32>, vector<64x256xf32>, vector<8x256xf32> -> vector<8x256xf32>
    %102 = arith.addf %100, %101 : vector<8x256xf32>
    %103 = vector.extract_strided_slice %102 {offsets = [0, 0], sizes = [8, 192], strides = [1, 1]} : vector<8x256xf32> to vector<8x192xf32>
    %104 = arith.negf %103 : vector<8x192xf32>
    %105 = math.exp %104 : vector<8x192xf32>
    %cst_24 = arith.constant 1.000000e+00 : f32
    %106 = vector.broadcast %cst_24 : f32 to vector<8x192xf32>
    %107 = arith.addf %106, %105 : vector<8x192xf32>
    %108 = arith.divf %106, %107 : vector<8x192xf32>
    %109 = vector.extract_strided_slice %108 {offsets = [0, 0], sizes = [8, 64], strides = [1, 1]} : vector<8x192xf32> to vector<8x64xf32>
    %110 = vector.extract_strided_slice %108 {offsets = [0, 64], sizes = [8, 64], strides = [1, 1]} : vector<8x192xf32> to vector<8x64xf32>
    %111 = vector.extract_strided_slice %108 {offsets = [0, 128], sizes = [8, 64], strides = [1, 1]} : vector<8x192xf32> to vector<8x64xf32>
    %112 = vector.extract_strided_slice %102 {offsets = [0, 192], sizes = [8, 64], strides = [1, 1]} : vector<8x256xf32> to vector<8x64xf32>
    %113 = math.tanh %112 : vector<8x64xf32>
    %114 = arith.mulf %110, %99 : vector<8x64xf32>
    %115 = arith.mulf %109, %113 : vector<8x64xf32>
    %116 = arith.addf %114, %115 : vector<8x64xf32>
    %117 = math.tanh %116 : vector<8x64xf32>
    %118 = arith.mulf %111, %117 : vector<8x64xf32>
    %119 = vector.extract_strided_slice %6 {offsets = [24, 0], sizes = [8, 64], strides = [1, 1]} : vector<64x64xf32> to vector<8x64xf32>
    %120 = arith.mulf %119, %118 : vector<8x64xf32>
    %cst_25 = arith.constant 1.000000e+00 : f32
    %121 = vector.broadcast %cst_25 : f32 to vector<8x64xf32>
    %122 = arith.subf %121, %119 : vector<8x64xf32>
    %123 = arith.mulf %122, %94 : vector<8x64xf32>
    %124 = arith.addf %120, %123 : vector<8x64xf32>
    %125 = arith.mulf %119, %116 : vector<8x64xf32>
    %cst_26 = arith.constant 1.000000e+00 : f32
    %126 = vector.broadcast %cst_26 : f32 to vector<8x64xf32>
    %127 = arith.subf %126, %119 : vector<8x64xf32>
    %128 = arith.mulf %127, %99 : vector<8x64xf32>
    %129 = arith.addf %125, %128 : vector<8x64xf32>
    %130 = vector.extract_strided_slice %5 {offsets = [32, 0], sizes = [8, 256], strides = [1, 1]} : vector<64x256xf32> to vector<8x256xf32>
    %cst_27 = arith.constant dense<0.000000e+00> : vector<8x256xf32>
    %131 = tpu.matmul %124, %7, %cst_27 {dimension_numbers = #tpu.dot_dimension_numbers<[1], [0], [0], [1], [0, 0, 1, 1], [], []>} : vector<8x64xf32>, vector<64x256xf32>, vector<8x256xf32> -> vector<8x256xf32>
    %132 = arith.addf %130, %131 : vector<8x256xf32>
    %133 = vector.extract_strided_slice %132 {offsets = [0, 0], sizes = [8, 192], strides = [1, 1]} : vector<8x256xf32> to vector<8x192xf32>
    %134 = arith.negf %133 : vector<8x192xf32>
    %135 = math.exp %134 : vector<8x192xf32>
    %cst_28 = arith.constant 1.000000e+00 : f32
    %136 = vector.broadcast %cst_28 : f32 to vector<8x192xf32>
    %137 = arith.addf %136, %135 : vector<8x192xf32>
    %138 = arith.divf %136, %137 : vector<8x192xf32>
    %139 = vector.extract_strided_slice %138 {offsets = [0, 0], sizes = [8, 64], strides = [1, 1]} : vector<8x192xf32> to vector<8x64xf32>
    %140 = vector.extract_strided_slice %138 {offsets = [0, 64], sizes = [8, 64], strides = [1, 1]} : vector<8x192xf32> to vector<8x64xf32>
    %141 = vector.extract_strided_slice %138 {offsets = [0, 128], sizes = [8, 64], strides = [1, 1]} : vector<8x192xf32> to vector<8x64xf32>
    %142 = vector.extract_strided_slice %132 {offsets = [0, 192], sizes = [8, 64], strides = [1, 1]} : vector<8x256xf32> to vector<8x64xf32>
    %143 = math.tanh %142 : vector<8x64xf32>
    %144 = arith.mulf %140, %129 : vector<8x64xf32>
    %145 = arith.mulf %139, %143 : vector<8x64xf32>
    %146 = arith.addf %144, %145 : vector<8x64xf32>
    %147 = math.tanh %146 : vector<8x64xf32>
    %148 = arith.mulf %141, %147 : vector<8x64xf32>
    %149 = vector.extract_strided_slice %6 {offsets = [32, 0], sizes = [8, 64], strides = [1, 1]} : vector<64x64xf32> to vector<8x64xf32>
    %150 = arith.mulf %149, %148 : vector<8x64xf32>
    %cst_29 = arith.constant 1.000000e+00 : f32
    %151 = vector.broadcast %cst_29 : f32 to vector<8x64xf32>
    %152 = arith.subf %151, %149 : vector<8x64xf32>
    %153 = arith.mulf %152, %124 : vector<8x64xf32>
    %154 = arith.addf %150, %153 : vector<8x64xf32>
    %155 = arith.mulf %149, %146 : vector<8x64xf32>
    %cst_30 = arith.constant 1.000000e+00 : f32
    %156 = vector.broadcast %cst_30 : f32 to vector<8x64xf32>
    %157 = arith.subf %156, %149 : vector<8x64xf32>
    %158 = arith.mulf %157, %129 : vector<8x64xf32>
    %159 = arith.addf %155, %158 : vector<8x64xf32>
    %160 = vector.extract_strided_slice %5 {offsets = [40, 0], sizes = [8, 256], strides = [1, 1]} : vector<64x256xf32> to vector<8x256xf32>
    %cst_31 = arith.constant dense<0.000000e+00> : vector<8x256xf32>
    %161 = tpu.matmul %154, %7, %cst_31 {dimension_numbers = #tpu.dot_dimension_numbers<[1], [0], [0], [1], [0, 0, 1, 1], [], []>} : vector<8x64xf32>, vector<64x256xf32>, vector<8x256xf32> -> vector<8x256xf32>
    %162 = arith.addf %160, %161 : vector<8x256xf32>
    %163 = vector.extract_strided_slice %162 {offsets = [0, 0], sizes = [8, 192], strides = [1, 1]} : vector<8x256xf32> to vector<8x192xf32>
    %164 = arith.negf %163 : vector<8x192xf32>
    %165 = math.exp %164 : vector<8x192xf32>
    %cst_32 = arith.constant 1.000000e+00 : f32
    %166 = vector.broadcast %cst_32 : f32 to vector<8x192xf32>
    %167 = arith.addf %166, %165 : vector<8x192xf32>
    %168 = arith.divf %166, %167 : vector<8x192xf32>
    %169 = vector.extract_strided_slice %168 {offsets = [0, 0], sizes = [8, 64], strides = [1, 1]} : vector<8x192xf32> to vector<8x64xf32>
    %170 = vector.extract_strided_slice %168 {offsets = [0, 64], sizes = [8, 64], strides = [1, 1]} : vector<8x192xf32> to vector<8x64xf32>
    %171 = vector.extract_strided_slice %168 {offsets = [0, 128], sizes = [8, 64], strides = [1, 1]} : vector<8x192xf32> to vector<8x64xf32>
    %172 = vector.extract_strided_slice %162 {offsets = [0, 192], sizes = [8, 64], strides = [1, 1]} : vector<8x256xf32> to vector<8x64xf32>
    %173 = math.tanh %172 : vector<8x64xf32>
    %174 = arith.mulf %170, %159 : vector<8x64xf32>
    %175 = arith.mulf %169, %173 : vector<8x64xf32>
    %176 = arith.addf %174, %175 : vector<8x64xf32>
    %177 = math.tanh %176 : vector<8x64xf32>
    %178 = arith.mulf %171, %177 : vector<8x64xf32>
    %179 = vector.extract_strided_slice %6 {offsets = [40, 0], sizes = [8, 64], strides = [1, 1]} : vector<64x64xf32> to vector<8x64xf32>
    %180 = arith.mulf %179, %178 : vector<8x64xf32>
    %cst_33 = arith.constant 1.000000e+00 : f32
    %181 = vector.broadcast %cst_33 : f32 to vector<8x64xf32>
    %182 = arith.subf %181, %179 : vector<8x64xf32>
    %183 = arith.mulf %182, %154 : vector<8x64xf32>
    %184 = arith.addf %180, %183 : vector<8x64xf32>
    %185 = arith.mulf %179, %176 : vector<8x64xf32>
    %cst_34 = arith.constant 1.000000e+00 : f32
    %186 = vector.broadcast %cst_34 : f32 to vector<8x64xf32>
    %187 = arith.subf %186, %179 : vector<8x64xf32>
    %188 = arith.mulf %187, %159 : vector<8x64xf32>
    %189 = arith.addf %185, %188 : vector<8x64xf32>
    %190 = vector.extract_strided_slice %5 {offsets = [48, 0], sizes = [8, 256], strides = [1, 1]} : vector<64x256xf32> to vector<8x256xf32>
    %cst_35 = arith.constant dense<0.000000e+00> : vector<8x256xf32>
    %191 = tpu.matmul %184, %7, %cst_35 {dimension_numbers = #tpu.dot_dimension_numbers<[1], [0], [0], [1], [0, 0, 1, 1], [], []>} : vector<8x64xf32>, vector<64x256xf32>, vector<8x256xf32> -> vector<8x256xf32>
    %192 = arith.addf %190, %191 : vector<8x256xf32>
    %193 = vector.extract_strided_slice %192 {offsets = [0, 0], sizes = [8, 192], strides = [1, 1]} : vector<8x256xf32> to vector<8x192xf32>
    %194 = arith.negf %193 : vector<8x192xf32>
    %195 = math.exp %194 : vector<8x192xf32>
    %cst_36 = arith.constant 1.000000e+00 : f32
    %196 = vector.broadcast %cst_36 : f32 to vector<8x192xf32>
    %197 = arith.addf %196, %195 : vector<8x192xf32>
    %198 = arith.divf %196, %197 : vector<8x192xf32>
    %199 = vector.extract_strided_slice %198 {offsets = [0, 0], sizes = [8, 64], strides = [1, 1]} : vector<8x192xf32> to vector<8x64xf32>
    %200 = vector.extract_strided_slice %198 {offsets = [0, 64], sizes = [8, 64], strides = [1, 1]} : vector<8x192xf32> to vector<8x64xf32>
    %201 = vector.extract_strided_slice %198 {offsets = [0, 128], sizes = [8, 64], strides = [1, 1]} : vector<8x192xf32> to vector<8x64xf32>
    %202 = vector.extract_strided_slice %192 {offsets = [0, 192], sizes = [8, 64], strides = [1, 1]} : vector<8x256xf32> to vector<8x64xf32>
    %203 = math.tanh %202 : vector<8x64xf32>
    %204 = arith.mulf %200, %189 : vector<8x64xf32>
    %205 = arith.mulf %199, %203 : vector<8x64xf32>
    %206 = arith.addf %204, %205 : vector<8x64xf32>
    %207 = math.tanh %206 : vector<8x64xf32>
    %208 = arith.mulf %201, %207 : vector<8x64xf32>
    %209 = vector.extract_strided_slice %6 {offsets = [48, 0], sizes = [8, 64], strides = [1, 1]} : vector<64x64xf32> to vector<8x64xf32>
    %210 = arith.mulf %209, %208 : vector<8x64xf32>
    %cst_37 = arith.constant 1.000000e+00 : f32
    %211 = vector.broadcast %cst_37 : f32 to vector<8x64xf32>
    %212 = arith.subf %211, %209 : vector<8x64xf32>
    %213 = arith.mulf %212, %184 : vector<8x64xf32>
    %214 = arith.addf %210, %213 : vector<8x64xf32>
    %215 = arith.mulf %209, %206 : vector<8x64xf32>
    %cst_38 = arith.constant 1.000000e+00 : f32
    %216 = vector.broadcast %cst_38 : f32 to vector<8x64xf32>
    %217 = arith.subf %216, %209 : vector<8x64xf32>
    %218 = arith.mulf %217, %189 : vector<8x64xf32>
    %219 = arith.addf %215, %218 : vector<8x64xf32>
    %220 = vector.extract_strided_slice %5 {offsets = [56, 0], sizes = [8, 256], strides = [1, 1]} : vector<64x256xf32> to vector<8x256xf32>
    %cst_39 = arith.constant dense<0.000000e+00> : vector<8x256xf32>
    %221 = tpu.matmul %214, %7, %cst_39 {dimension_numbers = #tpu.dot_dimension_numbers<[1], [0], [0], [1], [0, 0, 1, 1], [], []>} : vector<8x64xf32>, vector<64x256xf32>, vector<8x256xf32> -> vector<8x256xf32>
    %222 = arith.addf %220, %221 : vector<8x256xf32>
    %223 = vector.extract_strided_slice %222 {offsets = [0, 0], sizes = [8, 192], strides = [1, 1]} : vector<8x256xf32> to vector<8x192xf32>
    %224 = arith.negf %223 : vector<8x192xf32>
    %225 = math.exp %224 : vector<8x192xf32>
    %cst_40 = arith.constant 1.000000e+00 : f32
    %226 = vector.broadcast %cst_40 : f32 to vector<8x192xf32>
    %227 = arith.addf %226, %225 : vector<8x192xf32>
    %228 = arith.divf %226, %227 : vector<8x192xf32>
    %229 = vector.extract_strided_slice %228 {offsets = [0, 0], sizes = [8, 64], strides = [1, 1]} : vector<8x192xf32> to vector<8x64xf32>
    %230 = vector.extract_strided_slice %228 {offsets = [0, 64], sizes = [8, 64], strides = [1, 1]} : vector<8x192xf32> to vector<8x64xf32>
    %231 = vector.extract_strided_slice %228 {offsets = [0, 128], sizes = [8, 64], strides = [1, 1]} : vector<8x192xf32> to vector<8x64xf32>
    %232 = vector.extract_strided_slice %222 {offsets = [0, 192], sizes = [8, 64], strides = [1, 1]} : vector<8x256xf32> to vector<8x64xf32>
    %233 = math.tanh %232 : vector<8x64xf32>
    %234 = arith.mulf %230, %219 : vector<8x64xf32>
    %235 = arith.mulf %229, %233 : vector<8x64xf32>
    %236 = arith.addf %234, %235 : vector<8x64xf32>
    %237 = math.tanh %236 : vector<8x64xf32>
    %238 = arith.mulf %231, %237 : vector<8x64xf32>
    %239 = vector.extract_strided_slice %6 {offsets = [56, 0], sizes = [8, 64], strides = [1, 1]} : vector<64x64xf32> to vector<8x64xf32>
    %240 = arith.mulf %239, %238 : vector<8x64xf32>
    %cst_41 = arith.constant 1.000000e+00 : f32
    %241 = vector.broadcast %cst_41 : f32 to vector<8x64xf32>
    %242 = arith.subf %241, %239 : vector<8x64xf32>
    %243 = arith.mulf %242, %214 : vector<8x64xf32>
    %244 = arith.addf %240, %243 : vector<8x64xf32>
    %245 = arith.mulf %239, %236 : vector<8x64xf32>
    %cst_42 = arith.constant 1.000000e+00 : f32
    %246 = vector.broadcast %cst_42 : f32 to vector<8x64xf32>
    %247 = arith.subf %246, %239 : vector<8x64xf32>
    %248 = arith.mulf %247, %219 : vector<8x64xf32>
    %249 = arith.addf %245, %248 : vector<8x64xf32>
    %250 = vector.extract_strided_slice %30 {offsets = [0, 0], sizes = [8, 32], strides = [1, 1]} : vector<8x64xf32> to vector<8x32xf32>
    %251 = vector.extract_strided_slice %240 {offsets = [0, 32], sizes = [8, 32], strides = [1, 1]} : vector<8x64xf32> to vector<8x32xf32>
    %252 = tpu.concatenate %250, %251 in 1 : vector<8x32xf32>, vector<8x32xf32> -> vector<8x64xf32>
    %253 = vector.extract_strided_slice %60 {offsets = [0, 0], sizes = [8, 32], strides = [1, 1]} : vector<8x64xf32> to vector<8x32xf32>
    %254 = vector.extract_strided_slice %210 {offsets = [0, 32], sizes = [8, 32], strides = [1, 1]} : vector<8x64xf32> to vector<8x32xf32>
    %255 = tpu.concatenate %253, %254 in 1 : vector<8x32xf32>, vector<8x32xf32> -> vector<8x64xf32>
    %256 = vector.extract_strided_slice %90 {offsets = [0, 0], sizes = [8, 32], strides = [1, 1]} : vector<8x64xf32> to vector<8x32xf32>
    %257 = vector.extract_strided_slice %180 {offsets = [0, 32], sizes = [8, 32], strides = [1, 1]} : vector<8x64xf32> to vector<8x32xf32>
    %258 = tpu.concatenate %256, %257 in 1 : vector<8x32xf32>, vector<8x32xf32> -> vector<8x64xf32>
    %259 = vector.extract_strided_slice %120 {offsets = [0, 0], sizes = [8, 32], strides = [1, 1]} : vector<8x64xf32> to vector<8x32xf32>
    %260 = vector.extract_strided_slice %150 {offsets = [0, 32], sizes = [8, 32], strides = [1, 1]} : vector<8x64xf32> to vector<8x32xf32>
    %261 = tpu.concatenate %259, %260 in 1 : vector<8x32xf32>, vector<8x32xf32> -> vector<8x64xf32>
    %262 = vector.extract_strided_slice %150 {offsets = [0, 0], sizes = [8, 32], strides = [1, 1]} : vector<8x64xf32> to vector<8x32xf32>
    %263 = vector.extract_strided_slice %120 {offsets = [0, 32], sizes = [8, 32], strides = [1, 1]} : vector<8x64xf32> to vector<8x32xf32>
    %264 = tpu.concatenate %262, %263 in 1 : vector<8x32xf32>, vector<8x32xf32> -> vector<8x64xf32>
    %265 = vector.extract_strided_slice %180 {offsets = [0, 0], sizes = [8, 32], strides = [1, 1]} : vector<8x64xf32> to vector<8x32xf32>
    %266 = vector.extract_strided_slice %90 {offsets = [0, 32], sizes = [8, 32], strides = [1, 1]} : vector<8x64xf32> to vector<8x32xf32>
    %267 = tpu.concatenate %265, %266 in 1 : vector<8x32xf32>, vector<8x32xf32> -> vector<8x64xf32>
    %268 = vector.extract_strided_slice %210 {offsets = [0, 0], sizes = [8, 32], strides = [1, 1]} : vector<8x64xf32> to vector<8x32xf32>
    %269 = vector.extract_strided_slice %60 {offsets = [0, 32], sizes = [8, 32], strides = [1, 1]} : vector<8x64xf32> to vector<8x32xf32>
    %270 = tpu.concatenate %268, %269 in 1 : vector<8x32xf32>, vector<8x32xf32> -> vector<8x64xf32>
    %271 = vector.extract_strided_slice %240 {offsets = [0, 0], sizes = [8, 32], strides = [1, 1]} : vector<8x64xf32> to vector<8x32xf32>
    %272 = vector.extract_strided_slice %30 {offsets = [0, 32], sizes = [8, 32], strides = [1, 1]} : vector<8x64xf32> to vector<8x32xf32>
    %273 = tpu.concatenate %271, %272 in 1 : vector<8x32xf32>, vector<8x32xf32> -> vector<8x64xf32>
    %274 = tpu.concatenate %252, %255, %258, %261, %264, %267, %270, %273 in 0 : vector<8x64xf32>, vector<8x64xf32>, vector<8x64xf32>, vector<8x64xf32>, vector<8x64xf32>, vector<8x64xf32>, vector<8x64xf32>, vector<8x64xf32> -> vector<64x64xf32>
    %c0_43 = arith.constant 0 : index
    %c0_44 = arith.constant 0 : index
    %275 = vector.load %arg10[%c0_43, %c0_44] : memref<64x32xf32, #tpu.memory_space<vmem>>, vector<64x32xf32>
    %cst_45 = arith.constant dense<0.000000e+00> : vector<8x32xf32>
    %276 = tpu.matmul %244, %275, %cst_45 {dimension_numbers = #tpu.dot_dimension_numbers<[1], [0], [0], [1], [0, 0, 1, 1], [], []>} : vector<8x64xf32>, vector<64x32xf32>, vector<8x32xf32> -> vector<8x32xf32>
    %cst_46 = arith.constant dense<0.000000e+00> : vector<8x32xf32>
    %277 = tpu.matmul %249, %275, %cst_46 {dimension_numbers = #tpu.dot_dimension_numbers<[1], [0], [0], [1], [0, 0, 1, 1], [], []>} : vector<8x64xf32>, vector<64x32xf32>, vector<8x32xf32> -> vector<8x32xf32>
    %cst_47 = arith.constant 0.000000e+00 : f32
    %278 = vector.broadcast %cst_47 : f32 to vector<8x32xf32>
    %c0_48 = arith.constant 0 : index
    %c0_49 = arith.constant 0 : index
    %279 = vector.load %arg11[%c0_48, %c0_49] : memref<32x64xf32, #tpu.memory_space<vmem>>, vector<32x64xf32>
    %cst_50 = arith.constant dense<0.000000e+00> : vector<32x64xf32>
    %280 = tpu.matmul %279, %274, %cst_50 {dimension_numbers = #tpu.dot_dimension_numbers<[1], [1], [0], [0], [0, 0, 1, 0], [], []>} : vector<32x64xf32>, vector<64x64xf32>, vector<32x64xf32> -> vector<32x64xf32>
    %c0_51 = arith.constant 0 : index
    %c0_52 = arith.constant 0 : index
    %281 = vector.load %arg4[%c0_51, %c0_52] : memref<56x32xf32, #tpu.memory_space<vmem>>, vector<56x32xf32>
    %c0_53 = arith.constant 0 : index
    %c0_54 = arith.constant 0 : index
    %282 = vector.load %arg12[%c0_53, %c0_54] : memref<32x128xf32, #tpu.memory_space<vmem>>, vector<32x128xf32>
    %cst_55 = arith.constant dense<0.000000e+00> : vector<56x128xf32>
    %283 = tpu.matmul %281, %282, %cst_55 {dimension_numbers = #tpu.dot_dimension_numbers<[1], [0], [0], [1], [0, 0, 1, 1], [], []>} : vector<56x32xf32>, vector<32x128xf32>, vector<56x128xf32> -> vector<56x128xf32>
    %c0_56 = arith.constant 0 : index
    %c0_57 = arith.constant 0 : index
    %284 = vector.load %arg14[%c0_56, %c0_57] : memref<1x128xf32, #tpu.memory_space<vmem>>, vector<1x128xf32>
    %285 = vector.broadcast %284 : vector<1x128xf32> to vector<56x128xf32>
    %286 = arith.addf %283, %285 : vector<56x128xf32>
    %c0_58 = arith.constant 0 : index
    %c0_59 = arith.constant 0 : index
    %287 = vector.load %arg3[%c0_58, %c0_59] : memref<8x64xf32, #tpu.memory_space<vmem>>, vector<8x64xf32>
    %c0_60 = arith.constant 0 : index
    %c0_61 = arith.constant 0 : index
    %288 = vector.load %arg13[%c0_60, %c0_61] : memref<64x128xf32, #tpu.memory_space<vmem>>, vector<64x128xf32>
    %c0_62 = arith.constant 0 : index
    %c0_63 = arith.constant 0 : index
    %289 = vector.load %arg15[%c0_62, %c0_63] : memref<96x32xf32, #tpu.memory_space<vmem>>, vector<96x32xf32>
    %290 = tpu.concatenate %278, %276 in 1 : vector<8x32xf32>, vector<8x32xf32> -> vector<8x64xf32>
    %291 = vector.extract_strided_slice %286 {offsets = [0, 0], sizes = [8, 128], strides = [1, 1]} : vector<56x128xf32> to vector<8x128xf32>
    %cst_64 = arith.constant dense<0.000000e+00> : vector<8x128xf32>
    %292 = tpu.matmul %290, %288, %cst_64 {dimension_numbers = #tpu.dot_dimension_numbers<[1], [0], [0], [1], [0, 0, 1, 1], [], []>} : vector<8x64xf32>, vector<64x128xf32>, vector<8x128xf32> -> vector<8x128xf32>
    %293 = arith.addf %291, %292 : vector<8x128xf32>
    %294 = vector.extract_strided_slice %293 {offsets = [0, 0], sizes = [8, 96], strides = [1, 1]} : vector<8x128xf32> to vector<8x96xf32>
    %295 = arith.negf %294 : vector<8x96xf32>
    %296 = math.exp %295 : vector<8x96xf32>
    %cst_65 = arith.constant 1.000000e+00 : f32
    %297 = vector.broadcast %cst_65 : f32 to vector<8x96xf32>
    %298 = arith.addf %297, %296 : vector<8x96xf32>
    %299 = arith.divf %297, %298 : vector<8x96xf32>
    %300 = vector.extract_strided_slice %299 {offsets = [0, 0], sizes = [8, 32], strides = [1, 1]} : vector<8x96xf32> to vector<8x32xf32>
    %301 = vector.extract_strided_slice %299 {offsets = [0, 32], sizes = [8, 32], strides = [1, 1]} : vector<8x96xf32> to vector<8x32xf32>
    %302 = vector.extract_strided_slice %299 {offsets = [0, 64], sizes = [8, 32], strides = [1, 1]} : vector<8x96xf32> to vector<8x32xf32>
    %303 = vector.extract_strided_slice %293 {offsets = [0, 96], sizes = [8, 32], strides = [1, 1]} : vector<8x128xf32> to vector<8x32xf32>
    %304 = math.tanh %303 : vector<8x32xf32>
    %305 = arith.mulf %301, %277 : vector<8x32xf32>
    %306 = arith.mulf %300, %304 : vector<8x32xf32>
    %307 = arith.addf %305, %306 : vector<8x32xf32>
    %308 = math.tanh %307 : vector<8x32xf32>
    %309 = arith.mulf %302, %308 : vector<8x32xf32>
    %cst_66 = arith.constant dense<0.000000e+00> : vector<8x64xf32>
    %310 = tpu.matmul %309, %280, %cst_66 {dimension_numbers = #tpu.dot_dimension_numbers<[1], [0], [0], [1], [0, 0, 1, 1], [], []>} : vector<8x32xf32>, vector<32x64xf32>, vector<8x64xf32> -> vector<8x64xf32>
    %311 = arith.addf %310, %287 : vector<8x64xf32>
    %cst_67 = arith.constant dense<0xFF800000> : vector<8xf32>
    %312 = vector.multi_reduction <maximumf>, %311, %cst_67 [1] : vector<8x64xf32> to vector<8xf32>
    %313 = vector.shape_cast %312 : vector<8xf32> to vector<8x1xf32>
    %314 = vector.broadcast %313 : vector<8x1xf32> to vector<8x64xf32>
    %315 = arith.subf %311, %314 : vector<8x64xf32>
    %316 = math.exp %315 : vector<8x64xf32>
    %cst_68 = arith.constant dense<0.000000e+00> : vector<8xf32>
    %317 = vector.multi_reduction <add>, %316, %cst_68 [1] : vector<8x64xf32> to vector<8xf32>
    %318 = vector.shape_cast %317 : vector<8xf32> to vector<8x1xf32>
    %319 = tpu.reciprocal %318 {approx = true} : vector<8x1xf32> -> vector<8x1xf32>
    %320 = vector.broadcast %319 : vector<8x1xf32> to vector<8x64xf32>
    %321 = arith.mulf %316, %320 : vector<8x64xf32>
    %cst_69 = arith.constant dense<0.000000e+00> : vector<8x64xf32>
    %322 = tpu.matmul %321, %274, %cst_69 {dimension_numbers = #tpu.dot_dimension_numbers<[1], [0], [0], [1], [0, 0, 1, 1], [], []>} : vector<8x64xf32>, vector<64x64xf32>, vector<8x64xf32> -> vector<8x64xf32>
    %323 = tpu.concatenate %322, %309 in 1 : vector<8x64xf32>, vector<8x32xf32> -> vector<8x96xf32>
    %cst_70 = arith.constant dense<0.000000e+00> : vector<8x32xf32>
    %324 = tpu.matmul %323, %289, %cst_70 {dimension_numbers = #tpu.dot_dimension_numbers<[1], [0], [0], [1], [0, 0, 1, 1], [], []>} : vector<8x96xf32>, vector<96x32xf32>, vector<8x32xf32> -> vector<8x32xf32>
    %325 = math.tanh %324 : vector<8x32xf32>
    %326 = tpu.concatenate %325, %309 in 1 : vector<8x32xf32>, vector<8x32xf32> -> vector<8x64xf32>
    %327 = vector.extract_strided_slice %286 {offsets = [8, 0], sizes = [8, 128], strides = [1, 1]} : vector<56x128xf32> to vector<8x128xf32>
    %cst_71 = arith.constant dense<0.000000e+00> : vector<8x128xf32>
    %328 = tpu.matmul %326, %288, %cst_71 {dimension_numbers = #tpu.dot_dimension_numbers<[1], [0], [0], [1], [0, 0, 1, 1], [], []>} : vector<8x64xf32>, vector<64x128xf32>, vector<8x128xf32> -> vector<8x128xf32>
    %329 = arith.addf %327, %328 : vector<8x128xf32>
    %330 = vector.extract_strided_slice %329 {offsets = [0, 0], sizes = [8, 96], strides = [1, 1]} : vector<8x128xf32> to vector<8x96xf32>
    %331 = arith.negf %330 : vector<8x96xf32>
    %332 = math.exp %331 : vector<8x96xf32>
    %cst_72 = arith.constant 1.000000e+00 : f32
    %333 = vector.broadcast %cst_72 : f32 to vector<8x96xf32>
    %334 = arith.addf %333, %332 : vector<8x96xf32>
    %335 = arith.divf %333, %334 : vector<8x96xf32>
    %336 = vector.extract_strided_slice %335 {offsets = [0, 0], sizes = [8, 32], strides = [1, 1]} : vector<8x96xf32> to vector<8x32xf32>
    %337 = vector.extract_strided_slice %335 {offsets = [0, 32], sizes = [8, 32], strides = [1, 1]} : vector<8x96xf32> to vector<8x32xf32>
    %338 = vector.extract_strided_slice %335 {offsets = [0, 64], sizes = [8, 32], strides = [1, 1]} : vector<8x96xf32> to vector<8x32xf32>
    %339 = vector.extract_strided_slice %329 {offsets = [0, 96], sizes = [8, 32], strides = [1, 1]} : vector<8x128xf32> to vector<8x32xf32>
    %340 = math.tanh %339 : vector<8x32xf32>
    %341 = arith.mulf %337, %307 : vector<8x32xf32>
    %342 = arith.mulf %336, %340 : vector<8x32xf32>
    %343 = arith.addf %341, %342 : vector<8x32xf32>
    %344 = math.tanh %343 : vector<8x32xf32>
    %345 = arith.mulf %338, %344 : vector<8x32xf32>
    %cst_73 = arith.constant dense<0.000000e+00> : vector<8x64xf32>
    %346 = tpu.matmul %345, %280, %cst_73 {dimension_numbers = #tpu.dot_dimension_numbers<[1], [0], [0], [1], [0, 0, 1, 1], [], []>} : vector<8x32xf32>, vector<32x64xf32>, vector<8x64xf32> -> vector<8x64xf32>
    %347 = arith.addf %346, %287 : vector<8x64xf32>
    %cst_74 = arith.constant dense<0xFF800000> : vector<8xf32>
    %348 = vector.multi_reduction <maximumf>, %347, %cst_74 [1] : vector<8x64xf32> to vector<8xf32>
    %349 = vector.shape_cast %348 : vector<8xf32> to vector<8x1xf32>
    %350 = vector.broadcast %349 : vector<8x1xf32> to vector<8x64xf32>
    %351 = arith.subf %347, %350 : vector<8x64xf32>
    %352 = math.exp %351 : vector<8x64xf32>
    %cst_75 = arith.constant dense<0.000000e+00> : vector<8xf32>
    %353 = vector.multi_reduction <add>, %352, %cst_75 [1] : vector<8x64xf32> to vector<8xf32>
    %354 = vector.shape_cast %353 : vector<8xf32> to vector<8x1xf32>
    %355 = tpu.reciprocal %354 {approx = true} : vector<8x1xf32> -> vector<8x1xf32>
    %356 = vector.broadcast %355 : vector<8x1xf32> to vector<8x64xf32>
    %357 = arith.mulf %352, %356 : vector<8x64xf32>
    %cst_76 = arith.constant dense<0.000000e+00> : vector<8x64xf32>
    %358 = tpu.matmul %357, %274, %cst_76 {dimension_numbers = #tpu.dot_dimension_numbers<[1], [0], [0], [1], [0, 0, 1, 1], [], []>} : vector<8x64xf32>, vector<64x64xf32>, vector<8x64xf32> -> vector<8x64xf32>
    %359 = tpu.concatenate %358, %345 in 1 : vector<8x64xf32>, vector<8x32xf32> -> vector<8x96xf32>
    %cst_77 = arith.constant dense<0.000000e+00> : vector<8x32xf32>
    %360 = tpu.matmul %359, %289, %cst_77 {dimension_numbers = #tpu.dot_dimension_numbers<[1], [0], [0], [1], [0, 0, 1, 1], [], []>} : vector<8x96xf32>, vector<96x32xf32>, vector<8x32xf32> -> vector<8x32xf32>
    %361 = math.tanh %360 : vector<8x32xf32>
    %362 = tpu.concatenate %361, %345 in 1 : vector<8x32xf32>, vector<8x32xf32> -> vector<8x64xf32>
    %363 = vector.extract_strided_slice %286 {offsets = [16, 0], sizes = [8, 128], strides = [1, 1]} : vector<56x128xf32> to vector<8x128xf32>
    %cst_78 = arith.constant dense<0.000000e+00> : vector<8x128xf32>
    %364 = tpu.matmul %362, %288, %cst_78 {dimension_numbers = #tpu.dot_dimension_numbers<[1], [0], [0], [1], [0, 0, 1, 1], [], []>} : vector<8x64xf32>, vector<64x128xf32>, vector<8x128xf32> -> vector<8x128xf32>
    %365 = arith.addf %363, %364 : vector<8x128xf32>
    %366 = vector.extract_strided_slice %365 {offsets = [0, 0], sizes = [8, 96], strides = [1, 1]} : vector<8x128xf32> to vector<8x96xf32>
    %367 = arith.negf %366 : vector<8x96xf32>
    %368 = math.exp %367 : vector<8x96xf32>
    %cst_79 = arith.constant 1.000000e+00 : f32
    %369 = vector.broadcast %cst_79 : f32 to vector<8x96xf32>
    %370 = arith.addf %369, %368 : vector<8x96xf32>
    %371 = arith.divf %369, %370 : vector<8x96xf32>
    %372 = vector.extract_strided_slice %371 {offsets = [0, 0], sizes = [8, 32], strides = [1, 1]} : vector<8x96xf32> to vector<8x32xf32>
    %373 = vector.extract_strided_slice %371 {offsets = [0, 32], sizes = [8, 32], strides = [1, 1]} : vector<8x96xf32> to vector<8x32xf32>
    %374 = vector.extract_strided_slice %371 {offsets = [0, 64], sizes = [8, 32], strides = [1, 1]} : vector<8x96xf32> to vector<8x32xf32>
    %375 = vector.extract_strided_slice %365 {offsets = [0, 96], sizes = [8, 32], strides = [1, 1]} : vector<8x128xf32> to vector<8x32xf32>
    %376 = math.tanh %375 : vector<8x32xf32>
    %377 = arith.mulf %373, %343 : vector<8x32xf32>
    %378 = arith.mulf %372, %376 : vector<8x32xf32>
    %379 = arith.addf %377, %378 : vector<8x32xf32>
    %380 = math.tanh %379 : vector<8x32xf32>
    %381 = arith.mulf %374, %380 : vector<8x32xf32>
    %cst_80 = arith.constant dense<0.000000e+00> : vector<8x64xf32>
    %382 = tpu.matmul %381, %280, %cst_80 {dimension_numbers = #tpu.dot_dimension_numbers<[1], [0], [0], [1], [0, 0, 1, 1], [], []>} : vector<8x32xf32>, vector<32x64xf32>, vector<8x64xf32> -> vector<8x64xf32>
    %383 = arith.addf %382, %287 : vector<8x64xf32>
    %cst_81 = arith.constant dense<0xFF800000> : vector<8xf32>
    %384 = vector.multi_reduction <maximumf>, %383, %cst_81 [1] : vector<8x64xf32> to vector<8xf32>
    %385 = vector.shape_cast %384 : vector<8xf32> to vector<8x1xf32>
    %386 = vector.broadcast %385 : vector<8x1xf32> to vector<8x64xf32>
    %387 = arith.subf %383, %386 : vector<8x64xf32>
    %388 = math.exp %387 : vector<8x64xf32>
    %cst_82 = arith.constant dense<0.000000e+00> : vector<8xf32>
    %389 = vector.multi_reduction <add>, %388, %cst_82 [1] : vector<8x64xf32> to vector<8xf32>
    %390 = vector.shape_cast %389 : vector<8xf32> to vector<8x1xf32>
    %391 = tpu.reciprocal %390 {approx = true} : vector<8x1xf32> -> vector<8x1xf32>
    %392 = vector.broadcast %391 : vector<8x1xf32> to vector<8x64xf32>
    %393 = arith.mulf %388, %392 : vector<8x64xf32>
    %cst_83 = arith.constant dense<0.000000e+00> : vector<8x64xf32>
    %394 = tpu.matmul %393, %274, %cst_83 {dimension_numbers = #tpu.dot_dimension_numbers<[1], [0], [0], [1], [0, 0, 1, 1], [], []>} : vector<8x64xf32>, vector<64x64xf32>, vector<8x64xf32> -> vector<8x64xf32>
    %395 = tpu.concatenate %394, %381 in 1 : vector<8x64xf32>, vector<8x32xf32> -> vector<8x96xf32>
    %cst_84 = arith.constant dense<0.000000e+00> : vector<8x32xf32>
    %396 = tpu.matmul %395, %289, %cst_84 {dimension_numbers = #tpu.dot_dimension_numbers<[1], [0], [0], [1], [0, 0, 1, 1], [], []>} : vector<8x96xf32>, vector<96x32xf32>, vector<8x32xf32> -> vector<8x32xf32>
    %397 = math.tanh %396 : vector<8x32xf32>
    %398 = tpu.concatenate %397, %381 in 1 : vector<8x32xf32>, vector<8x32xf32> -> vector<8x64xf32>
    %399 = vector.extract_strided_slice %286 {offsets = [24, 0], sizes = [8, 128], strides = [1, 1]} : vector<56x128xf32> to vector<8x128xf32>
    %cst_85 = arith.constant dense<0.000000e+00> : vector<8x128xf32>
    %400 = tpu.matmul %398, %288, %cst_85 {dimension_numbers = #tpu.dot_dimension_numbers<[1], [0], [0], [1], [0, 0, 1, 1], [], []>} : vector<8x64xf32>, vector<64x128xf32>, vector<8x128xf32> -> vector<8x128xf32>
    %401 = arith.addf %399, %400 : vector<8x128xf32>
    %402 = vector.extract_strided_slice %401 {offsets = [0, 0], sizes = [8, 96], strides = [1, 1]} : vector<8x128xf32> to vector<8x96xf32>
    %403 = arith.negf %402 : vector<8x96xf32>
    %404 = math.exp %403 : vector<8x96xf32>
    %cst_86 = arith.constant 1.000000e+00 : f32
    %405 = vector.broadcast %cst_86 : f32 to vector<8x96xf32>
    %406 = arith.addf %405, %404 : vector<8x96xf32>
    %407 = arith.divf %405, %406 : vector<8x96xf32>
    %408 = vector.extract_strided_slice %407 {offsets = [0, 0], sizes = [8, 32], strides = [1, 1]} : vector<8x96xf32> to vector<8x32xf32>
    %409 = vector.extract_strided_slice %407 {offsets = [0, 32], sizes = [8, 32], strides = [1, 1]} : vector<8x96xf32> to vector<8x32xf32>
    %410 = vector.extract_strided_slice %407 {offsets = [0, 64], sizes = [8, 32], strides = [1, 1]} : vector<8x96xf32> to vector<8x32xf32>
    %411 = vector.extract_strided_slice %401 {offsets = [0, 96], sizes = [8, 32], strides = [1, 1]} : vector<8x128xf32> to vector<8x32xf32>
    %412 = math.tanh %411 : vector<8x32xf32>
    %413 = arith.mulf %409, %379 : vector<8x32xf32>
    %414 = arith.mulf %408, %412 : vector<8x32xf32>
    %415 = arith.addf %413, %414 : vector<8x32xf32>
    %416 = math.tanh %415 : vector<8x32xf32>
    %417 = arith.mulf %410, %416 : vector<8x32xf32>
    %cst_87 = arith.constant dense<0.000000e+00> : vector<8x64xf32>
    %418 = tpu.matmul %417, %280, %cst_87 {dimension_numbers = #tpu.dot_dimension_numbers<[1], [0], [0], [1], [0, 0, 1, 1], [], []>} : vector<8x32xf32>, vector<32x64xf32>, vector<8x64xf32> -> vector<8x64xf32>
    %419 = arith.addf %418, %287 : vector<8x64xf32>
    %cst_88 = arith.constant dense<0xFF800000> : vector<8xf32>
    %420 = vector.multi_reduction <maximumf>, %419, %cst_88 [1] : vector<8x64xf32> to vector<8xf32>
    %421 = vector.shape_cast %420 : vector<8xf32> to vector<8x1xf32>
    %422 = vector.broadcast %421 : vector<8x1xf32> to vector<8x64xf32>
    %423 = arith.subf %419, %422 : vector<8x64xf32>
    %424 = math.exp %423 : vector<8x64xf32>
    %cst_89 = arith.constant dense<0.000000e+00> : vector<8xf32>
    %425 = vector.multi_reduction <add>, %424, %cst_89 [1] : vector<8x64xf32> to vector<8xf32>
    %426 = vector.shape_cast %425 : vector<8xf32> to vector<8x1xf32>
    %427 = tpu.reciprocal %426 {approx = true} : vector<8x1xf32> -> vector<8x1xf32>
    %428 = vector.broadcast %427 : vector<8x1xf32> to vector<8x64xf32>
    %429 = arith.mulf %424, %428 : vector<8x64xf32>
    %cst_90 = arith.constant dense<0.000000e+00> : vector<8x64xf32>
    %430 = tpu.matmul %429, %274, %cst_90 {dimension_numbers = #tpu.dot_dimension_numbers<[1], [0], [0], [1], [0, 0, 1, 1], [], []>} : vector<8x64xf32>, vector<64x64xf32>, vector<8x64xf32> -> vector<8x64xf32>
    %431 = tpu.concatenate %430, %417 in 1 : vector<8x64xf32>, vector<8x32xf32> -> vector<8x96xf32>
    %cst_91 = arith.constant dense<0.000000e+00> : vector<8x32xf32>
    %432 = tpu.matmul %431, %289, %cst_91 {dimension_numbers = #tpu.dot_dimension_numbers<[1], [0], [0], [1], [0, 0, 1, 1], [], []>} : vector<8x96xf32>, vector<96x32xf32>, vector<8x32xf32> -> vector<8x32xf32>
    %433 = math.tanh %432 : vector<8x32xf32>
    %434 = tpu.concatenate %433, %417 in 1 : vector<8x32xf32>, vector<8x32xf32> -> vector<8x64xf32>
    %435 = vector.extract_strided_slice %286 {offsets = [32, 0], sizes = [8, 128], strides = [1, 1]} : vector<56x128xf32> to vector<8x128xf32>
    %cst_92 = arith.constant dense<0.000000e+00> : vector<8x128xf32>
    %436 = tpu.matmul %434, %288, %cst_92 {dimension_numbers = #tpu.dot_dimension_numbers<[1], [0], [0], [1], [0, 0, 1, 1], [], []>} : vector<8x64xf32>, vector<64x128xf32>, vector<8x128xf32> -> vector<8x128xf32>
    %437 = arith.addf %435, %436 : vector<8x128xf32>
    %438 = vector.extract_strided_slice %437 {offsets = [0, 0], sizes = [8, 96], strides = [1, 1]} : vector<8x128xf32> to vector<8x96xf32>
    %439 = arith.negf %438 : vector<8x96xf32>
    %440 = math.exp %439 : vector<8x96xf32>
    %cst_93 = arith.constant 1.000000e+00 : f32
    %441 = vector.broadcast %cst_93 : f32 to vector<8x96xf32>
    %442 = arith.addf %441, %440 : vector<8x96xf32>
    %443 = arith.divf %441, %442 : vector<8x96xf32>
    %444 = vector.extract_strided_slice %443 {offsets = [0, 0], sizes = [8, 32], strides = [1, 1]} : vector<8x96xf32> to vector<8x32xf32>
    %445 = vector.extract_strided_slice %443 {offsets = [0, 32], sizes = [8, 32], strides = [1, 1]} : vector<8x96xf32> to vector<8x32xf32>
    %446 = vector.extract_strided_slice %443 {offsets = [0, 64], sizes = [8, 32], strides = [1, 1]} : vector<8x96xf32> to vector<8x32xf32>
    %447 = vector.extract_strided_slice %437 {offsets = [0, 96], sizes = [8, 32], strides = [1, 1]} : vector<8x128xf32> to vector<8x32xf32>
    %448 = math.tanh %447 : vector<8x32xf32>
    %449 = arith.mulf %445, %415 : vector<8x32xf32>
    %450 = arith.mulf %444, %448 : vector<8x32xf32>
    %451 = arith.addf %449, %450 : vector<8x32xf32>
    %452 = math.tanh %451 : vector<8x32xf32>
    %453 = arith.mulf %446, %452 : vector<8x32xf32>
    %cst_94 = arith.constant dense<0.000000e+00> : vector<8x64xf32>
    %454 = tpu.matmul %453, %280, %cst_94 {dimension_numbers = #tpu.dot_dimension_numbers<[1], [0], [0], [1], [0, 0, 1, 1], [], []>} : vector<8x32xf32>, vector<32x64xf32>, vector<8x64xf32> -> vector<8x64xf32>
    %455 = arith.addf %454, %287 : vector<8x64xf32>
    %cst_95 = arith.constant dense<0xFF800000> : vector<8xf32>
    %456 = vector.multi_reduction <maximumf>, %455, %cst_95 [1] : vector<8x64xf32> to vector<8xf32>
    %457 = vector.shape_cast %456 : vector<8xf32> to vector<8x1xf32>
    %458 = vector.broadcast %457 : vector<8x1xf32> to vector<8x64xf32>
    %459 = arith.subf %455, %458 : vector<8x64xf32>
    %460 = math.exp %459 : vector<8x64xf32>
    %cst_96 = arith.constant dense<0.000000e+00> : vector<8xf32>
    %461 = vector.multi_reduction <add>, %460, %cst_96 [1] : vector<8x64xf32> to vector<8xf32>
    %462 = vector.shape_cast %461 : vector<8xf32> to vector<8x1xf32>
    %463 = tpu.reciprocal %462 {approx = true} : vector<8x1xf32> -> vector<8x1xf32>
    %464 = vector.broadcast %463 : vector<8x1xf32> to vector<8x64xf32>
    %465 = arith.mulf %460, %464 : vector<8x64xf32>
    %cst_97 = arith.constant dense<0.000000e+00> : vector<8x64xf32>
    %466 = tpu.matmul %465, %274, %cst_97 {dimension_numbers = #tpu.dot_dimension_numbers<[1], [0], [0], [1], [0, 0, 1, 1], [], []>} : vector<8x64xf32>, vector<64x64xf32>, vector<8x64xf32> -> vector<8x64xf32>
    %467 = tpu.concatenate %466, %453 in 1 : vector<8x64xf32>, vector<8x32xf32> -> vector<8x96xf32>
    %cst_98 = arith.constant dense<0.000000e+00> : vector<8x32xf32>
    %468 = tpu.matmul %467, %289, %cst_98 {dimension_numbers = #tpu.dot_dimension_numbers<[1], [0], [0], [1], [0, 0, 1, 1], [], []>} : vector<8x96xf32>, vector<96x32xf32>, vector<8x32xf32> -> vector<8x32xf32>
    %469 = math.tanh %468 : vector<8x32xf32>
    %470 = tpu.concatenate %469, %453 in 1 : vector<8x32xf32>, vector<8x32xf32> -> vector<8x64xf32>
    %471 = vector.extract_strided_slice %286 {offsets = [40, 0], sizes = [8, 128], strides = [1, 1]} : vector<56x128xf32> to vector<8x128xf32>
    %cst_99 = arith.constant dense<0.000000e+00> : vector<8x128xf32>
    %472 = tpu.matmul %470, %288, %cst_99 {dimension_numbers = #tpu.dot_dimension_numbers<[1], [0], [0], [1], [0, 0, 1, 1], [], []>} : vector<8x64xf32>, vector<64x128xf32>, vector<8x128xf32> -> vector<8x128xf32>
    %473 = arith.addf %471, %472 : vector<8x128xf32>
    %474 = vector.extract_strided_slice %473 {offsets = [0, 0], sizes = [8, 96], strides = [1, 1]} : vector<8x128xf32> to vector<8x96xf32>
    %475 = arith.negf %474 : vector<8x96xf32>
    %476 = math.exp %475 : vector<8x96xf32>
    %cst_100 = arith.constant 1.000000e+00 : f32
    %477 = vector.broadcast %cst_100 : f32 to vector<8x96xf32>
    %478 = arith.addf %477, %476 : vector<8x96xf32>
    %479 = arith.divf %477, %478 : vector<8x96xf32>
    %480 = vector.extract_strided_slice %479 {offsets = [0, 0], sizes = [8, 32], strides = [1, 1]} : vector<8x96xf32> to vector<8x32xf32>
    %481 = vector.extract_strided_slice %479 {offsets = [0, 32], sizes = [8, 32], strides = [1, 1]} : vector<8x96xf32> to vector<8x32xf32>
    %482 = vector.extract_strided_slice %479 {offsets = [0, 64], sizes = [8, 32], strides = [1, 1]} : vector<8x96xf32> to vector<8x32xf32>
    %483 = vector.extract_strided_slice %473 {offsets = [0, 96], sizes = [8, 32], strides = [1, 1]} : vector<8x128xf32> to vector<8x32xf32>
    %484 = math.tanh %483 : vector<8x32xf32>
    %485 = arith.mulf %481, %451 : vector<8x32xf32>
    %486 = arith.mulf %480, %484 : vector<8x32xf32>
    %487 = arith.addf %485, %486 : vector<8x32xf32>
    %488 = math.tanh %487 : vector<8x32xf32>
    %489 = arith.mulf %482, %488 : vector<8x32xf32>
    %cst_101 = arith.constant dense<0.000000e+00> : vector<8x64xf32>
    %490 = tpu.matmul %489, %280, %cst_101 {dimension_numbers = #tpu.dot_dimension_numbers<[1], [0], [0], [1], [0, 0, 1, 1], [], []>} : vector<8x32xf32>, vector<32x64xf32>, vector<8x64xf32> -> vector<8x64xf32>
    %491 = arith.addf %490, %287 : vector<8x64xf32>
    %cst_102 = arith.constant dense<0xFF800000> : vector<8xf32>
    %492 = vector.multi_reduction <maximumf>, %491, %cst_102 [1] : vector<8x64xf32> to vector<8xf32>
    %493 = vector.shape_cast %492 : vector<8xf32> to vector<8x1xf32>
    %494 = vector.broadcast %493 : vector<8x1xf32> to vector<8x64xf32>
    %495 = arith.subf %491, %494 : vector<8x64xf32>
    %496 = math.exp %495 : vector<8x64xf32>
    %cst_103 = arith.constant dense<0.000000e+00> : vector<8xf32>
    %497 = vector.multi_reduction <add>, %496, %cst_103 [1] : vector<8x64xf32> to vector<8xf32>
    %498 = vector.shape_cast %497 : vector<8xf32> to vector<8x1xf32>
    %499 = tpu.reciprocal %498 {approx = true} : vector<8x1xf32> -> vector<8x1xf32>
    %500 = vector.broadcast %499 : vector<8x1xf32> to vector<8x64xf32>
    %501 = arith.mulf %496, %500 : vector<8x64xf32>
    %cst_104 = arith.constant dense<0.000000e+00> : vector<8x64xf32>
    %502 = tpu.matmul %501, %274, %cst_104 {dimension_numbers = #tpu.dot_dimension_numbers<[1], [0], [0], [1], [0, 0, 1, 1], [], []>} : vector<8x64xf32>, vector<64x64xf32>, vector<8x64xf32> -> vector<8x64xf32>
    %503 = tpu.concatenate %502, %489 in 1 : vector<8x64xf32>, vector<8x32xf32> -> vector<8x96xf32>
    %cst_105 = arith.constant dense<0.000000e+00> : vector<8x32xf32>
    %504 = tpu.matmul %503, %289, %cst_105 {dimension_numbers = #tpu.dot_dimension_numbers<[1], [0], [0], [1], [0, 0, 1, 1], [], []>} : vector<8x96xf32>, vector<96x32xf32>, vector<8x32xf32> -> vector<8x32xf32>
    %505 = math.tanh %504 : vector<8x32xf32>
    %506 = tpu.concatenate %505, %489 in 1 : vector<8x32xf32>, vector<8x32xf32> -> vector<8x64xf32>
    %507 = vector.extract_strided_slice %286 {offsets = [48, 0], sizes = [8, 128], strides = [1, 1]} : vector<56x128xf32> to vector<8x128xf32>
    %cst_106 = arith.constant dense<0.000000e+00> : vector<8x128xf32>
    %508 = tpu.matmul %506, %288, %cst_106 {dimension_numbers = #tpu.dot_dimension_numbers<[1], [0], [0], [1], [0, 0, 1, 1], [], []>} : vector<8x64xf32>, vector<64x128xf32>, vector<8x128xf32> -> vector<8x128xf32>
    %509 = arith.addf %507, %508 : vector<8x128xf32>
    %510 = vector.extract_strided_slice %509 {offsets = [0, 0], sizes = [8, 96], strides = [1, 1]} : vector<8x128xf32> to vector<8x96xf32>
    %511 = arith.negf %510 : vector<8x96xf32>
    %512 = math.exp %511 : vector<8x96xf32>
    %cst_107 = arith.constant 1.000000e+00 : f32
    %513 = vector.broadcast %cst_107 : f32 to vector<8x96xf32>
    %514 = arith.addf %513, %512 : vector<8x96xf32>
    %515 = arith.divf %513, %514 : vector<8x96xf32>
    %516 = vector.extract_strided_slice %515 {offsets = [0, 0], sizes = [8, 32], strides = [1, 1]} : vector<8x96xf32> to vector<8x32xf32>
    %517 = vector.extract_strided_slice %515 {offsets = [0, 32], sizes = [8, 32], strides = [1, 1]} : vector<8x96xf32> to vector<8x32xf32>
    %518 = vector.extract_strided_slice %515 {offsets = [0, 64], sizes = [8, 32], strides = [1, 1]} : vector<8x96xf32> to vector<8x32xf32>
    %519 = vector.extract_strided_slice %509 {offsets = [0, 96], sizes = [8, 32], strides = [1, 1]} : vector<8x128xf32> to vector<8x32xf32>
    %520 = math.tanh %519 : vector<8x32xf32>
    %521 = arith.mulf %517, %487 : vector<8x32xf32>
    %522 = arith.mulf %516, %520 : vector<8x32xf32>
    %523 = arith.addf %521, %522 : vector<8x32xf32>
    %524 = math.tanh %523 : vector<8x32xf32>
    %525 = arith.mulf %518, %524 : vector<8x32xf32>
    %cst_108 = arith.constant dense<0.000000e+00> : vector<8x64xf32>
    %526 = tpu.matmul %525, %280, %cst_108 {dimension_numbers = #tpu.dot_dimension_numbers<[1], [0], [0], [1], [0, 0, 1, 1], [], []>} : vector<8x32xf32>, vector<32x64xf32>, vector<8x64xf32> -> vector<8x64xf32>
    %527 = arith.addf %526, %287 : vector<8x64xf32>
    %cst_109 = arith.constant dense<0xFF800000> : vector<8xf32>
    %528 = vector.multi_reduction <maximumf>, %527, %cst_109 [1] : vector<8x64xf32> to vector<8xf32>
    %529 = vector.shape_cast %528 : vector<8xf32> to vector<8x1xf32>
    %530 = vector.broadcast %529 : vector<8x1xf32> to vector<8x64xf32>
    %531 = arith.subf %527, %530 : vector<8x64xf32>
    %532 = math.exp %531 : vector<8x64xf32>
    %cst_110 = arith.constant dense<0.000000e+00> : vector<8xf32>
    %533 = vector.multi_reduction <add>, %532, %cst_110 [1] : vector<8x64xf32> to vector<8xf32>
    %534 = vector.shape_cast %533 : vector<8xf32> to vector<8x1xf32>
    %535 = tpu.reciprocal %534 {approx = true} : vector<8x1xf32> -> vector<8x1xf32>
    %536 = vector.broadcast %535 : vector<8x1xf32> to vector<8x64xf32>
    %537 = arith.mulf %532, %536 : vector<8x64xf32>
    %cst_111 = arith.constant dense<0.000000e+00> : vector<8x64xf32>
    %538 = tpu.matmul %537, %274, %cst_111 {dimension_numbers = #tpu.dot_dimension_numbers<[1], [0], [0], [1], [0, 0, 1, 1], [], []>} : vector<8x64xf32>, vector<64x64xf32>, vector<8x64xf32> -> vector<8x64xf32>
    %539 = tpu.concatenate %538, %525 in 1 : vector<8x64xf32>, vector<8x32xf32> -> vector<8x96xf32>
    %cst_112 = arith.constant dense<0.000000e+00> : vector<8x32xf32>
    %540 = tpu.matmul %539, %289, %cst_112 {dimension_numbers = #tpu.dot_dimension_numbers<[1], [0], [0], [1], [0, 0, 1, 1], [], []>} : vector<8x96xf32>, vector<96x32xf32>, vector<8x32xf32> -> vector<8x32xf32>
    %541 = math.tanh %540 : vector<8x32xf32>
    %542 = tpu.concatenate %325, %361, %397, %433, %469, %505, %541 in 0 : vector<8x32xf32>, vector<8x32xf32>, vector<8x32xf32>, vector<8x32xf32>, vector<8x32xf32>, vector<8x32xf32>, vector<8x32xf32> -> vector<56x32xf32>
    %c0_113 = arith.constant 0 : index
    %c0_114 = arith.constant 0 : index
    %543 = vector.load %arg16[%c0_113, %c0_114] : memref<32x128xf32, #tpu.memory_space<vmem>>, vector<32x128xf32>
    %cst_115 = arith.constant dense<0.000000e+00> : vector<56x128xf32>
    %544 = tpu.matmul %542, %543, %cst_115 {dimension_numbers = #tpu.dot_dimension_numbers<[1], [0], [0], [1], [0, 0, 1, 1], [], []>} : vector<56x32xf32>, vector<32x128xf32>, vector<56x128xf32> -> vector<56x128xf32>
    %c0_116 = arith.constant 0 : index
    %c0_117 = arith.constant 0 : index
    %545 = vector.load %arg17[%c0_116, %c0_117] : memref<1x128xf32, #tpu.memory_space<vmem>>, vector<1x128xf32>
    %546 = vector.broadcast %545 : vector<1x128xf32> to vector<56x128xf32>
    %547 = arith.addf %544, %546 : vector<56x128xf32>
    %cst_118 = arith.constant dense<0xFF800000> : vector<56xf32>
    %548 = vector.multi_reduction <maximumf>, %547, %cst_118 [1] : vector<56x128xf32> to vector<56xf32>
    %549 = vector.shape_cast %548 : vector<56xf32> to vector<56x1xf32>
    %550 = vector.broadcast %549 : vector<56x1xf32> to vector<56x128xf32>
    %551 = arith.subf %547, %550 : vector<56x128xf32>
    %552 = math.exp %551 : vector<56x128xf32>
    %cst_119 = arith.constant dense<0.000000e+00> : vector<56xf32>
    %553 = vector.multi_reduction <add>, %552, %cst_119 [1] : vector<56x128xf32> to vector<56xf32>
    %554 = vector.shape_cast %553 : vector<56xf32> to vector<56x1xf32>
    %555 = math.log %554 : vector<56x1xf32>
    %556 = arith.addf %555, %549 : vector<56x1xf32>
    %557 = vector.broadcast %556 : vector<56x1xf32> to vector<56x128xf32>
    %558 = arith.subf %547, %557 : vector<56x128xf32>
    %c0_120 = arith.constant 0 : index
    %c0_121 = arith.constant 0 : index
    %559 = vector.load %arg5[%c0_120, %c0_121] : memref<8x56xf32, #tpu.memory_space<vmem>>, vector<8x56xf32>
    %c0_122 = arith.constant 0 : index
    %c0_123 = arith.constant 0 : index
    %560 = vector.load %arg6[%c0_122, %c0_123] : memref<56x128xf32, #tpu.memory_space<vmem>>, vector<56x128xf32>
    %561 = arith.mulf %558, %560 : vector<56x128xf32>
    %cst_124 = arith.constant dense<0.000000e+00> : vector<8x128xf32>
    %562 = tpu.matmul %559, %561, %cst_124 {dimension_numbers = #tpu.dot_dimension_numbers<[1], [0], [0], [1], [0, 0, 1, 1], [], []>} : vector<8x56xf32>, vector<56x128xf32>, vector<8x128xf32> -> vector<8x128xf32>
    %c0_125 = arith.constant 0 : index
    %c0_126 = arith.constant 0 : index
    %563 = vector.load %arg18[%c0_125, %c0_126] : memref<8x128xf32, #tpu.memory_space<vmem>>, vector<8x128xf32>
    tpu.vector_store %arg18[%c0_125, %c0_126], %562 {strides = array<i32>} : memref<8x128xf32, #tpu.memory_space<vmem>>, vector<8x128xf32>,
    return
  }
  func.func @transform_0(%arg0: i32) -> (i32, i32) {
    %c0_i32 = arith.constant 0 : i32
    %c0_i32_0 = arith.constant 0 : i32
    %c0_i32_1 = arith.constant 0 : i32
    return %c0_i32, %c0_i32_0 : i32, i32
  }
  func.func @transform_1(%arg0: i32) -> (i32, i32) {
    %c0_i32 = arith.constant 0 : i32
    %c0_i32_0 = arith.constant 0 : i32
    %c0_i32_1 = arith.constant 0 : i32
    return %c0_i32, %c0_i32_0 : i32, i32
  }
  func.func @transform_2(%arg0: i32) -> (i32, i32) {
    %c0_i32 = arith.constant 0 : i32
    %c0_i32_0 = arith.constant 0 : i32
    %c0_i32_1 = arith.constant 0 : i32
    return %c0_i32, %c0_i32_0 : i32, i32
  }
  func.func @transform_3(%arg0: i32) -> (i32, i32) {
    %c0_i32 = arith.constant 0 : i32
    %c0_i32_0 = arith.constant 0 : i32
    %c0_i32_1 = arith.constant 0 : i32
    return %c0_i32, %c0_i32_0 : i32, i32
  }
  func.func @transform_4(%arg0: i32) -> (i32, i32) {
    %c0_i32 = arith.constant 0 : i32
    %c0_i32_0 = arith.constant 0 : i32
    %c0_i32_1 = arith.constant 0 : i32
    return %c0_i32, %c0_i32_0 : i32, i32
  }
  func.func @transform_5(%arg0: i32) -> (i32, i32) {
    %c0_i32 = arith.constant 0 : i32
    %c0_i32_0 = arith.constant 0 : i32
    %c0_i32_1 = arith.constant 0 : i32
    return %c0_i32, %c0_i32_0 : i32, i32
  }
  func.func @transform_6(%arg0: i32) -> (i32, i32) {
    %c0_i32 = arith.constant 0 : i32
    %c0_i32_0 = arith.constant 0 : i32
    %c0_i32_1 = arith.constant 0 : i32
    return %c0_i32, %c0_i32_0 : i32, i32
  }
  func.func @transform_7(%arg0: i32) -> (i32, i32) {
    %c0_i32 = arith.constant 0 : i32
    %c0_i32_0 = arith.constant 0 : i32
    %c0_i32_1 = arith.constant 0 : i32
    return %c0_i32, %c0_i32_0 : i32, i32
  }
  func.func @transform_8(%arg0: i32) -> (i32, i32) {
    %c0_i32 = arith.constant 0 : i32
    %c0_i32_0 = arith.constant 0 : i32
    %c0_i32_1 = arith.constant 0 : i32
    return %c0_i32, %c0_i32_0 : i32, i32
  }
  func.func @transform_9(%arg0: i32) -> (i32, i32) {
    %c0_i32 = arith.constant 0 : i32
    %c0_i32_0 = arith.constant 0 : i32
    %c0_i32_1 = arith.constant 0 : i32
    return %c0_i32, %c0_i32_0 : i32, i32
  }
  func.func @transform_10(%arg0: i32) -> (i32, i32) {
    %c0_i32 = arith.constant 0 : i32
    %c0_i32_0 = arith.constant 0 : i32
    %c0_i32_1 = arith.constant 0 : i32
    return %c0_i32, %c0_i32_0 : i32, i32
  }
  func.func @transform_11(%arg0: i32) -> (i32, i32) {
    %c0_i32 = arith.constant 0 : i32
    %c0_i32_0 = arith.constant 0 : i32
    %c0_i32_1 = arith.constant 0 : i32
    return %c0_i32, %c0_i32_0 : i32, i32
  }
  func.func @transform_12(%arg0: i32) -> (i32, i32) {
    %c0_i32 = arith.constant 0 : i32
    %c0_i32_0 = arith.constant 0 : i32
    %c0_i32_1 = arith.constant 0 : i32
    return %c0_i32, %c0_i32_0 : i32, i32
  }
  func.func @transform_13(%arg0: i32) -> (i32, i32) {
    %c0_i32 = arith.constant 0 : i32
    %c0_i32_0 = arith.constant 0 : i32
    %c0_i32_1 = arith.constant 0 : i32
    return %c0_i32, %c0_i32_0 : i32, i32
  }
  func.func @transform_14(%arg0: i32) -> (i32, i32) {
    %c0_i32 = arith.constant 0 : i32
    %c0_i32_0 = arith.constant 0 : i32
    %c0_i32_1 = arith.constant 0 : i32
    return %c0_i32, %c0_i32_0 : i32, i32
  }
  func.func @transform_15(%arg0: i32) -> (i32, i32) {
    %c0_i32 = arith.constant 0 : i32
    %c0_i32_0 = arith.constant 0 : i32
    %c0_i32_1 = arith.constant 0 : i32
    return %c0_i32, %c0_i32_0 : i32, i32
  }
  func.func @transform_16(%arg0: i32) -> (i32, i32) {
    %c0_i32 = arith.constant 0 : i32
    %c0_i32_0 = arith.constant 0 : i32
    %c0_i32_1 = arith.constant 0 : i32
    return %c0_i32, %c0_i32_0 : i32, i32
  }
  func.func @transform_17(%arg0: i32) -> (i32, i32) {
    %c0_i32 = arith.constant 0 : i32
    %c0_i32_0 = arith.constant 0 : i32
    %c0_i32_1 = arith.constant 0 : i32
    return %c0_i32, %c0_i32_0 : i32, i32
  }
}

</mosaic_0001>

<llo_original>
// kernel: eq.4
$region0: #{eq.4}
  %s0 = inlined_call_operand.vmem [shape: s32[7,8], index: 0, kind: input, shape index: {}]
  %s1 = inlined_call_operand.vmem [shape: s32[56], index: 1, kind: output, shape index: {}]
  $region1: #{eq.4} parent=0
    #allocation0 [shape = 'u8[4096]{0}', space=vmem, size = 0x1000, scoped, tag = 'scoped mem for output reshape']
    %v2 = vld [vmem:[%s0] sm:$0x1]
    %vm3 = vcmask 64512
    %4 = vst.msk [vmem:[#allocation0] sm:$0x1] %vm3, %v2
    %s5 = scalar_lea.vmem %s0, 6
    %v6 = vld [vmem:[%s5] sm:$0x1]
    %7 = vrot.lane.b32.xlu0 %v6, 48
    %v8 = vpop.permute.xlu0 %7
    %vm9 = vcmask 458112
    %10 = vst.msk [vmem:[#allocation0] sm:$0x1] %vm9, %v8
    %s11 = scalar_lea.vmem %s0, 5
    %v12 = vld [vmem:[%s11] sm:$0x1]
    %13 = vrot.lane.b32.xlu0 %v12, 40
    %v14 = vpop.permute.xlu0 %13
    %vm15 = vcmask 392512
    %16 = vst.msk [vmem:[#allocation0] sm:$0x1] %vm15, %v14
    %s17 = scalar_lea.vmem %s0, 4
    %v18 = vld [vmem:[%s17] sm:$0x1]
    %19 = vrot.lane.b32.xlu0 %v18, 32
    %v20 = vpop.permute.xlu0 %19
    %vm21 = vcmask 326912
    %22 = vst.msk [vmem:[#allocation0] sm:$0x1] %vm21, %v20
    %s23 = scalar_lea.vmem %s0, 3
    %v24 = vld [vmem:[%s23] sm:$0x1]
    %25 = vrot.lane.b32.xlu0 %v24, 24
    %v26 = vpop.permute.xlu0 %25
    %vm27 = vcmask 261312
    %28 = vst.msk [vmem:[#allocation0] sm:$0x1] %vm27, %v26
    %s29 = scalar_lea.vmem %s0, 2
    %v30 = vld [vmem:[%s29] sm:$0x1]
    %31 = vrot.lane.b32.xlu0 %v30, 16
    %v32 = vpop.permute.xlu0 %31
    %vm33 = vcmask 195712
    %34 = vst.msk [vmem:[#allocation0] sm:$0x1] %vm33, %v32
    %s35 = scalar_lea.vmem %s0, 1
    %v36 = vld [vmem:[%s35] sm:$0x1]
    %37 = vrot.lane.b32.xlu0 %v36, 8
    %v38 = vpop.permute.xlu0 %37
    %vm39 = vcmask 130112
    %40 = vst.msk [vmem:[#allocation0] sm:$0x1] %vm39, %v38
    %s42 = sshll.u32 1, 1
    %s43 = ssub.s32 %s42, 1
    %v45 = vld [vmem:[#allocation0] sm:%s43]
    %s46 = sshll.u32 1, 1
    %s47 = ssub.s32 %s46, 1
    %48 = vst [vmem:[%s1] sm:%s47] %v45

// kernel: nmt_forward.1
$region0: #{nmt_forward.1}
  #allocation0 [shape = 'u32[]', space=smem, size = 0x4, offset = 0x4, fixed_abs, tag = 'smem constant byte address 0x4 - core index']
  #allocation1 [shape = 'u32[144,128]{1,0:T(1,128)}', space=vmem, size = 0x12000, scoped, tag = 'internal scratch']
  %s0 = inlined_call_operand.vmem [shape: f32[64,64], index: 0, kind: input, shape index: {}]
  %s1 = inlined_call_operand.vmem [shape: f32[64,64], index: 1, kind: input, shape index: {}]
  %s2 = inlined_call_operand.vmem [shape: f32[8,64], index: 2, kind: input, shape index: {}]
  %s3 = inlined_call_operand.vmem [shape: f32[56,32], index: 3, kind: input, shape index: {}]
  %s4 = inlined_call_operand.vmem [shape: f32[8,56], index: 4, kind: input, shape index: {}]
  %s5 = inlined_call_operand.vmem [shape: f32[56,128], index: 5, kind: input, shape index: {}]
  %s6 = inlined_call_operand.vmem [shape: f32[64,256], index: 6, kind: input, shape index: {}]
  %s7 = inlined_call_operand.vmem [shape: f32[64,256], index: 7, kind: input, shape index: {}]
  %s8 = inlined_call_operand.vmem [shape: f32[1,256], index: 8, kind: input, shape index: {}]
  %s9 = inlined_call_operand.vmem [shape: f32[64,32], index: 9, kind: input, shape index: {}]
  %s10 = inlined_call_operand.vmem [shape: f32[32,64], index: 10, kind: input, shape index: {}]
  %s11 = inlined_call_operand.vmem [shape: f32[32,128], index: 11, kind: input, shape index: {}]
  %s12 = inlined_call_operand.vmem [shape: f32[64,128], index: 12, kind: input, shape index: {}]
  %s13 = inlined_call_operand.vmem [shape: f32[1,128], index: 13, kind: input, shape index: {}]
  %s14 = inlined_call_operand.vmem [shape: f32[96,32], index: 14, kind: input, shape index: {}]
  %s15 = inlined_call_operand.vmem [shape: f32[32,128], index: 15, kind: input, shape index: {}]
  %s16 = inlined_call_operand.vmem [shape: f32[1,128], index: 16, kind: input, shape index: {}]
  %s17 = inlined_call_operand.vmem [shape: f32[8,128], index: 17, kind: output, shape index: {}]
  %s18 = sld [smem:[#allocation0]]
  $region78: #{nmt_forward.1} parent=0
    _
  %s20 = ssub.s32 1, %s18
  %s21 = scalar_select 0, %s20, %s18
  // Predicated region
  $region2: #{nmt_forward.1} parent=0 // pred_check
    _
  $region3: #{nmt_forward.1} parent=0 // pred_check_branch
    %23 = sbr.rel (0) target = $region5
  $region4: #{nmt_forward.1} parent=0 // pred_region
    _
  $region5: #{nmt_forward.1} parent=0 // pred_fallthru
    _
  // Predicated region
  $region6: #{nmt_forward.1} parent=0 // pred_check
    _
  $region7: #{nmt_forward.1} parent=0 // pred_check_branch
    %25 = sbr.rel (0) target = $region9
  $region8: #{nmt_forward.1} parent=0 // pred_region
    _
  $region9: #{nmt_forward.1} parent=0 // pred_fallthru
    _
  // Predicated region
  $region10: #{nmt_forward.1} parent=0 // pred_check
    _
  $region11: #{nmt_forward.1} parent=0 // pred_check_branch
    %27 = sbr.rel (0) target = $region13
  $region12: #{nmt_forward.1} parent=0 // pred_region
    _
  $region13: #{nmt_forward.1} parent=0 // pred_fallthru
    _
  // Predicated region
  $region14: #{nmt_forward.1} parent=0 // pred_check
    _
  $region15: #{nmt_forward.1} parent=0 // pred_check_branch
    %29 = sbr.rel (0) target = $region17
  $region16: #{nmt_forward.1} parent=0 // pred_region
    _
  $region17: #{nmt_forward.1} parent=0 // pred_fallthru
    _
  // Predicated region
  $region18: #{nmt_forward.1} parent=0 // pred_check
    _
  $region19: #{nmt_forward.1} parent=0 // pred_check_branch
    %31 = sbr.rel (0) target = $region21
  $region20: #{nmt_forward.1} parent=0 // pred_region
    _
  $region21: #{nmt_forward.1} parent=0 // pred_fallthru
    _
  // Predicated region
  $region22: #{nmt_forward.1} parent=0 // pred_check
    _
  $region23: #{nmt_forward.1} parent=0 // pred_check_branch
    %33 = sbr.rel (0) target = $region25
  $region24: #{nmt_forward.1} parent=0 // pred_region
    _
  $region25: #{nmt_forward.1} parent=0 // pred_fallthru
    _
  // Predicated region
  $region26: #{nmt_forward.1} parent=0 // pred_check
    _
  $region27: #{nmt_forward.1} parent=0 // pred_check_branch
    %35 = sbr.rel (0) target = $region29
  $region28: #{nmt_forward.1} parent=0 // pred_region
    _
  $region29: #{nmt_forward.1} parent=0 // pred_fallthru
    _
  // Predicated region
  $region30: #{nmt_forward.1} parent=0 // pred_check
    _
  $region31: #{nmt_forward.1} parent=0 // pred_check_branch
    %37 = sbr.rel (0) target = $region33
  $region32: #{nmt_forward.1} parent=0 // pred_region
    _
  $region33: #{nmt_forward.1} parent=0 // pred_fallthru
    _
  // Predicated region
  $region34: #{nmt_forward.1} parent=0 // pred_check
    _
  $region35: #{nmt_forward.1} parent=0 // pred_check_branch
    %39 = sbr.rel (0) target = $region37
  $region36: #{nmt_forward.1} parent=0 // pred_region
    _
  $region37: #{nmt_forward.1} parent=0 // pred_fallthru
    _
  // Predicated region
  $region38: #{nmt_forward.1} parent=0 // pred_check
    _
  $region39: #{nmt_forward.1} parent=0 // pred_check_branch
    %41 = sbr.rel (0) target = $region41
  $region40: #{nmt_forward.1} parent=0 // pred_region
    _
  $region41: #{nmt_forward.1} parent=0 // pred_fallthru
    _
  // Predicated region
  $region42: #{nmt_forward.1} parent=0 // pred_check
    _
  $region43: #{nmt_forward.1} parent=0 // pred_check_branch
    %43 = sbr.rel (0) target = $region45
  $region44: #{nmt_forward.1} parent=0 // pred_region
    _
  $region45: #{nmt_forward.1} parent=0 // pred_fallthru
    _
  // Predicated region
  $region46: #{nmt_forward.1} parent=0 // pred_check
    _
  $region47: #{nmt_forward.1} parent=0 // pred_check_branch
    %45 = sbr.rel (0) target = $region49
  $region48: #{nmt_forward.1} parent=0 // pred_region
    _
  $region49: #{nmt_forward.1} parent=0 // pred_fallthru
    _
  // Predicated region
  $region50: #{nmt_forward.1} parent=0 // pred_check
    _
  $region51: #{nmt_forward.1} parent=0 // pred_check_branch
    %47 = sbr.rel (0) target = $region53
  $region52: #{nmt_forward.1} parent=0 // pred_region
    _
  $region53: #{nmt_forward.1} parent=0 // pred_fallthru
    _
  // Predicated region
  $region54: #{nmt_forward.1} parent=0 // pred_check
    _
  $region55: #{nmt_forward.1} parent=0 // pred_check_branch
    %49 = sbr.rel (0) target = $region57
  $region56: #{nmt_forward.1} parent=0 // pred_region
    _
  $region57: #{nmt_forward.1} parent=0 // pred_fallthru
    _
  // Predicated region
  $region58: #{nmt_forward.1} parent=0 // pred_check
    _
  $region59: #{nmt_forward.1} parent=0 // pred_check_branch
    %51 = sbr.rel (0) target = $region61
  $region60: #{nmt_forward.1} parent=0 // pred_region
    _
  $region61: #{nmt_forward.1} parent=0 // pred_fallthru
    _
  // Predicated region
  $region62: #{nmt_forward.1} parent=0 // pred_check
    _
  $region63: #{nmt_forward.1} parent=0 // pred_check_branch
    %53 = sbr.rel (0) target = $region65
  $region64: #{nmt_forward.1} parent=0 // pred_region
    _
  $region65: #{nmt_forward.1} parent=0 // pred_fallthru
    _
  // Predicated region
  $region66: #{nmt_forward.1} parent=0 // pred_check
    _
  $region67: #{nmt_forward.1} parent=0 // pred_check_branch
    %55 = sbr.rel (0) target = $region69
  $region68: #{nmt_forward.1} parent=0 // pred_region
    _
  $region69: #{nmt_forward.1} parent=0 // pred_fallthru
    _
  %v56 = vld [vmem:[%s0] sm:$0xff]
  %v57 = vld [vmem:[%s0 + $0x8] sm:$0xff]
  %v58 = vld [vmem:[%s0 + $0x10] sm:$0xff]
  %v59 = vld [vmem:[%s0 + $0x18] sm:$0xff]
  %v60 = vld [vmem:[%s0 + $0x20] sm:$0xff]
  %v61 = vld [vmem:[%s0 + $0x28] sm:$0xff]
  %v62 = vld [vmem:[%s0 + $0x30] sm:$0xff]
  %v63 = vld [vmem:[%s0 + $0x38] sm:$0xff]
  %v64 = vld [vmem:[%s6] sm:$0xff]
  %v65 = vld [vmem:[%s6 + $0x8] sm:$0xff]
  %v66 = vld [vmem:[%s6 + $0x10] sm:$0xff]
  %v67 = vld [vmem:[%s6 + $0x18] sm:$0xff]
  %v68 = vld [vmem:[%s6 + $0x20] sm:$0xff]
  %v69 = vld [vmem:[%s6 + $0x28] sm:$0xff]
  %v70 = vld [vmem:[%s6 + $0x30] sm:$0xff]
  %v71 = vld [vmem:[%s6 + $0x38] sm:$0xff]
  %v72 = vld [vmem:[%s6 + $0x40] sm:$0xff]
  %v73 = vld [vmem:[%s6 + $0x48] sm:$0xff]
  %v74 = vld [vmem:[%s6 + $0x50] sm:$0xff]
  %v75 = vld [vmem:[%s6 + $0x58] sm:$0xff]
  %v76 = vld [vmem:[%s6 + $0x60] sm:$0xff]
  %v77 = vld [vmem:[%s6 + $0x68] sm:$0xff]
  %v78 = vld [vmem:[%s6 + $0x70] sm:$0xff]
  %v79 = vld [vmem:[%s6 + $0x78] sm:$0xff]
  %v80 = vld [vmem:[%s8] sm:$0x3]
  %v82 = vlaneseq
  %v83 = vshrl.u32 %v82, 7
  %v84 = vsub.s32 0, %v83
  %v85 = vrot.slane %v80, %v84
  %v86 = vlaneseq
  %v87 = vshrl.u32 %v86, 7
  %v88 = vsub.s32 1, %v87
  %v89 = vrot.slane %v80, %v88
  %vm92 = vcmask 523264
  %v94 = vsel %vm92, %v56, 0
  %v97 = vsel %vm92, %v57, 0
  %v100 = vsel %vm92, %v58, 0
  %v103 = vsel %vm92, %v59, 0
  %v106 = vsel %vm92, %v60, 0
  %v109 = vsel %vm92, %v61, 0
  %v112 = vsel %vm92, %v62, 0
  %v115 = vsel %vm92, %v63, 0
  %117 = vmatprep.subr.mxu0 0.0
  %118 = vmatpush1.msra.mxu0 0.0
  %119 = vmatprep.subr.mxu0 0.0
  %120 = vmatpush1.msra.mxu0 0.0
  %121 = vmatprep.subr.mxu0 0.0
  %122 = vmatpush1.msra.mxu0 0.0
  %123 = vmatprep.subr.mxu0 0.0
  %124 = vmatpush1.msra.mxu0 0.0
  %125 = vmatprep.subr.mxu0 0.0
  %126 = vmatpush1.msra.mxu0 0.0
  %127 = vmatprep.subr.mxu0 0.0
  %128 = vmatpush1.msra.mxu0 0.0
  %129 = vmatprep.subr.mxu0 0.0
  %130 = vmatpush1.msra.mxu0 0.0
  %131 = vmatprep.subr.mxu0 0.0
  %132 = vmatpush1.msra.mxu0 0.0
  %133 = vmatprep.subr.mxu0 %v79
  %134 = vmatpush1.msra.mxu0 %v78
  %135 = vmatprep.subr.mxu0 %v77
  %136 = vmatpush1.msra.mxu0 %v76
  %137 = vmatprep.subr.mxu0 %v75
  %138 = vmatpush1.msra.mxu0 %v74
  %139 = vmatprep.subr.mxu0 %v73
  %140 = vmatpush1.msra.mxu0 %v72
  %141 = vmatprep.subr.mxu0 %v71
  %142 = vmatpush1.msra.mxu0 %v70
  %143 = vmatprep.subr.mxu0 %v69
  %144 = vmatpush1.msra.mxu0 %v68
  %145 = vmatprep.subr.mxu0 %v67
  %146 = vmatpush1.msra.mxu0 %v66
  %147 = vmatprep.subr.mxu0 %v65
  %148 = vmatpush1.msra.mxu0 %v64
  %149 = vmatprep.subr.mxu0 0.0
  %150 = vmatpush2.msra.mxu0 0.0
  %151 = vmatprep.subr.mxu0 0.0
  %152 = vmatpush2.msra.mxu0 0.0
  %153 = vmatprep.subr.mxu0 0.0
  %154 = vmatpush2.msra.mxu0 0.0
  %155 = vmatprep.subr.mxu0 0.0
  %156 = vmatpush2.msra.mxu0 0.0
  %157 = vmatprep.subr.mxu0 0.0
  %158 = vmatpush2.msra.mxu0 0.0
  %159 = vmatprep.subr.mxu0 0.0
  %160 = vmatpush2.msra.mxu0 0.0
  %161 = vmatprep.subr.mxu0 0.0
  %162 = vmatpush2.msra.mxu0 0.0
  %163 = vmatprep.subr.mxu0 0.0
  %164 = vmatpush2.msra.mxu0 0.0
  %165 = vmatprep.subr.mxu0 0.0
  %166 = vmatpush2.msra.mxu0 0.0
  %167 = vmatprep.subr.mxu0 0.0
  %168 = vmatpush2.msra.mxu0 0.0
  %169 = vmatprep.subr.mxu0 0.0
  %170 = vmatpush2.msra.mxu0 0.0
  %171 = vmatprep.subr.mxu0 0.0
  %172 = vmatpush2.msra.mxu0 0.0
  %173 = vmatprep.subr.mxu0 0.0
  %174 = vmatpush2.msra.mxu0 0.0
  %175 = vmatprep.subr.mxu0 0.0
  %176 = vmatpush2.msra.mxu0 0.0
  %177 = vmatprep.subr.mxu0 0.0
  %178 = vmatpush2.msra.mxu0 0.0
  %179 = vmatprep.subr.mxu0 0.0
  %180 = vmatpush2.msra.mxu0 0.0
  %181 = vmatprep.mubr.f32.mxu0 0.0
  %182 = vmatmul.mubr.f32.gmra.mxu0 %v94
  %v183 = vpop.f32.mrf.mxu0
  %v184 = vadd.f32 %v85, %v183
  %v185 = vpop.f32.mrf.mxu0
  %v186 = vadd.f32 %v89, %v185
  %187 = vmatprep.mubr.f32.mxu0 0.0
  %188 = vmatmul.mubr.f32.gmra.mxu0 %v97
  %v189 = vpop.f32.mrf.mxu0
  %v190 = vadd.f32 %v85, %v189
  %v191 = vpop.f32.mrf.mxu0
  %v192 = vadd.f32 %v89, %v191
  %193 = vmatprep.mubr.f32.mxu0 0.0
  %194 = vmatmul.mubr.f32.gmra.mxu0 %v100
  %v195 = vpop.f32.mrf.mxu0
  %v196 = vadd.f32 %v85, %v195
  %v197 = vpop.f32.mrf.mxu0
  %v198 = vadd.f32 %v89, %v197
  %199 = vmatprep.mubr.f32.mxu0 0.0
  %200 = vmatmul.mubr.f32.gmra.mxu0 %v103
  %v201 = vpop.f32.mrf.mxu0
  %v202 = vadd.f32 %v85, %v201
  %v203 = vpop.f32.mrf.mxu0
  %v204 = vadd.f32 %v89, %v203
  %205 = vmatprep.mubr.f32.mxu0 0.0
  %206 = vmatmul.mubr.f32.gmra.mxu0 %v106
  %v207 = vpop.f32.mrf.mxu0
  %v208 = vadd.f32 %v85, %v207
  %v209 = vpop.f32.mrf.mxu0
  %v210 = vadd.f32 %v89, %v209
  %211 = vmatprep.mubr.f32.mxu0 0.0
  %212 = vmatmul.mubr.f32.gmra.mxu0 %v109
  %v213 = vpop.f32.mrf.mxu0
  %v214 = vadd.f32 %v85, %v213
  %v215 = vpop.f32.mrf.mxu0
  %v216 = vadd.f32 %v89, %v215
  %217 = vmatprep.mubr.f32.mxu0 0.0
  %218 = vmatmul.mubr.f32.gmra.mxu0 %v112
  %v219 = vpop.f32.mrf.mxu0
  %v220 = vadd.f32 %v85, %v219
  %v221 = vpop.f32.mrf.mxu0
  %v222 = vadd.f32 %v89, %v221
  %223 = vmatprep.mubr.f32.mxu0 0.0
  %224 = vmatmul.mubr.f32.gmra.mxu0 %v115
  %v225 = vpop.f32.mrf.mxu0
  %v226 = vadd.f32 %v85, %v225
  %v227 = vpop.f32.mrf.mxu0
  %v228 = vadd.f32 %v89, %v227
  %229 = vdwg.mxu0
  %v230 = vld [vmem:[%s1] sm:$0xff]
  %v231 = vld [vmem:[%s1 + $0x8] sm:$0xff]
  %v232 = vld [vmem:[%s1 + $0x10] sm:$0xff]
  %v233 = vld [vmem:[%s1 + $0x18] sm:$0xff]
  %v234 = vld [vmem:[%s1 + $0x20] sm:$0xff]
  %v235 = vld [vmem:[%s1 + $0x28] sm:$0xff]
  %v236 = vld [vmem:[%s1 + $0x30] sm:$0xff]
  %v237 = vld [vmem:[%s1 + $0x38] sm:$0xff]
  %v238 = vld [vmem:[%s7] sm:$0xff]
  %v239 = vld [vmem:[%s7 + $0x8] sm:$0xff]
  %v240 = vld [vmem:[%s7 + $0x10] sm:$0xff]
  %v241 = vld [vmem:[%s7 + $0x18] sm:$0xff]
  %v242 = vld [vmem:[%s7 + $0x20] sm:$0xff]
  %v243 = vld [vmem:[%s7 + $0x28] sm:$0xff]
  %v244 = vld [vmem:[%s7 + $0x30] sm:$0xff]
  %v245 = vld [vmem:[%s7 + $0x38] sm:$0xff]
  %v246 = vld [vmem:[%s7 + $0x40] sm:$0xff]
  %v247 = vld [vmem:[%s7 + $0x48] sm:$0xff]
  %v248 = vld [vmem:[%s7 + $0x50] sm:$0xff]
  %v249 = vld [vmem:[%s7 + $0x58] sm:$0xff]
  %v250 = vld [vmem:[%s7 + $0x60] sm:$0xff]
  %v251 = vld [vmem:[%s7 + $0x68] sm:$0xff]
  %v252 = vld [vmem:[%s7 + $0x70] sm:$0xff]
  %v253 = vld [vmem:[%s7 + $0x78] sm:$0xff]
  %v255 = vsel %vm92, 0.0, 0
  %257 = vmatprep.subr.mxu0 0.0
  %258 = vmatpush1.msra.mxu0 0.0
  %259 = vmatprep.subr.mxu0 0.0
  %260 = vmatpush1.msra.mxu0 0.0
  %261 = vmatprep.subr.mxu0 0.0
  %262 = vmatpush1.msra.mxu0 0.0
  %263 = vmatprep.subr.mxu0 0.0
  %264 = vmatpush1.msra.mxu0 0.0
  %265 = vmatprep.subr.mxu0 0.0
  %266 = vmatpush1.msra.mxu0 0.0
  %267 = vmatprep.subr.mxu0 0.0
  %268 = vmatpush1.msra.mxu0 0.0
  %269 = vmatprep.subr.mxu0 0.0
  %270 = vmatpush1.msra.mxu0 0.0
  %271 = vmatprep.subr.mxu0 0.0
  %272 = vmatpush1.msra.mxu0 0.0
  %273 = vmatprep.subr.mxu0 %v253
  %274 = vmatpush1.msra.mxu0 %v252
  %275 = vmatprep.subr.mxu0 %v251
  %276 = vmatpush1.msra.mxu0 %v250
  %277 = vmatprep.subr.mxu0 %v249
  %278 = vmatpush1.msra.mxu0 %v248
  %279 = vmatprep.subr.mxu0 %v247
  %280 = vmatpush1.msra.mxu0 %v246
  %281 = vmatprep.subr.mxu0 %v245
  %282 = vmatpush1.msra.mxu0 %v244
  %283 = vmatprep.subr.mxu0 %v243
  %284 = vmatpush1.msra.mxu0 %v242
  %285 = vmatprep.subr.mxu0 %v241
  %286 = vmatpush1.msra.mxu0 %v240
  %287 = vmatprep.subr.mxu0 %v239
  %288 = vmatpush1.msra.mxu0 %v238
  %289 = vmatprep.subr.mxu0 0.0
  %290 = vmatpush2.msra.mxu0 0.0
  %291 = vmatprep.subr.mxu0 0.0
  %292 = vmatpush2.msra.mxu0 0.0
  %293 = vmatprep.subr.mxu0 0.0
  %294 = vmatpush2.msra.mxu0 0.0
  %295 = vmatprep.subr.mxu0 0.0
  %296 = vmatpush2.msra.mxu0 0.0
  %297 = vmatprep.subr.mxu0 0.0
  %298 = vmatpush2.msra.mxu0 0.0
  %299 = vmatprep.subr.mxu0 0.0
  %300 = vmatpush2.msra.mxu0 0.0
  %301 = vmatprep.subr.mxu0 0.0
  %302 = vmatpush2.msra.mxu0 0.0
  %303 = vmatprep.subr.mxu0 0.0
  %304 = vmatpush2.msra.mxu0 0.0
  %305 = vmatprep.subr.mxu0 0.0
  %306 = vmatpush2.msra.mxu0 0.0
  %307 = vmatprep.subr.mxu0 0.0
  %308 = vmatpush2.msra.mxu0 0.0
  %309 = vmatprep.subr.mxu0 0.0
  %310 = vmatpush2.msra.mxu0 0.0
  %311 = vmatprep.subr.mxu0 0.0
  %312 = vmatpush2.msra.mxu0 0.0
  %313 = vmatprep.subr.mxu0 0.0
  %314 = vmatpush2.msra.mxu0 0.0
  %315 = vmatprep.subr.mxu0 0.0
  %316 = vmatpush2.msra.mxu0 0.0
  %317 = vmatprep.subr.mxu0 0.0
  %318 = vmatpush2.msra.mxu0 0.0
  %319 = vmatprep.subr.mxu0 0.0
  %320 = vmatpush2.msra.mxu0 0.0
  %321 = vmatprep.mubr.f32.mxu0 0.0
  %322 = vmatmul.mubr.f32.gmra.mxu0 %v255
  %v323 = vpop.f32.mrf.mxu0
  %v324 = vadd.f32 0.0, %v323
  %v325 = vpop.f32.mrf.mxu0
  %v326 = vadd.f32 0.0, %v325
  %327 = vdwg.mxu0
  %v328 = vadd.f32 %v184, %v324
  %v329 = vadd.f32 %v186, %v326
  %v330 = vxor.u32 %v328, 2147483648
  %v331 = vxor.u32 %v329, 2147483648
  %v332 = vmul.f32 %v330, 1.442695
  %v333 = vpow.pop %v332
  %v334 = vmul.f32 %v331, 1.442695
  %v335 = vpow.pop %v334
  %v336 = vadd.f32 %v333, 1.0
  %v337 = vadd.f32 %v335, 1.0
  %v338 = vrcp.pop %v336
  %v339 = vmul.f32 1.0, %v338
  %v340 = vrcp.pop %v337
  %v341 = vmul.f32 1.0, %v340
  %v342 = vtanh.pop %v329
  %v343 = vmul.f32 %v339, 0.0
  %345 = vrot.lane.b32.xlu0 %v342, 64
  %v346 = vpop.permute.xlu0 %345
  %v348 = vmul.f32 %v339, %v346
  %350 = vrot.lane.b32.xlu0 %v348, 64
  %v351 = vpop.permute.xlu0 %350
  %v353 = vadd.f32 %v343, %v351
  %v354 = vtanh.pop %v353
  %356 = vrot.lane.b32.xlu0 %v354, 64
  %v357 = vpop.permute.xlu0 %356
  %v359 = vmul.f32 %v341, %v357
  %v360 = vmul.f32 %v230, %v359
  %v361 = vsub.f32 1.0, %v230
  %v362 = vmul.f32 %v361, 0.0
  %v363 = vadd.f32 %v360, %v362
  %365 = vrot.lane.b32.xlu0 %v353, 64
  %v366 = vpop.permute.xlu0 %365
  %v368 = vmul.f32 %v230, %v366
  %v369 = vadd.f32 %v368, %v362
  %v371 = vsel %vm92, %v363, 0
  %373 = vmatprep.subr.mxu0 0.0
  %374 = vmatpush1.msra.mxu0 0.0
  %375 = vmatprep.subr.mxu0 0.0
  %376 = vmatpush1.msra.mxu0 0.0
  %377 = vmatprep.subr.mxu0 0.0
  %378 = vmatpush1.msra.mxu0 0.0
  %379 = vmatprep.subr.mxu0 0.0
  %380 = vmatpush1.msra.mxu0 0.0
  %381 = vmatprep.subr.mxu0 0.0
  %382 = vmatpush1.msra.mxu0 0.0
  %383 = vmatprep.subr.mxu0 0.0
  %384 = vmatpush1.msra.mxu0 0.0
  %385 = vmatprep.subr.mxu0 0.0
  %386 = vmatpush1.msra.mxu0 0.0
  %387 = vmatprep.subr.mxu0 0.0
  %388 = vmatpush1.msra.mxu0 0.0
  %389 = vmatprep.subr.mxu0 %v253
  %390 = vmatpush1.msra.mxu0 %v252
  %391 = vmatprep.subr.mxu0 %v251
  %392 = vmatpush1.msra.mxu0 %v250
  %393 = vmatprep.subr.mxu0 %v249
  %394 = vmatpush1.msra.mxu0 %v248
  %395 = vmatprep.subr.mxu0 %v247
  %396 = vmatpush1.msra.mxu0 %v246
  %397 = vmatprep.subr.mxu0 %v245
  %398 = vmatpush1.msra.mxu0 %v244
  %399 = vmatprep.subr.mxu0 %v243
  %400 = vmatpush1.msra.mxu0 %v242
  %401 = vmatprep.subr.mxu0 %v241
  %402 = vmatpush1.msra.mxu0 %v240
  %403 = vmatprep.subr.mxu0 %v239
  %404 = vmatpush1.msra.mxu0 %v238
  %405 = vmatprep.subr.mxu0 0.0
  %406 = vmatpush2.msra.mxu0 0.0
  %407 = vmatprep.subr.mxu0 0.0
  %408 = vmatpush2.msra.mxu0 0.0
  %409 = vmatprep.subr.mxu0 0.0
  %410 = vmatpush2.msra.mxu0 0.0
  %411 = vmatprep.subr.mxu0 0.0
  %412 = vmatpush2.msra.mxu0 0.0
  %413 = vmatprep.subr.mxu0 0.0
  %414 = vmatpush2.msra.mxu0 0.0
  %415 = vmatprep.subr.mxu0 0.0
  %416 = vmatpush2.msra.mxu0 0.0
  %417 = vmatprep.subr.mxu0 0.0
  %418 = vmatpush2.msra.mxu0 0.0
  %419 = vmatprep.subr.mxu0 0.0
  %420 = vmatpush2.msra.mxu0 0.0
  %421 = vmatprep.subr.mxu0 0.0
  %422 = vmatpush2.msra.mxu0 0.0
  %423 = vmatprep.subr.mxu0 0.0
  %424 = vmatpush2.msra.mxu0 0.0
  %425 = vmatprep.subr.mxu0 0.0
  %426 = vmatpush2.msra.mxu0 0.0
  %427 = vmatprep.subr.mxu0 0.0
  %428 = vmatpush2.msra.mxu0 0.0
  %429 = vmatprep.subr.mxu0 0.0
  %430 = vmatpush2.msra.mxu0 0.0
  %431 = vmatprep.subr.mxu0 0.0
  %432 = vmatpush2.msra.mxu0 0.0
  %433 = vmatprep.subr.mxu0 0.0
  %434 = vmatpush2.msra.mxu0 0.0
  %435 = vmatprep.subr.mxu0 0.0
  %436 = vmatpush2.msra.mxu0 0.0
  %437 = vmatprep.mubr.f32.mxu0 0.0
  %438 = vmatmul.mubr.f32.gmra.mxu0 %v371
  %v439 = vpop.f32.mrf.mxu0
  %v440 = vadd.f32 0.0, %v439
  %v441 = vpop.f32.mrf.mxu0
  %v442 = vadd.f32 0.0, %v441
  %443 = vdwg.mxu0
  %v444 = vadd.f32 %v190, %v440
  %v445 = vadd.f32 %v192, %v442
  %v446 = vxor.u32 %v444, 2147483648
  %v447 = vxor.u32 %v445, 2147483648
  %v448 = vmul.f32 %v446, 1.442695
  %v449 = vpow.pop %v448
  %v450 = vmul.f32 %v447, 1.442695
  %v451 = vpow.pop %v450
  %v452 = vadd.f32 %v449, 1.0
  %v453 = vadd.f32 %v451, 1.0
  %v454 = vrcp.pop %v452
  %v455 = vmul.f32 1.0, %v454
  %v456 = vrcp.pop %v453
  %v457 = vmul.f32 1.0, %v456
  %v458 = vtanh.pop %v445
  %460 = vrot.lane.b32.xlu0 %v369, 64
  %v461 = vpop.permute.xlu0 %460
  %v463 = vmul.f32 %v455, %v461
  %465 = vrot.lane.b32.xlu0 %v458, 64
  %v466 = vpop.permute.xlu0 %465
  %v468 = vmul.f32 %v455, %v466
  %470 = vrot.lane.b32.xlu0 %v468, 64
  %v471 = vpop.permute.xlu0 %470
  %v473 = vadd.f32 %v463, %v471
  %v474 = vtanh.pop %v473
  %476 = vrot.lane.b32.xlu0 %v474, 64
  %v477 = vpop.permute.xlu0 %476
  %v479 = vmul.f32 %v457, %v477
  %v480 = vmul.f32 %v231, %v479
  %v481 = vsub.f32 1.0, %v231
  %v482 = vmul.f32 %v481, %v363
  %v483 = vadd.f32 %v480, %v482
  %485 = vrot.lane.b32.xlu0 %v473, 64
  %v486 = vpop.permute.xlu0 %485
  %v488 = vmul.f32 %v231, %v486
  %v489 = vmul.f32 %v481, %v369
  %v490 = vadd.f32 %v488, %v489
  %v492 = vsel %vm92, %v483, 0
  %494 = vmatprep.subr.mxu0 0.0
  %495 = vmatpush1.msra.mxu0 0.0
  %496 = vmatprep.subr.mxu0 0.0
  %497 = vmatpush1.msra.mxu0 0.0
  %498 = vmatprep.subr.mxu0 0.0
  %499 = vmatpush1.msra.mxu0 0.0
  %500 = vmatprep.subr.mxu0 0.0
  %501 = vmatpush1.msra.mxu0 0.0
  %502 = vmatprep.subr.mxu0 0.0
  %503 = vmatpush1.msra.mxu0 0.0
  %504 = vmatprep.subr.mxu0 0.0
  %505 = vmatpush1.msra.mxu0 0.0
  %506 = vmatprep.subr.mxu0 0.0
  %507 = vmatpush1.msra.mxu0 0.0
  %508 = vmatprep.subr.mxu0 0.0
  %509 = vmatpush1.msra.mxu0 0.0
  %510 = vmatprep.subr.mxu0 %v253
  %511 = vmatpush1.msra.mxu0 %v252
  %512 = vmatprep.subr.mxu0 %v251
  %513 = vmatpush1.msra.mxu0 %v250
  %514 = vmatprep.subr.mxu0 %v249
  %515 = vmatpush1.msra.mxu0 %v248
  %516 = vmatprep.subr.mxu0 %v247
  %517 = vmatpush1.msra.mxu0 %v246
  %518 = vmatprep.subr.mxu0 %v245
  %519 = vmatpush1.msra.mxu0 %v244
  %520 = vmatprep.subr.mxu0 %v243
  %521 = vmatpush1.msra.mxu0 %v242
  %522 = vmatprep.subr.mxu0 %v241
  %523 = vmatpush1.msra.mxu0 %v240
  %524 = vmatprep.subr.mxu0 %v239
  %525 = vmatpush1.msra.mxu0 %v238
  %526 = vmatprep.subr.mxu0 0.0
  %527 = vmatpush2.msra.mxu0 0.0
  %528 = vmatprep.subr.mxu0 0.0
  %529 = vmatpush2.msra.mxu0 0.0
  %530 = vmatprep.subr.mxu0 0.0
  %531 = vmatpush2.msra.mxu0 0.0
  %532 = vmatprep.subr.mxu0 0.0
  %533 = vmatpush2.msra.mxu0 0.0
  %534 = vmatprep.subr.mxu0 0.0
  %535 = vmatpush2.msra.mxu0 0.0
  %536 = vmatprep.subr.mxu0 0.0
  %537 = vmatpush2.msra.mxu0 0.0
  %538 = vmatprep.subr.mxu0 0.0
  %539 = vmatpush2.msra.mxu0 0.0
  %540 = vmatprep.subr.mxu0 0.0
  %541 = vmatpush2.msra.mxu0 0.0
  %542 = vmatprep.subr.mxu0 0.0
  %543 = vmatpush2.msra.mxu0 0.0
  %544 = vmatprep.subr.mxu0 0.0
  %545 = vmatpush2.msra.mxu0 0.0
  %546 = vmatprep.subr.mxu0 0.0
  %547 = vmatpush2.msra.mxu0 0.0
  %548 = vmatprep.subr.mxu0 0.0
  %549 = vmatpush2.msra.mxu0 0.0
  %550 = vmatprep.subr.mxu0 0.0
  %551 = vmatpush2.msra.mxu0 0.0
  %552 = vmatprep.subr.mxu0 0.0
  %553 = vmatpush2.msra.mxu0 0.0
  %554 = vmatprep.subr.mxu0 0.0
  %555 = vmatpush2.msra.mxu0 0.0
  %556 = vmatprep.subr.mxu0 0.0
  %557 = vmatpush2.msra.mxu0 0.0
  %558 = vmatprep.mubr.f32.mxu0 0.0
  %559 = vmatmul.mubr.f32.gmra.mxu0 %v492
  %v560 = vpop.f32.mrf.mxu0
  %v561 = vadd.f32 0.0, %v560
  %v562 = vpop.f32.mrf.mxu0
  %v563 = vadd.f32 0.0, %v562
  %564 = vdwg.mxu0
  %v565 = vadd.f32 %v196, %v561
  %v566 = vadd.f32 %v198, %v563
  %v567 = vxor.u32 %v565, 2147483648
  %v568 = vxor.u32 %v566, 2147483648
  %v569 = vmul.f32 %v567, 1.442695
  %v570 = vpow.pop %v569
  %v571 = vmul.f32 %v568, 1.442695
  %v572 = vpow.pop %v571
  %v573 = vadd.f32 %v570, 1.0
  %v574 = vadd.f32 %v572, 1.0
  %v575 = vrcp.pop %v573
  %v576 = vmul.f32 1.0, %v575
  %v577 = vrcp.pop %v574
  %v578 = vmul.f32 1.0, %v577
  %v579 = vtanh.pop %v566
  %581 = vrot.lane.b32.xlu0 %v490, 64
  %v582 = vpop.permute.xlu0 %581
  %v584 = vmul.f32 %v576, %v582
  %586 = vrot.lane.b32.xlu0 %v579, 64
  %v587 = vpop.permute.xlu0 %586
  %v589 = vmul.f32 %v576, %v587
  %591 = vrot.lane.b32.xlu0 %v589, 64
  %v592 = vpop.permute.xlu0 %591
  %v594 = vadd.f32 %v584, %v592
  %v595 = vtanh.pop %v594
  %597 = vrot.lane.b32.xlu0 %v595, 64
  %v598 = vpop.permute.xlu0 %597
  %v600 = vmul.f32 %v578, %v598
  %v601 = vmul.f32 %v232, %v600
  %v602 = vsub.f32 1.0, %v232
  %v603 = vmul.f32 %v602, %v483
  %v604 = vadd.f32 %v601, %v603
  %606 = vrot.lane.b32.xlu0 %v594, 64
  %v607 = vpop.permute.xlu0 %606
  %v609 = vmul.f32 %v232, %v607
  %v610 = vmul.f32 %v602, %v490
  %v611 = vadd.f32 %v609, %v610
  %v613 = vsel %vm92, %v604, 0
  %615 = vmatprep.subr.mxu0 0.0
  %616 = vmatpush1.msra.mxu0 0.0
  %617 = vmatprep.subr.mxu0 0.0
  %618 = vmatpush1.msra.mxu0 0.0
  %619 = vmatprep.subr.mxu0 0.0
  %620 = vmatpush1.msra.mxu0 0.0
  %621 = vmatprep.subr.mxu0 0.0
  %622 = vmatpush1.msra.mxu0 0.0
  %623 = vmatprep.subr.mxu0 0.0
  %624 = vmatpush1.msra.mxu0 0.0
  %625 = vmatprep.subr.mxu0 0.0
  %626 = vmatpush1.msra.mxu0 0.0
  %627 = vmatprep.subr.mxu0 0.0
  %628 = vmatpush1.msra.mxu0 0.0
  %629 = vmatprep.subr.mxu0 0.0
  %630 = vmatpush1.msra.mxu0 0.0
  %631 = vmatprep.subr.mxu0 %v253
  %632 = vmatpush1.msra.mxu0 %v252
  %633 = vmatprep.subr.mxu0 %v251
  %634 = vmatpush1.msra.mxu0 %v250
  %635 = vmatprep.subr.mxu0 %v249
  %636 = vmatpush1.msra.mxu0 %v248
  %637 = vmatprep.subr.mxu0 %v247
  %638 = vmatpush1.msra.mxu0 %v246
  %639 = vmatprep.subr.mxu0 %v245
  %640 = vmatpush1.msra.mxu0 %v244
  %641 = vmatprep.subr.mxu0 %v243
  %642 = vmatpush1.msra.mxu0 %v242
  %643 = vmatprep.subr.mxu0 %v241
  %644 = vmatpush1.msra.mxu0 %v240
  %645 = vmatprep.subr.mxu0 %v239
  %646 = vmatpush1.msra.mxu0 %v238
  %647 = vmatprep.subr.mxu0 0.0
  %648 = vmatpush2.msra.mxu0 0.0
  %649 = vmatprep.subr.mxu0 0.0
  %650 = vmatpush2.msra.mxu0 0.0
  %651 = vmatprep.subr.mxu0 0.0
  %652 = vmatpush2.msra.mxu0 0.0
  %653 = vmatprep.subr.mxu0 0.0
  %654 = vmatpush2.msra.mxu0 0.0
  %655 = vmatprep.subr.mxu0 0.0
  %656 = vmatpush2.msra.mxu0 0.0
  %657 = vmatprep.subr.mxu0 0.0
  %658 = vmatpush2.msra.mxu0 0.0
  %659 = vmatprep.subr.mxu0 0.0
  %660 = vmatpush2.msra.mxu0 0.0
  %661 = vmatprep.subr.mxu0 0.0
  %662 = vmatpush2.msra.mxu0 0.0
  %663 = vmatprep.subr.mxu0 0.0
  %664 = vmatpush2.msra.mxu0 0.0
  %665 = vmatprep.subr.mxu0 0.0
  %666 = vmatpush2.msra.mxu0 0.0
  %667 = vmatprep.subr.mxu0 0.0
  %668 = vmatpush2.msra.mxu0 0.0
  %669 = vmatprep.subr.mxu0 0.0
  %670 = vmatpush2.msra.mxu0 0.0
  %671 = vmatprep.subr.mxu0 0.0
  %672 = vmatpush2.msra.mxu0 0.0
  %673 = vmatprep.subr.mxu0 0.0
  %674 = vmatpush2.msra.mxu0 0.0
  %675 = vmatprep.subr.mxu0 0.0
  %676 = vmatpush2.msra.mxu0 0.0
  %677 = vmatprep.subr.mxu0 0.0
  %678 = vmatpush2.msra.mxu0 0.0
  %679 = vmatprep.mubr.f32.mxu0 0.0
  %680 = vmatmul.mubr.f32.gmra.mxu0 %v613
  %v681 = vpop.f32.mrf.mxu0
  %v682 = vadd.f32 0.0, %v681
  %v683 = vpop.f32.mrf.mxu0
  %v684 = vadd.f32 0.0, %v683
  %685 = vdwg.mxu0
  %v686 = vadd.f32 %v202, %v682
  %v687 = vadd.f32 %v204, %v684
  %v688 = vxor.u32 %v686, 2147483648
  %v689 = vxor.u32 %v687, 2147483648
  %v690 = vmul.f32 %v688, 1.442695
  %v691 = vpow.pop %v690
  %v692 = vmul.f32 %v689, 1.442695
  %v693 = vpow.pop %v692
  %v694 = vadd.f32 %v691, 1.0
  %v695 = vadd.f32 %v693, 1.0
  %v696 = vrcp.pop %v694
  %v697 = vmul.f32 1.0, %v696
  %v698 = vrcp.pop %v695
  %v699 = vmul.f32 1.0, %v698
  %v700 = vtanh.pop %v687
  %702 = vrot.lane.b32.xlu0 %v611, 64
  %v703 = vpop.permute.xlu0 %702
  %v705 = vmul.f32 %v697, %v703
  %707 = vrot.lane.b32.xlu0 %v700, 64
  %v708 = vpop.permute.xlu0 %707
  %v710 = vmul.f32 %v697, %v708
  %712 = vrot.lane.b32.xlu0 %v710, 64
  %v713 = vpop.permute.xlu0 %712
  %v715 = vadd.f32 %v705, %v713
  %v716 = vtanh.pop %v715
  %718 = vrot.lane.b32.xlu0 %v716, 64
  %v719 = vpop.permute.xlu0 %718
  %v721 = vmul.f32 %v699, %v719
  %v722 = vmul.f32 %v233, %v721
  %v723 = vsub.f32 1.0, %v233
  %v724 = vmul.f32 %v723, %v604
  %v725 = vadd.f32 %v722, %v724
  %727 = vrot.lane.b32.xlu0 %v715, 64
  %v728 = vpop.permute.xlu0 %727
  %v730 = vmul.f32 %v233, %v728
  %v731 = vmul.f32 %v723, %v611
  %v732 = vadd.f32 %v730, %v731
  %v734 = vsel %vm92, %v725, 0
  %736 = vmatprep.subr.mxu0 0.0
  %737 = vmatpush1.msra.mxu0 0.0
  %738 = vmatprep.subr.mxu0 0.0
  %739 = vmatpush1.msra.mxu0 0.0
  %740 = vmatprep.subr.mxu0 0.0
  %741 = vmatpush1.msra.mxu0 0.0
  %742 = vmatprep.subr.mxu0 0.0
  %743 = vmatpush1.msra.mxu0 0.0
  %744 = vmatprep.subr.mxu0 0.0
  %745 = vmatpush1.msra.mxu0 0.0
  %746 = vmatprep.subr.mxu0 0.0
  %747 = vmatpush1.msra.mxu0 0.0
  %748 = vmatprep.subr.mxu0 0.0
  %749 = vmatpush1.msra.mxu0 0.0
  %750 = vmatprep.subr.mxu0 0.0
  %751 = vmatpush1.msra.mxu0 0.0
  %752 = vmatprep.subr.mxu0 %v253
  %753 = vmatpush1.msra.mxu0 %v252
  %754 = vmatprep.subr.mxu0 %v251
  %755 = vmatpush1.msra.mxu0 %v250
  %756 = vmatprep.subr.mxu0 %v249
  %757 = vmatpush1.msra.mxu0 %v248
  %758 = vmatprep.subr.mxu0 %v247
  %759 = vmatpush1.msra.mxu0 %v246
  %760 = vmatprep.subr.mxu0 %v245
  %761 = vmatpush1.msra.mxu0 %v244
  %762 = vmatprep.subr.mxu0 %v243
  %763 = vmatpush1.msra.mxu0 %v242
  %764 = vmatprep.subr.mxu0 %v241
  %765 = vmatpush1.msra.mxu0 %v240
  %766 = vmatprep.subr.mxu0 %v239
  %767 = vmatpush1.msra.mxu0 %v238
  %768 = vmatprep.subr.mxu0 0.0
  %769 = vmatpush2.msra.mxu0 0.0
  %770 = vmatprep.subr.mxu0 0.0
  %771 = vmatpush2.msra.mxu0 0.0
  %772 = vmatprep.subr.mxu0 0.0
  %773 = vmatpush2.msra.mxu0 0.0
  %774 = vmatprep.subr.mxu0 0.0
  %775 = vmatpush2.msra.mxu0 0.0
  %776 = vmatprep.subr.mxu0 0.0
  %777 = vmatpush2.msra.mxu0 0.0
  %778 = vmatprep.subr.mxu0 0.0
  %779 = vmatpush2.msra.mxu0 0.0
  %780 = vmatprep.subr.mxu0 0.0
  %781 = vmatpush2.msra.mxu0 0.0
  %782 = vmatprep.subr.mxu0 0.0
  %783 = vmatpush2.msra.mxu0 0.0
  %784 = vmatprep.subr.mxu0 0.0
  %785 = vmatpush2.msra.mxu0 0.0
  %786 = vmatprep.subr.mxu0 0.0
  %787 = vmatpush2.msra.mxu0 0.0
  %788 = vmatprep.subr.mxu0 0.0
  %789 = vmatpush2.msra.mxu0 0.0
  %790 = vmatprep.subr.mxu0 0.0
  %791 = vmatpush2.msra.mxu0 0.0
  %792 = vmatprep.subr.mxu0 0.0
  %793 = vmatpush2.msra.mxu0 0.0
  %794 = vmatprep.subr.mxu0 0.0
  %795 = vmatpush2.msra.mxu0 0.0
  %796 = vmatprep.subr.mxu0 0.0
  %797 = vmatpush2.msra.mxu0 0.0
  %798 = vmatprep.subr.mxu0 0.0
  %799 = vmatpush2.msra.mxu0 0.0
  %800 = vmatprep.mubr.f32.mxu0 0.0
  %801 = vmatmul.mubr.f32.gmra.mxu0 %v734
  %v802 = vpop.f32.mrf.mxu0
  %v803 = vadd.f32 0.0, %v802
  %v804 = vpop.f32.mrf.mxu0
  %v805 = vadd.f32 0.0, %v804
  %806 = vdwg.mxu0
  %v807 = vadd.f32 %v208, %v803
  %v808 = vadd.f32 %v210, %v805
  %v809 = vxor.u32 %v807, 2147483648
  %v810 = vxor.u32 %v808, 2147483648
  %v811 = vmul.f32 %v809, 1.442695
  %v812 = vpow.pop %v811
  %v813 = vmul.f32 %v810, 1.442695
  %v814 = vpow.pop %v813
  %v815 = vadd.f32 %v812, 1.0
  %v816 = vadd.f32 %v814, 1.0
  %v817 = vrcp.pop %v815
  %v818 = vmul.f32 1.0, %v817
  %v819 = vrcp.pop %v816
  %v820 = vmul.f32 1.0, %v819
  %v821 = vtanh.pop %v808
  %823 = vrot.lane.b32.xlu0 %v732, 64
  %v824 = vpop.permute.xlu0 %823
  %v826 = vmul.f32 %v818, %v824
  %828 = vrot.lane.b32.xlu0 %v821, 64
  %v829 = vpop.permute.xlu0 %828
  %v831 = vmul.f32 %v818, %v829
  %833 = vrot.lane.b32.xlu0 %v831, 64
  %v834 = vpop.permute.xlu0 %833
  %v836 = vadd.f32 %v826, %v834
  %v837 = vtanh.pop %v836
  %839 = vrot.lane.b32.xlu0 %v837, 64
  %v840 = vpop.permute.xlu0 %839
  %v842 = vmul.f32 %v820, %v840
  %v843 = vmul.f32 %v234, %v842
  %v844 = vsub.f32 1.0, %v234
  %v845 = vmul.f32 %v844, %v725
  %v846 = vadd.f32 %v843, %v845
  %848 = vrot.lane.b32.xlu0 %v836, 64
  %v849 = vpop.permute.xlu0 %848
  %v851 = vmul.f32 %v234, %v849
  %v852 = vmul.f32 %v844, %v732
  %v853 = vadd.f32 %v851, %v852
  %v855 = vsel %vm92, %v846, 0
  %857 = vmatprep.subr.mxu0 0.0
  %858 = vmatpush1.msra.mxu0 0.0
  %859 = vmatprep.subr.mxu0 0.0
  %860 = vmatpush1.msra.mxu0 0.0
  %861 = vmatprep.subr.mxu0 0.0
  %862 = vmatpush1.msra.mxu0 0.0
  %863 = vmatprep.subr.mxu0 0.0
  %864 = vmatpush1.msra.mxu0 0.0
  %865 = vmatprep.subr.mxu0 0.0
  %866 = vmatpush1.msra.mxu0 0.0
  %867 = vmatprep.subr.mxu0 0.0
  %868 = vmatpush1.msra.mxu0 0.0
  %869 = vmatprep.subr.mxu0 0.0
  %870 = vmatpush1.msra.mxu0 0.0
  %871 = vmatprep.subr.mxu0 0.0
  %872 = vmatpush1.msra.mxu0 0.0
  %873 = vmatprep.subr.mxu0 %v253
  %874 = vmatpush1.msra.mxu0 %v252
  %875 = vmatprep.subr.mxu0 %v251
  %876 = vmatpush1.msra.mxu0 %v250
  %877 = vmatprep.subr.mxu0 %v249
  %878 = vmatpush1.msra.mxu0 %v248
  %879 = vmatprep.subr.mxu0 %v247
  %880 = vmatpush1.msra.mxu0 %v246
  %881 = vmatprep.subr.mxu0 %v245
  %882 = vmatpush1.msra.mxu0 %v244
  %883 = vmatprep.subr.mxu0 %v243
  %884 = vmatpush1.msra.mxu0 %v242
  %885 = vmatprep.subr.mxu0 %v241
  %886 = vmatpush1.msra.mxu0 %v240
  %887 = vmatprep.subr.mxu0 %v239
  %888 = vmatpush1.msra.mxu0 %v238
  %889 = vmatprep.subr.mxu0 0.0
  %890 = vmatpush2.msra.mxu0 0.0
  %891 = vmatprep.subr.mxu0 0.0
  %892 = vmatpush2.msra.mxu0 0.0
  %893 = vmatprep.subr.mxu0 0.0
  %894 = vmatpush2.msra.mxu0 0.0
  %895 = vmatprep.subr.mxu0 0.0
  %896 = vmatpush2.msra.mxu0 0.0
  %897 = vmatprep.subr.mxu0 0.0
  %898 = vmatpush2.msra.mxu0 0.0
  %899 = vmatprep.subr.mxu0 0.0
  %900 = vmatpush2.msra.mxu0 0.0
  %901 = vmatprep.subr.mxu0 0.0
  %902 = vmatpush2.msra.mxu0 0.0
  %903 = vmatprep.subr.mxu0 0.0
  %904 = vmatpush2.msra.mxu0 0.0
  %905 = vmatprep.subr.mxu0 0.0
  %906 = vmatpush2.msra.mxu0 0.0
  %907 = vmatprep.subr.mxu0 0.0
  %908 = vmatpush2.msra.mxu0 0.0
  %909 = vmatprep.subr.mxu0 0.0
  %910 = vmatpush2.msra.mxu0 0.0
  %911 = vmatprep.subr.mxu0 0.0
  %912 = vmatpush2.msra.mxu0 0.0
  %913 = vmatprep.subr.mxu0 0.0
  %914 = vmatpush2.msra.mxu0 0.0
  %915 = vmatprep.subr.mxu0 0.0
  %916 = vmatpush2.msra.mxu0 0.0
  %917 = vmatprep.subr.mxu0 0.0
  %918 = vmatpush2.msra.mxu0 0.0
  %919 = vmatprep.subr.mxu0 0.0
  %920 = vmatpush2.msra.mxu0 0.0
  %921 = vmatprep.mubr.f32.mxu0 0.0
  %922 = vmatmul.mubr.f32.gmra.mxu0 %v855
  %v923 = vpop.f32.mrf.mxu0
  %v924 = vadd.f32 0.0, %v923
  %v925 = vpop.f32.mrf.mxu0
  %v926 = vadd.f32 0.0, %v925
  %927 = vdwg.mxu0
  %v928 = vadd.f32 %v214, %v924
  %v929 = vadd.f32 %v216, %v926
  %v930 = vxor.u32 %v928, 2147483648
  %v931 = vxor.u32 %v929, 2147483648
  %v932 = vmul.f32 %v930, 1.442695
  %v933 = vpow.pop %v932
  %v934 = vmul.f32 %v931, 1.442695
  %v935 = vpow.pop %v934
  %v936 = vadd.f32 %v933, 1.0
  %v937 = vadd.f32 %v935, 1.0
  %v938 = vrcp.pop %v936
  %v939 = vmul.f32 1.0, %v938
  %v940 = vrcp.pop %v937
  %v941 = vmul.f32 1.0, %v940
  %v942 = vtanh.pop %v929
  %944 = vrot.lane.b32.xlu0 %v853, 64
  %v945 = vpop.permute.xlu0 %944
  %v947 = vmul.f32 %v939, %v945
  %949 = vrot.lane.b32.xlu0 %v942, 64
  %v950 = vpop.permute.xlu0 %949
  %v952 = vmul.f32 %v939, %v950
  %954 = vrot.lane.b32.xlu0 %v952, 64
  %v955 = vpop.permute.xlu0 %954
  %v957 = vadd.f32 %v947, %v955
  %v958 = vtanh.pop %v957
  %960 = vrot.lane.b32.xlu0 %v958, 64
  %v961 = vpop.permute.xlu0 %960
  %v963 = vmul.f32 %v941, %v961
  %v964 = vmul.f32 %v235, %v963
  %v965 = vsub.f32 1.0, %v235
  %v966 = vmul.f32 %v965, %v846
  %v967 = vadd.f32 %v964, %v966
  %969 = vrot.lane.b32.xlu0 %v957, 64
  %v970 = vpop.permute.xlu0 %969
  %v972 = vmul.f32 %v235, %v970
  %v973 = vmul.f32 %v965, %v853
  %v974 = vadd.f32 %v972, %v973
  %v976 = vsel %vm92, %v967, 0
  %978 = vmatprep.subr.mxu0 0.0
  %979 = vmatpush1.msra.mxu0 0.0
  %980 = vmatprep.subr.mxu0 0.0
  %981 = vmatpush1.msra.mxu0 0.0
  %982 = vmatprep.subr.mxu0 0.0
  %983 = vmatpush1.msra.mxu0 0.0
  %984 = vmatprep.subr.mxu0 0.0
  %985 = vmatpush1.msra.mxu0 0.0
  %986 = vmatprep.subr.mxu0 0.0
  %987 = vmatpush1.msra.mxu0 0.0
  %988 = vmatprep.subr.mxu0 0.0
  %989 = vmatpush1.msra.mxu0 0.0
  %990 = vmatprep.subr.mxu0 0.0
  %991 = vmatpush1.msra.mxu0 0.0
  %992 = vmatprep.subr.mxu0 0.0
  %993 = vmatpush1.msra.mxu0 0.0
  %994 = vmatprep.subr.mxu0 %v253
  %995 = vmatpush1.msra.mxu0 %v252
  %996 = vmatprep.subr.mxu0 %v251
  %997 = vmatpush1.msra.mxu0 %v250
  %998 = vmatprep.subr.mxu0 %v249
  %999 = vmatpush1.msra.mxu0 %v248
  %1000 = vmatprep.subr.mxu0 %v247
  %1001 = vmatpush1.msra.mxu0 %v246
  %1002 = vmatprep.subr.mxu0 %v245
  %1003 = vmatpush1.msra.mxu0 %v244
  %1004 = vmatprep.subr.mxu0 %v243
  %1005 = vmatpush1.msra.mxu0 %v242
  %1006 = vmatprep.subr.mxu0 %v241
  %1007 = vmatpush1.msra.mxu0 %v240
  %1008 = vmatprep.subr.mxu0 %v239
  %1009 = vmatpush1.msra.mxu0 %v238
  %1010 = vmatprep.subr.mxu0 0.0
  %1011 = vmatpush2.msra.mxu0 0.0
  %1012 = vmatprep.subr.mxu0 0.0
  %1013 = vmatpush2.msra.mxu0 0.0
  %1014 = vmatprep.subr.mxu0 0.0
  %1015 = vmatpush2.msra.mxu0 0.0
  %1016 = vmatprep.subr.mxu0 0.0
  %1017 = vmatpush2.msra.mxu0 0.0
  %1018 = vmatprep.subr.mxu0 0.0
  %1019 = vmatpush2.msra.mxu0 0.0
  %1020 = vmatprep.subr.mxu0 0.0
  %1021 = vmatpush2.msra.mxu0 0.0
  %1022 = vmatprep.subr.mxu0 0.0
  %1023 = vmatpush2.msra.mxu0 0.0
  %1024 = vmatprep.subr.mxu0 0.0
  %1025 = vmatpush2.msra.mxu0 0.0
  %1026 = vmatprep.subr.mxu0 0.0
  %1027 = vmatpush2.msra.mxu0 0.0
  %1028 = vmatprep.subr.mxu0 0.0
  %1029 = vmatpush2.msra.mxu0 0.0
  %1030 = vmatprep.subr.mxu0 0.0
  %1031 = vmatpush2.msra.mxu0 0.0
  %1032 = vmatprep.subr.mxu0 0.0
  %1033 = vmatpush2.msra.mxu0 0.0
  %1034 = vmatprep.subr.mxu0 0.0
  %1035 = vmatpush2.msra.mxu0 0.0
  %1036 = vmatprep.subr.mxu0 0.0
  %1037 = vmatpush2.msra.mxu0 0.0
  %1038 = vmatprep.subr.mxu0 0.0
  %1039 = vmatpush2.msra.mxu0 0.0
  %1040 = vmatprep.subr.mxu0 0.0
  %1041 = vmatpush2.msra.mxu0 0.0
  %1042 = vmatprep.mubr.f32.mxu0 0.0
  %1043 = vmatmul.mubr.f32.gmra.mxu0 %v976
  %v1044 = vpop.f32.mrf.mxu0
  %v1045 = vadd.f32 0.0, %v1044
  %v1046 = vpop.f32.mrf.mxu0
  %v1047 = vadd.f32 0.0, %v1046
  %1048 = vdwg.mxu0
  %v1049 = vadd.f32 %v220, %v1045
  %v1050 = vadd.f32 %v222, %v1047
  %v1051 = vxor.u32 %v1049, 2147483648
  %v1052 = vxor.u32 %v1050, 2147483648
  %v1053 = vmul.f32 %v1051, 1.442695
  %v1054 = vpow.pop %v1053
  %v1055 = vmul.f32 %v1052, 1.442695
  %v1056 = vpow.pop %v1055
  %v1057 = vadd.f32 %v1054, 1.0
  %v1058 = vadd.f32 %v1056, 1.0
  %v1059 = vrcp.pop %v1057
  %v1060 = vmul.f32 1.0, %v1059
  %v1061 = vrcp.pop %v1058
  %v1062 = vmul.f32 1.0, %v1061
  %v1063 = vtanh.pop %v1050
  %1065 = vrot.lane.b32.xlu0 %v974, 64
  %v1066 = vpop.permute.xlu0 %1065
  %v1068 = vmul.f32 %v1060, %v1066
  %1070 = vrot.lane.b32.xlu0 %v1063, 64
  %v1071 = vpop.permute.xlu0 %1070
  %v1073 = vmul.f32 %v1060, %v1071
  %1075 = vrot.lane.b32.xlu0 %v1073, 64
  %v1076 = vpop.permute.xlu0 %1075
  %v1078 = vadd.f32 %v1068, %v1076
  %v1079 = vtanh.pop %v1078
  %1081 = vrot.lane.b32.xlu0 %v1079, 64
  %v1082 = vpop.permute.xlu0 %1081
  %v1084 = vmul.f32 %v1062, %v1082
  %v1085 = vmul.f32 %v236, %v1084
  %v1086 = vsub.f32 1.0, %v236
  %v1087 = vmul.f32 %v1086, %v967
  %v1088 = vadd.f32 %v1085, %v1087
  %1090 = vrot.lane.b32.xlu0 %v1078, 64
  %v1091 = vpop.permute.xlu0 %1090
  %v1093 = vmul.f32 %v236, %v1091
  %v1094 = vmul.f32 %v1086, %v974
  %v1095 = vadd.f32 %v1093, %v1094
  %v1097 = vsel %vm92, %v1088, 0
  %1099 = vmatprep.subr.mxu0 0.0
  %1100 = vmatpush1.msra.mxu0 0.0
  %1101 = vmatprep.subr.mxu0 0.0
  %1102 = vmatpush1.msra.mxu0 0.0
  %1103 = vmatprep.subr.mxu0 0.0
  %1104 = vmatpush1.msra.mxu0 0.0
  %1105 = vmatprep.subr.mxu0 0.0
  %1106 = vmatpush1.msra.mxu0 0.0
  %1107 = vmatprep.subr.mxu0 0.0
  %1108 = vmatpush1.msra.mxu0 0.0
  %1109 = vmatprep.subr.mxu0 0.0
  %1110 = vmatpush1.msra.mxu0 0.0
  %1111 = vmatprep.subr.mxu0 0.0
  %1112 = vmatpush1.msra.mxu0 0.0
  %1113 = vmatprep.subr.mxu0 0.0
  %1114 = vmatpush1.msra.mxu0 0.0
  %1115 = vmatprep.subr.mxu0 %v253
  %1116 = vmatpush1.msra.mxu0 %v252
  %1117 = vmatprep.subr.mxu0 %v251
  %1118 = vmatpush1.msra.mxu0 %v250
  %1119 = vmatprep.subr.mxu0 %v249
  %1120 = vmatpush1.msra.mxu0 %v248
  %1121 = vmatprep.subr.mxu0 %v247
  %1122 = vmatpush1.msra.mxu0 %v246
  %1123 = vmatprep.subr.mxu0 %v245
  %1124 = vmatpush1.msra.mxu0 %v244
  %1125 = vmatprep.subr.mxu0 %v243
  %1126 = vmatpush1.msra.mxu0 %v242
  %1127 = vmatprep.subr.mxu0 %v241
  %1128 = vmatpush1.msra.mxu0 %v240
  %1129 = vmatprep.subr.mxu0 %v239
  %1130 = vmatpush1.msra.mxu0 %v238
  %1131 = vmatprep.subr.mxu0 0.0
  %1132 = vmatpush2.msra.mxu0 0.0
  %1133 = vmatprep.subr.mxu0 0.0
  %1134 = vmatpush2.msra.mxu0 0.0
  %1135 = vmatprep.subr.mxu0 0.0
  %1136 = vmatpush2.msra.mxu0 0.0
  %1137 = vmatprep.subr.mxu0 0.0
  %1138 = vmatpush2.msra.mxu0 0.0
  %1139 = vmatprep.subr.mxu0 0.0
  %1140 = vmatpush2.msra.mxu0 0.0
  %1141 = vmatprep.subr.mxu0 0.0
  %1142 = vmatpush2.msra.mxu0 0.0
  %1143 = vmatprep.subr.mxu0 0.0
  %1144 = vmatpush2.msra.mxu0 0.0
  %1145 = vmatprep.subr.mxu0 0.0
  %1146 = vmatpush2.msra.mxu0 0.0
  %1147 = vmatprep.subr.mxu0 0.0
  %1148 = vmatpush2.msra.mxu0 0.0
  %1149 = vmatprep.subr.mxu0 0.0
  %1150 = vmatpush2.msra.mxu0 0.0
  %1151 = vmatprep.subr.mxu0 0.0
  %1152 = vmatpush2.msra.mxu0 0.0
  %1153 = vmatprep.subr.mxu0 0.0
  %1154 = vmatpush2.msra.mxu0 0.0
  %1155 = vmatprep.subr.mxu0 0.0
  %1156 = vmatpush2.msra.mxu0 0.0
  %1157 = vmatprep.subr.mxu0 0.0
  %1158 = vmatpush2.msra.mxu0 0.0
  %1159 = vmatprep.subr.mxu0 0.0
  %1160 = vmatpush2.msra.mxu0 0.0
  %1161 = vmatprep.subr.mxu0 0.0
  %1162 = vmatpush2.msra.mxu0 0.0
  %1163 = vmatprep.mubr.f32.mxu0 0.0
  %1164 = vmatmul.mubr.f32.gmra.mxu0 %v1097
  %v1165 = vpop.f32.mrf.mxu0
  %v1166 = vadd.f32 0.0, %v1165
  %v1167 = vpop.f32.mrf.mxu0
  %v1168 = vadd.f32 0.0, %v1167
  %1169 = vdwg.mxu0
  %v1170 = vadd.f32 %v226, %v1166
  %v1171 = vadd.f32 %v228, %v1168
  %v1172 = vxor.u32 %v1170, 2147483648
  %v1173 = vxor.u32 %v1171, 2147483648
  %v1174 = vmul.f32 %v1172, 1.442695
  %v1175 = vpow.pop %v1174
  %v1176 = vmul.f32 %v1173, 1.442695
  %v1177 = vpow.pop %v1176
  %v1178 = vadd.f32 %v1175, 1.0
  %v1179 = vadd.f32 %v1177, 1.0
  %v1180 = vrcp.pop %v1178
  %v1181 = vmul.f32 1.0, %v1180
  %v1182 = vrcp.pop %v1179
  %v1183 = vmul.f32 1.0, %v1182
  %v1184 = vtanh.pop %v1171
  %1186 = vrot.lane.b32.xlu0 %v1095, 64
  %v1187 = vpop.permute.xlu0 %1186
  %v1189 = vmul.f32 %v1181, %v1187
  %1191 = vrot.lane.b32.xlu0 %v1184, 64
  %v1192 = vpop.permute.xlu0 %1191
  %v1194 = vmul.f32 %v1181, %v1192
  %1196 = vrot.lane.b32.xlu0 %v1194, 64
  %v1197 = vpop.permute.xlu0 %1196
  %v1199 = vadd.f32 %v1189, %v1197
  %v1200 = vtanh.pop %v1199
  %1202 = vrot.lane.b32.xlu0 %v1200, 64
  %v1203 = vpop.permute.xlu0 %1202
  %v1205 = vmul.f32 %v1183, %v1203
  %v1206 = vmul.f32 %v237, %v1205
  %v1207 = vsub.f32 1.0, %v237
  %v1208 = vmul.f32 %v1207, %v1088
  %v1209 = vadd.f32 %v1206, %v1208
  %1211 = vrot.lane.b32.xlu0 %v1199, 64
  %v1212 = vpop.permute.xlu0 %1211
  %v1214 = vmul.f32 %v237, %v1212
  %v1215 = vmul.f32 %v1207, %v1095
  %v1216 = vadd.f32 %v1214, %v1215
  %vm1217 = vcmask 261120
  %v1218 = vsel %vm1217, %v360, %v1206
  %v1219 = vsel %vm1217, %v480, %v1085
  %v1220 = vsel %vm1217, %v601, %v964
  %v1221 = vsel %vm1217, %v722, %v843
  %v1222 = vsel %vm1217, %v843, %v722
  %v1223 = vsel %vm1217, %v964, %v601
  %v1224 = vsel %vm1217, %v1085, %v480
  %v1225 = vsel %vm1217, %v1206, %v360
  %v1226 = vld [vmem:[%s9] sm:$0xff]
  %v1227 = vld [vmem:[%s9 + $0x8] sm:$0xff]
  %v1228 = vld [vmem:[%s9 + $0x10] sm:$0xff]
  %v1229 = vld [vmem:[%s9 + $0x18] sm:$0xff]
  %v1230 = vld [vmem:[%s9 + $0x20] sm:$0xff]
  %v1231 = vld [vmem:[%s9 + $0x28] sm:$0xff]
  %v1232 = vld [vmem:[%s9 + $0x30] sm:$0xff]
  %v1233 = vld [vmem:[%s9 + $0x38] sm:$0xff]
  %v1235 = vsel %vm92, %v1209, 0
  %1237 = vmatprep.subr.mxu0 0.0
  %1238 = vmatpush1.msra.mxu0 0.0
  %1239 = vmatprep.subr.mxu0 0.0
  %1240 = vmatpush1.msra.mxu0 0.0
  %1241 = vmatprep.subr.mxu0 0.0
  %1242 = vmatpush1.msra.mxu0 0.0
  %1243 = vmatprep.subr.mxu0 0.0
  %1244 = vmatpush1.msra.mxu0 0.0
  %1245 = vmatprep.subr.mxu0 0.0
  %1246 = vmatpush1.msra.mxu0 0.0
  %1247 = vmatprep.subr.mxu0 0.0
  %1248 = vmatpush1.msra.mxu0 0.0
  %1249 = vmatprep.subr.mxu0 0.0
  %1250 = vmatpush1.msra.mxu0 0.0
  %1251 = vmatprep.subr.mxu0 0.0
  %1252 = vmatpush1.msra.mxu0 0.0
  %1253 = vmatprep.subr.mxu0 0.0
  %1254 = vmatpush1.msra.mxu0 %v1233
  %1255 = vmatprep.subr.mxu0 0.0
  %1256 = vmatpush1.msra.mxu0 %v1232
  %1257 = vmatprep.subr.mxu0 0.0
  %1258 = vmatpush1.msra.mxu0 %v1231
  %1259 = vmatprep.subr.mxu0 0.0
  %1260 = vmatpush1.msra.mxu0 %v1230
  %1261 = vmatprep.subr.mxu0 0.0
  %1262 = vmatpush1.msra.mxu0 %v1229
  %1263 = vmatprep.subr.mxu0 0.0
  %1264 = vmatpush1.msra.mxu0 %v1228
  %1265 = vmatprep.subr.mxu0 0.0
  %1266 = vmatpush1.msra.mxu0 %v1227
  %1267 = vmatprep.subr.mxu0 0.0
  %1268 = vmatpush1.msra.mxu0 %v1226
  %1269 = vmatprep.subr.mxu0 0.0
  %1270 = vmatpush2.msra.mxu0 0.0
  %1271 = vmatprep.subr.mxu0 0.0
  %1272 = vmatpush2.msra.mxu0 0.0
  %1273 = vmatprep.subr.mxu0 0.0
  %1274 = vmatpush2.msra.mxu0 0.0
  %1275 = vmatprep.subr.mxu0 0.0
  %1276 = vmatpush2.msra.mxu0 0.0
  %1277 = vmatprep.subr.mxu0 0.0
  %1278 = vmatpush2.msra.mxu0 0.0
  %1279 = vmatprep.subr.mxu0 0.0
  %1280 = vmatpush2.msra.mxu0 0.0
  %1281 = vmatprep.subr.mxu0 0.0
  %1282 = vmatpush2.msra.mxu0 0.0
  %1283 = vmatprep.subr.mxu0 0.0
  %1284 = vmatpush2.msra.mxu0 0.0
  %1285 = vmatprep.subr.mxu0 0.0
  %1286 = vmatpush2.msra.mxu0 0.0
  %1287 = vmatprep.subr.mxu0 0.0
  %1288 = vmatpush2.msra.mxu0 0.0
  %1289 = vmatprep.subr.mxu0 0.0
  %1290 = vmatpush2.msra.mxu0 0.0
  %1291 = vmatprep.subr.mxu0 0.0
  %1292 = vmatpush2.msra.mxu0 0.0
  %1293 = vmatprep.subr.mxu0 0.0
  %1294 = vmatpush2.msra.mxu0 0.0
  %1295 = vmatprep.subr.mxu0 0.0
  %1296 = vmatpush2.msra.mxu0 0.0
  %1297 = vmatprep.subr.mxu0 0.0
  %1298 = vmatpush2.msra.mxu0 0.0
  %1299 = vmatprep.subr.mxu0 0.0
  %1300 = vmatpush2.msra.mxu0 0.0
  %1301 = vmatprep.mubr.f32.mxu0 0.0
  %1302 = vmatmul.mubr.f32.gmra.mxu0 %v1235
  %v1303 = vpop.f32.mrf.mxu0
  %v1304 = vadd.f32 0.0, %v1303
  %v1305 = vpop.f32.mrf.mxu0
  %1306 = vdwg.mxu0
  %v1308 = vsel %vm92, %v1216, 0
  %1310 = vmatprep.subr.mxu0 0.0
  %1311 = vmatpush1.msra.mxu0 0.0
  %1312 = vmatprep.subr.mxu0 0.0
  %1313 = vmatpush1.msra.mxu0 0.0
  %1314 = vmatprep.subr.mxu0 0.0
  %1315 = vmatpush1.msra.mxu0 0.0
  %1316 = vmatprep.subr.mxu0 0.0
  %1317 = vmatpush1.msra.mxu0 0.0
  %1318 = vmatprep.subr.mxu0 0.0
  %1319 = vmatpush1.msra.mxu0 0.0
  %1320 = vmatprep.subr.mxu0 0.0
  %1321 = vmatpush1.msra.mxu0 0.0
  %1322 = vmatprep.subr.mxu0 0.0
  %1323 = vmatpush1.msra.mxu0 0.0
  %1324 = vmatprep.subr.mxu0 0.0
  %1325 = vmatpush1.msra.mxu0 0.0
  %1326 = vmatprep.subr.mxu0 0.0
  %1327 = vmatpush1.msra.mxu0 %v1233
  %1328 = vmatprep.subr.mxu0 0.0
  %1329 = vmatpush1.msra.mxu0 %v1232
  %1330 = vmatprep.subr.mxu0 0.0
  %1331 = vmatpush1.msra.mxu0 %v1231
  %1332 = vmatprep.subr.mxu0 0.0
  %1333 = vmatpush1.msra.mxu0 %v1230
  %1334 = vmatprep.subr.mxu0 0.0
  %1335 = vmatpush1.msra.mxu0 %v1229
  %1336 = vmatprep.subr.mxu0 0.0
  %1337 = vmatpush1.msra.mxu0 %v1228
  %1338 = vmatprep.subr.mxu0 0.0
  %1339 = vmatpush1.msra.mxu0 %v1227
  %1340 = vmatprep.subr.mxu0 0.0
  %1341 = vmatpush1.msra.mxu0 %v1226
  %1342 = vmatprep.subr.mxu0 0.0
  %1343 = vmatpush2.msra.mxu0 0.0
  %1344 = vmatprep.subr.mxu0 0.0
  %1345 = vmatpush2.msra.mxu0 0.0
  %1346 = vmatprep.subr.mxu0 0.0
  %1347 = vmatpush2.msra.mxu0 0.0
  %1348 = vmatprep.subr.mxu0 0.0
  %1349 = vmatpush2.msra.mxu0 0.0
  %1350 = vmatprep.subr.mxu0 0.0
  %1351 = vmatpush2.msra.mxu0 0.0
  %1352 = vmatprep.subr.mxu0 0.0
  %1353 = vmatpush2.msra.mxu0 0.0
  %1354 = vmatprep.subr.mxu0 0.0
  %1355 = vmatpush2.msra.mxu0 0.0
  %1356 = vmatprep.subr.mxu0 0.0
  %1357 = vmatpush2.msra.mxu0 0.0
  %1358 = vmatprep.subr.mxu0 0.0
  %1359 = vmatpush2.msra.mxu0 0.0
  %1360 = vmatprep.subr.mxu0 0.0
  %1361 = vmatpush2.msra.mxu0 0.0
  %1362 = vmatprep.subr.mxu0 0.0
  %1363 = vmatpush2.msra.mxu0 0.0
  %1364 = vmatprep.subr.mxu0 0.0
  %1365 = vmatpush2.msra.mxu0 0.0
  %1366 = vmatprep.subr.mxu0 0.0
  %1367 = vmatpush2.msra.mxu0 0.0
  %1368 = vmatprep.subr.mxu0 0.0
  %1369 = vmatpush2.msra.mxu0 0.0
  %1370 = vmatprep.subr.mxu0 0.0
  %1371 = vmatpush2.msra.mxu0 0.0
  %1372 = vmatprep.subr.mxu0 0.0
  %1373 = vmatpush2.msra.mxu0 0.0
  %1374 = vmatprep.mubr.f32.mxu0 0.0
  %1375 = vmatmul.mubr.f32.gmra.mxu0 %v1308
  %v1376 = vpop.f32.mrf.mxu0
  %v1377 = vadd.f32 0.0, %v1376
  %v1378 = vpop.f32.mrf.mxu0
  %1379 = vdwg.mxu0
  %v1380 = vld [vmem:[%s10] sm:$0xff]
  %v1381 = vld [vmem:[%s10 + $0x8] sm:$0xff]
  %v1382 = vld [vmem:[%s10 + $0x10] sm:$0xff]
  %v1383 = vld [vmem:[%s10 + $0x18] sm:$0xff]
  %v1385 = vsel %vm92, %v1380, 0
  %v1388 = vsel %vm92, %v1381, 0
  %v1391 = vsel %vm92, %v1382, 0
  %v1394 = vsel %vm92, %v1383, 0
  %v1397 = vsel %vm92, %v1218, 0
  %v1400 = vsel %vm92, %v1219, 0
  %v1403 = vsel %vm92, %v1220, 0
  %v1406 = vsel %vm92, %v1221, 0
  %v1409 = vsel %vm92, %v1222, 0
  %v1412 = vsel %vm92, %v1223, 0
  %v1415 = vsel %vm92, %v1224, 0
  %v1418 = vsel %vm92, %v1225, 0
  %1420 = vmatprep.subr.mxu0 0.0
  %1421 = vmatpush1.xpose.msra.mxu0 0.0
  %1422 = vmatprep.subr.mxu0 0.0
  %1423 = vmatpush1.xpose.msra.mxu0 0.0
  %1424 = vmatprep.subr.mxu0 0.0
  %1425 = vmatpush1.xpose.msra.mxu0 0.0
  %1426 = vmatprep.subr.mxu0 0.0
  %1427 = vmatpush1.xpose.msra.mxu0 0.0
  %1428 = vmatprep.subr.mxu0 0.0
  %1429 = vmatpush1.xpose.msra.mxu0 0.0
  %1430 = vmatprep.subr.mxu0 0.0
  %1431 = vmatpush1.xpose.msra.mxu0 0.0
  %1432 = vmatprep.subr.mxu0 0.0
  %1433 = vmatpush1.xpose.msra.mxu0 0.0
  %1434 = vmatprep.subr.mxu0 0.0
  %1435 = vmatpush1.xpose.msra.mxu0 0.0
  %1436 = vmatprep.subr.mxu0 0.0
  %1437 = vmatpush1.xpose.msra.mxu0 %v1418
  %1438 = vmatprep.subr.mxu0 0.0
  %1439 = vmatpush1.xpose.msra.mxu0 %v1415
  %1440 = vmatprep.subr.mxu0 0.0
  %1441 = vmatpush1.xpose.msra.mxu0 %v1412
  %1442 = vmatprep.subr.mxu0 0.0
  %1443 = vmatpush1.xpose.msra.mxu0 %v1409
  %1444 = vmatprep.subr.mxu0 0.0
  %1445 = vmatpush1.xpose.msra.mxu0 %v1406
  %1446 = vmatprep.subr.mxu0 0.0
  %1447 = vmatpush1.xpose.msra.mxu0 %v1403
  %1448 = vmatprep.subr.mxu0 0.0
  %1449 = vmatpush1.xpose.msra.mxu0 %v1400
  %1450 = vmatprep.subr.mxu0 0.0
  %1451 = vmatpush1.xpose.msra.mxu0 %v1397
  %1452 = vmatprep.subr.mxu0 0.0
  %1453 = vmatpush2.xpose.msra.mxu0 0.0
  %1454 = vmatprep.subr.mxu0 0.0
  %1455 = vmatpush2.xpose.msra.mxu0 0.0
  %1456 = vmatprep.subr.mxu0 0.0
  %1457 = vmatpush2.xpose.msra.mxu0 0.0
  %1458 = vmatprep.subr.mxu0 0.0
  %1459 = vmatpush2.xpose.msra.mxu0 0.0
  %1460 = vmatprep.subr.mxu0 0.0
  %1461 = vmatpush2.xpose.msra.mxu0 0.0
  %1462 = vmatprep.subr.mxu0 0.0
  %1463 = vmatpush2.xpose.msra.mxu0 0.0
  %1464 = vmatprep.subr.mxu0 0.0
  %1465 = vmatpush2.xpose.msra.mxu0 0.0
  %1466 = vmatprep.subr.mxu0 0.0
  %1467 = vmatpush2.xpose.msra.mxu0 0.0
  %1468 = vmatprep.subr.mxu0 0.0
  %1469 = vmatpush2.xpose.msra.mxu0 0.0
  %1470 = vmatprep.subr.mxu0 0.0
  %1471 = vmatpush2.xpose.msra.mxu0 0.0
  %1472 = vmatprep.subr.mxu0 0.0
  %1473 = vmatpush2.xpose.msra.mxu0 0.0
  %1474 = vmatprep.subr.mxu0 0.0
  %1475 = vmatpush2.xpose.msra.mxu0 0.0
  %1476 = vmatprep.subr.mxu0 0.0
  %1477 = vmatpush2.xpose.msra.mxu0 0.0
  %1478 = vmatprep.subr.mxu0 0.0
  %1479 = vmatpush2.xpose.msra.mxu0 0.0
  %1480 = vmatprep.subr.mxu0 0.0
  %1481 = vmatpush2.xpose.msra.mxu0 0.0
  %1482 = vmatprep.subr.mxu0 0.0
  %1483 = vmatpush2.xpose.msra.mxu0 0.0
  %1484 = vmatprep.mubr.f32.mxu0 0.0
  %1485 = vmatmul.mubr.f32.gmra.mxu0 %v1385
  %v1486 = vpop.f32.mrf.mxu0
  %v1487 = vadd.f32 0.0, %v1486
  %v1488 = vpop.f32.mrf.mxu0
  %1489 = vmatprep.mubr.f32.mxu0 0.0
  %1490 = vmatmul.mubr.f32.gmra.mxu0 %v1388
  %v1491 = vpop.f32.mrf.mxu0
  %v1492 = vadd.f32 0.0, %v1491
  %v1493 = vpop.f32.mrf.mxu0
  %1494 = vmatprep.mubr.f32.mxu0 0.0
  %1495 = vmatmul.mubr.f32.gmra.mxu0 %v1391
  %v1496 = vpop.f32.mrf.mxu0
  %v1497 = vadd.f32 0.0, %v1496
  %v1498 = vpop.f32.mrf.mxu0
  %1499 = vmatprep.mubr.f32.mxu0 0.0
  %1500 = vmatmul.mubr.f32.gmra.mxu0 %v1394
  %v1501 = vpop.f32.mrf.mxu0
  %v1502 = vadd.f32 0.0, %v1501
  %v1503 = vpop.f32.mrf.mxu0
  %1504 = vdwg.mxu0
  %v1505 = vld [vmem:[%s3] sm:$0xff]
  %v1506 = vld [vmem:[%s3 + $0x8] sm:$0xff]
  %v1507 = vld [vmem:[%s3 + $0x10] sm:$0xff]
  %v1508 = vld [vmem:[%s3 + $0x18] sm:$0xff]
  %v1509 = vld [vmem:[%s3 + $0x20] sm:$0xff]
  %v1510 = vld [vmem:[%s3 + $0x28] sm:$0xff]
  %v1511 = vld [vmem:[%s3 + $0x30] sm:$0xff]
  %v1512 = vld [vmem:[%s11] sm:$0xff]
  %v1513 = vld [vmem:[%s11 + $0x8] sm:$0xff]
  %v1514 = vld [vmem:[%s11 + $0x10] sm:$0xff]
  %v1515 = vld [vmem:[%s11 + $0x18] sm:$0xff]
  %v1516 = vld [vmem:[%s13] sm:$0x1]
  %v1518 = vlaneseq
  %v1519 = vshrl.u32 %v1518, 7
  %v1520 = vsub.s32 0, %v1519
  %v1521 = vrot.slane %v1516, %v1520
  %v1524 = vsel %vm1217, %v1505, 0
  %v1527 = vsel %vm1217, %v1506, 0
  %v1530 = vsel %vm1217, %v1507, 0
  %v1533 = vsel %vm1217, %v1508, 0
  %v1536 = vsel %vm1217, %v1509, 0
  %v1539 = vsel %vm1217, %v1510, 0
  %v1542 = vsel %vm1217, %v1511, 0
  %1544 = vmatprep.subr.mxu0 0.0
  %1545 = vmatpush1.msra.mxu0 0.0
  %1546 = vmatprep.subr.mxu0 0.0
  %1547 = vmatpush1.msra.mxu0 0.0
  %1548 = vmatprep.subr.mxu0 0.0
  %1549 = vmatpush1.msra.mxu0 0.0
  %1550 = vmatprep.subr.mxu0 0.0
  %1551 = vmatpush1.msra.mxu0 0.0
  %1552 = vmatprep.subr.mxu0 0.0
  %1553 = vmatpush1.msra.mxu0 0.0
  %1554 = vmatprep.subr.mxu0 0.0
  %1555 = vmatpush1.msra.mxu0 0.0
  %1556 = vmatprep.subr.mxu0 0.0
  %1557 = vmatpush1.msra.mxu0 0.0
  %1558 = vmatprep.subr.mxu0 0.0
  %1559 = vmatpush1.msra.mxu0 0.0
  %1560 = vmatprep.subr.mxu0 0.0
  %1561 = vmatpush1.msra.mxu0 0.0
  %1562 = vmatprep.subr.mxu0 0.0
  %1563 = vmatpush1.msra.mxu0 0.0
  %1564 = vmatprep.subr.mxu0 0.0
  %1565 = vmatpush1.msra.mxu0 0.0
  %1566 = vmatprep.subr.mxu0 0.0
  %1567 = vmatpush1.msra.mxu0 0.0
  %1568 = vmatprep.subr.mxu0 0.0
  %1569 = vmatpush1.msra.mxu0 %v1515
  %1570 = vmatprep.subr.mxu0 0.0
  %1571 = vmatpush1.msra.mxu0 %v1514
  %1572 = vmatprep.subr.mxu0 0.0
  %1573 = vmatpush1.msra.mxu0 %v1513
  %1574 = vmatprep.subr.mxu0 0.0
  %1575 = vmatpush1.msra.mxu0 %v1512
  %1576 = vmatprep.subr.mxu0 0.0
  %1577 = vmatpush2.msra.mxu0 0.0
  %1578 = vmatprep.subr.mxu0 0.0
  %1579 = vmatpush2.msra.mxu0 0.0
  %1580 = vmatprep.subr.mxu0 0.0
  %1581 = vmatpush2.msra.mxu0 0.0
  %1582 = vmatprep.subr.mxu0 0.0
  %1583 = vmatpush2.msra.mxu0 0.0
  %1584 = vmatprep.subr.mxu0 0.0
  %1585 = vmatpush2.msra.mxu0 0.0
  %1586 = vmatprep.subr.mxu0 0.0
  %1587 = vmatpush2.msra.mxu0 0.0
  %1588 = vmatprep.subr.mxu0 0.0
  %1589 = vmatpush2.msra.mxu0 0.0
  %1590 = vmatprep.subr.mxu0 0.0
  %1591 = vmatpush2.msra.mxu0 0.0
  %1592 = vmatprep.subr.mxu0 0.0
  %1593 = vmatpush2.msra.mxu0 0.0
  %1594 = vmatprep.subr.mxu0 0.0
  %1595 = vmatpush2.msra.mxu0 0.0
  %1596 = vmatprep.subr.mxu0 0.0
  %1597 = vmatpush2.msra.mxu0 0.0
  %1598 = vmatprep.subr.mxu0 0.0
  %1599 = vmatpush2.msra.mxu0 0.0
  %1600 = vmatprep.subr.mxu0 0.0
  %1601 = vmatpush2.msra.mxu0 0.0
  %1602 = vmatprep.subr.mxu0 0.0
  %1603 = vmatpush2.msra.mxu0 0.0
  %1604 = vmatprep.subr.mxu0 0.0
  %1605 = vmatpush2.msra.mxu0 0.0
  %1606 = vmatprep.subr.mxu0 0.0
  %1607 = vmatpush2.msra.mxu0 0.0
  %1608 = vmatprep.mubr.f32.mxu0 0.0
  %1609 = vmatmul.mubr.f32.gmra.mxu0 %v1524
  %v1610 = vpop.f32.mrf.mxu0
  %v1611 = vadd.f32 %v1521, %v1610
  %v1612 = vpop.f32.mrf.mxu0
  %1613 = vmatprep.mubr.f32.mxu0 0.0
  %1614 = vmatmul.mubr.f32.gmra.mxu0 %v1527
  %v1615 = vpop.f32.mrf.mxu0
  %v1616 = vadd.f32 %v1521, %v1615
  %v1617 = vpop.f32.mrf.mxu0
  %1618 = vmatprep.mubr.f32.mxu0 0.0
  %1619 = vmatmul.mubr.f32.gmra.mxu0 %v1530
  %v1620 = vpop.f32.mrf.mxu0
  %v1621 = vadd.f32 %v1521, %v1620
  %v1622 = vpop.f32.mrf.mxu0
  %1623 = vmatprep.mubr.f32.mxu0 0.0
  %1624 = vmatmul.mubr.f32.gmra.mxu0 %v1533
  %v1625 = vpop.f32.mrf.mxu0
  %v1626 = vadd.f32 %v1521, %v1625
  %v1627 = vpop.f32.mrf.mxu0
  %1628 = vmatprep.mubr.f32.mxu0 0.0
  %1629 = vmatmul.mubr.f32.gmra.mxu0 %v1536
  %v1630 = vpop.f32.mrf.mxu0
  %v1631 = vadd.f32 %v1521, %v1630
  %v1632 = vpop.f32.mrf.mxu0
  %1633 = vmatprep.mubr.f32.mxu0 0.0
  %1634 = vmatmul.mubr.f32.gmra.mxu0 %v1539
  %v1635 = vpop.f32.mrf.mxu0
  %v1636 = vadd.f32 %v1521, %v1635
  %v1637 = vpop.f32.mrf.mxu0
  %1638 = vmatprep.mubr.f32.mxu0 0.0
  %1639 = vmatmul.mubr.f32.gmra.mxu0 %v1542
  %v1640 = vpop.f32.mrf.mxu0
  %v1641 = vadd.f32 %v1521, %v1640
  %v1642 = vpop.f32.mrf.mxu0
  %1643 = vdwg.mxu0
  %v1644 = vld [vmem:[%s2] sm:$0xff]
  %v1645 = vld [vmem:[%s12] sm:$0xff]
  %v1646 = vld [vmem:[%s12 + $0x8] sm:$0xff]
  %v1647 = vld [vmem:[%s12 + $0x10] sm:$0xff]
  %v1648 = vld [vmem:[%s12 + $0x18] sm:$0xff]
  %v1649 = vld [vmem:[%s12 + $0x20] sm:$0xff]
  %v1650 = vld [vmem:[%s12 + $0x28] sm:$0xff]
  %v1651 = vld [vmem:[%s12 + $0x30] sm:$0xff]
  %v1652 = vld [vmem:[%s12 + $0x38] sm:$0xff]
  %v1653 = vld [vmem:[%s14] sm:$0xff]
  %v1654 = vld [vmem:[%s14 + $0x8] sm:$0xff]
  %v1655 = vld [vmem:[%s14 + $0x10] sm:$0xff]
  %v1656 = vld [vmem:[%s14 + $0x18] sm:$0xff]
  %v1657 = vld [vmem:[%s14 + $0x20] sm:$0xff]
  %v1658 = vld [vmem:[%s14 + $0x28] sm:$0xff]
  %v1659 = vld [vmem:[%s14 + $0x30] sm:$0xff]
  %v1660 = vld [vmem:[%s14 + $0x38] sm:$0xff]
  %v1661 = vld [vmem:[%s14 + $0x40] sm:$0xff]
  %v1662 = vld [vmem:[%s14 + $0x48] sm:$0xff]
  %v1663 = vld [vmem:[%s14 + $0x50] sm:$0xff]
  %v1664 = vld [vmem:[%s14 + $0x58] sm:$0xff]
  %1666 = vrot.lane.b32.xlu0 %v1304, 32
  %v1667 = vpop.permute.xlu0 %1666
  %v1669 = vsel %vm1217, 0.0, %v1667
  %v1671 = vsel %vm92, %v1669, 0
  %1673 = vmatprep.subr.mxu0 0.0
  %1674 = vmatpush1.msra.mxu0 0.0
  %1675 = vmatprep.subr.mxu0 0.0
  %1676 = vmatpush1.msra.mxu0 0.0
  %1677 = vmatprep.subr.mxu0 0.0
  %1678 = vmatpush1.msra.mxu0 0.0
  %1679 = vmatprep.subr.mxu0 0.0
  %1680 = vmatpush1.msra.mxu0 0.0
  %1681 = vmatprep.subr.mxu0 0.0
  %1682 = vmatpush1.msra.mxu0 0.0
  %1683 = vmatprep.subr.mxu0 0.0
  %1684 = vmatpush1.msra.mxu0 0.0
  %1685 = vmatprep.subr.mxu0 0.0
  %1686 = vmatpush1.msra.mxu0 0.0
  %1687 = vmatprep.subr.mxu0 0.0
  %1688 = vmatpush1.msra.mxu0 0.0
  %1689 = vmatprep.subr.mxu0 0.0
  %1690 = vmatpush1.msra.mxu0 %v1652
  %1691 = vmatprep.subr.mxu0 0.0
  %1692 = vmatpush1.msra.mxu0 %v1651
  %1693 = vmatprep.subr.mxu0 0.0
  %1694 = vmatpush1.msra.mxu0 %v1650
  %1695 = vmatprep.subr.mxu0 0.0
  %1696 = vmatpush1.msra.mxu0 %v1649
  %1697 = vmatprep.subr.mxu0 0.0
  %1698 = vmatpush1.msra.mxu0 %v1648
  %1699 = vmatprep.subr.mxu0 0.0
  %1700 = vmatpush1.msra.mxu0 %v1647
  %1701 = vmatprep.subr.mxu0 0.0
  %1702 = vmatpush1.msra.mxu0 %v1646
  %1703 = vmatprep.subr.mxu0 0.0
  %1704 = vmatpush1.msra.mxu0 %v1645
  %1705 = vmatprep.subr.mxu0 0.0
  %1706 = vmatpush2.msra.mxu0 0.0
  %1707 = vmatprep.subr.mxu0 0.0
  %1708 = vmatpush2.msra.mxu0 0.0
  %1709 = vmatprep.subr.mxu0 0.0
  %1710 = vmatpush2.msra.mxu0 0.0
  %1711 = vmatprep.subr.mxu0 0.0
  %1712 = vmatpush2.msra.mxu0 0.0
  %1713 = vmatprep.subr.mxu0 0.0
  %1714 = vmatpush2.msra.mxu0 0.0
  %1715 = vmatprep.subr.mxu0 0.0
  %1716 = vmatpush2.msra.mxu0 0.0
  %1717 = vmatprep.subr.mxu0 0.0
  %1718 = vmatpush2.msra.mxu0 0.0
  %1719 = vmatprep.subr.mxu0 0.0
  %1720 = vmatpush2.msra.mxu0 0.0
  %1721 = vmatprep.subr.mxu0 0.0
  %1722 = vmatpush2.msra.mxu0 0.0
  %1723 = vmatprep.subr.mxu0 0.0
  %1724 = vmatpush2.msra.mxu0 0.0
  %1725 = vmatprep.subr.mxu0 0.0
  %1726 = vmatpush2.msra.mxu0 0.0
  %1727 = vmatprep.subr.mxu0 0.0
  %1728 = vmatpush2.msra.mxu0 0.0
  %1729 = vmatprep.subr.mxu0 0.0
  %1730 = vmatpush2.msra.mxu0 0.0
  %1731 = vmatprep.subr.mxu0 0.0
  %1732 = vmatpush2.msra.mxu0 0.0
  %1733 = vmatprep.subr.mxu0 0.0
  %1734 = vmatpush2.msra.mxu0 0.0
  %1735 = vmatprep.subr.mxu0 0.0
  %1736 = vmatpush2.msra.mxu0 0.0
  %1737 = vmatprep.mubr.f32.mxu0 0.0
  %1738 = vmatmul.mubr.f32.gmra.mxu0 %v1671
  %v1739 = vpop.f32.mrf.mxu0
  %v1740 = vadd.f32 0.0, %v1739
  %v1741 = vpop.f32.mrf.mxu0
  %1742 = vdwg.mxu0
  %v1743 = vadd.f32 %v1611, %v1740
  %v1744 = vxor.u32 %v1743, 2147483648
  %v1745 = vmul.f32 %v1744, 1.442695
  %v1746 = vpow.pop %v1745
  %v1747 = vadd.f32 %v1746, 1.0
  %v1748 = vrcp.pop %v1747
  %v1749 = vmul.f32 1.0, %v1748
  %v1750 = vtanh.pop %v1743
  %1752 = vrot.lane.b32.xlu0 %v1377, 32
  %v1753 = vpop.permute.xlu0 %1752
  %v1755 = vmul.f32 %v1749, %v1753
  %1757 = vrot.lane.b32.xlu0 %v1750, 32
  %v1758 = vpop.permute.xlu0 %1757
  %v1760 = vmul.f32 %v1749, %v1758
  %1762 = vrot.lane.b32.xlu0 %v1760, 32
  %v1763 = vpop.permute.xlu0 %1762
  %v1765 = vadd.f32 %v1755, %v1763
  %v1766 = vtanh.pop %v1765
  %1768 = vrot.lane.b32.xlu0 %v1766, 32
  %v1769 = vpop.permute.xlu0 %1768
  %v1771 = vmul.f32 %v1749, %v1769
  %1773 = vrot.lane.b32.xlu0 %v1771, 64
  %v1774 = vpop.permute.xlu0 %1773
  %v1775 = vsel %vm1217, %v1774, 0
  %1777 = vmatprep.subr.mxu0 0.0
  %1778 = vmatpush1.msra.mxu0 0.0
  %1779 = vmatprep.subr.mxu0 0.0
  %1780 = vmatpush1.msra.mxu0 0.0
  %1781 = vmatprep.subr.mxu0 0.0
  %1782 = vmatpush1.msra.mxu0 0.0
  %1783 = vmatprep.subr.mxu0 0.0
  %1784 = vmatpush1.msra.mxu0 0.0
  %1785 = vmatprep.subr.mxu0 0.0
  %1786 = vmatpush1.msra.mxu0 0.0
  %1787 = vmatprep.subr.mxu0 0.0
  %1788 = vmatpush1.msra.mxu0 0.0
  %1789 = vmatprep.subr.mxu0 0.0
  %1790 = vmatpush1.msra.mxu0 0.0
  %1791 = vmatprep.subr.mxu0 0.0
  %1792 = vmatpush1.msra.mxu0 0.0
  %1793 = vmatprep.subr.mxu0 0.0
  %1794 = vmatpush1.msra.mxu0 0.0
  %1795 = vmatprep.subr.mxu0 0.0
  %1796 = vmatpush1.msra.mxu0 0.0
  %1797 = vmatprep.subr.mxu0 0.0
  %1798 = vmatpush1.msra.mxu0 0.0
  %1799 = vmatprep.subr.mxu0 0.0
  %1800 = vmatpush1.msra.mxu0 0.0
  %1801 = vmatprep.subr.mxu0 0.0
  %1802 = vmatpush1.msra.mxu0 %v1502
  %1803 = vmatprep.subr.mxu0 0.0
  %1804 = vmatpush1.msra.mxu0 %v1497
  %1805 = vmatprep.subr.mxu0 0.0
  %1806 = vmatpush1.msra.mxu0 %v1492
  %1807 = vmatprep.subr.mxu0 0.0
  %1808 = vmatpush1.msra.mxu0 %v1487
  %1809 = vmatprep.subr.mxu0 0.0
  %1810 = vmatpush2.msra.mxu0 0.0
  %1811 = vmatprep.subr.mxu0 0.0
  %1812 = vmatpush2.msra.mxu0 0.0
  %1813 = vmatprep.subr.mxu0 0.0
  %1814 = vmatpush2.msra.mxu0 0.0
  %1815 = vmatprep.subr.mxu0 0.0
  %1816 = vmatpush2.msra.mxu0 0.0
  %1817 = vmatprep.subr.mxu0 0.0
  %1818 = vmatpush2.msra.mxu0 0.0
  %1819 = vmatprep.subr.mxu0 0.0
  %1820 = vmatpush2.msra.mxu0 0.0
  %1821 = vmatprep.subr.mxu0 0.0
  %1822 = vmatpush2.msra.mxu0 0.0
  %1823 = vmatprep.subr.mxu0 0.0
  %1824 = vmatpush2.msra.mxu0 0.0
  %1825 = vmatprep.subr.mxu0 0.0
  %1826 = vmatpush2.msra.mxu0 0.0
  %1827 = vmatprep.subr.mxu0 0.0
  %1828 = vmatpush2.msra.mxu0 0.0
  %1829 = vmatprep.subr.mxu0 0.0
  %1830 = vmatpush2.msra.mxu0 0.0
  %1831 = vmatprep.subr.mxu0 0.0
  %1832 = vmatpush2.msra.mxu0 0.0
  %1833 = vmatprep.subr.mxu0 0.0
  %1834 = vmatpush2.msra.mxu0 0.0
  %1835 = vmatprep.subr.mxu0 0.0
  %1836 = vmatpush2.msra.mxu0 0.0
  %1837 = vmatprep.subr.mxu0 0.0
  %1838 = vmatpush2.msra.mxu0 0.0
  %1839 = vmatprep.subr.mxu0 0.0
  %1840 = vmatpush2.msra.mxu0 0.0
  %1841 = vmatprep.mubr.f32.mxu0 0.0
  %1842 = vmatmul.mubr.f32.gmra.mxu0 %v1775
  %v1843 = vpop.f32.mrf.mxu0
  %v1844 = vadd.f32 %v1644, %v1843
  %v1845 = vpop.f32.mrf.mxu0
  %1846 = vdwg.mxu0
  %v1847 = vsel %vm92, %v1844, -inf
  %1848 = vmax.xlane.f32.xlu0 %v1847
  %v1849 = vpop.xlane.xlu0 %1848
  %v1850 = vsub.f32 %v1844, %v1849
  %v1851 = vmul.f32 %v1850, 1.442695
  %v1852 = vpow.pop %v1851
  %v1853 = vsel %vm92, %v1852, 0.0
  %1854 = vadd.xlane.f32.xlu0 %v1853
  %v1855 = vpop.xlane.xlu0 %1854
  %v1856 = vrcp.pop %v1855
  %v1857 = vmul.f32 %v1852, %v1856
  %v1859 = vsel %vm92, %v1857, 0
  %1861 = vmatprep.subr.mxu0 0.0
  %1862 = vmatpush1.msra.mxu0 0.0
  %1863 = vmatprep.subr.mxu0 0.0
  %1864 = vmatpush1.msra.mxu0 0.0
  %1865 = vmatprep.subr.mxu0 0.0
  %1866 = vmatpush1.msra.mxu0 0.0
  %1867 = vmatprep.subr.mxu0 0.0
  %1868 = vmatpush1.msra.mxu0 0.0
  %1869 = vmatprep.subr.mxu0 0.0
  %1870 = vmatpush1.msra.mxu0 0.0
  %1871 = vmatprep.subr.mxu0 0.0
  %1872 = vmatpush1.msra.mxu0 0.0
  %1873 = vmatprep.subr.mxu0 0.0
  %1874 = vmatpush1.msra.mxu0 0.0
  %1875 = vmatprep.subr.mxu0 0.0
  %1876 = vmatpush1.msra.mxu0 0.0
  %1877 = vmatprep.subr.mxu0 0.0
  %1878 = vmatpush1.msra.mxu0 %v1225
  %1879 = vmatprep.subr.mxu0 0.0
  %1880 = vmatpush1.msra.mxu0 %v1224
  %1881 = vmatprep.subr.mxu0 0.0
  %1882 = vmatpush1.msra.mxu0 %v1223
  %1883 = vmatprep.subr.mxu0 0.0
  %1884 = vmatpush1.msra.mxu0 %v1222
  %1885 = vmatprep.subr.mxu0 0.0
  %1886 = vmatpush1.msra.mxu0 %v1221
  %1887 = vmatprep.subr.mxu0 0.0
  %1888 = vmatpush1.msra.mxu0 %v1220
  %1889 = vmatprep.subr.mxu0 0.0
  %1890 = vmatpush1.msra.mxu0 %v1219
  %1891 = vmatprep.subr.mxu0 0.0
  %1892 = vmatpush1.msra.mxu0 %v1218
  %1893 = vmatprep.subr.mxu0 0.0
  %1894 = vmatpush2.msra.mxu0 0.0
  %1895 = vmatprep.subr.mxu0 0.0
  %1896 = vmatpush2.msra.mxu0 0.0
  %1897 = vmatprep.subr.mxu0 0.0
  %1898 = vmatpush2.msra.mxu0 0.0
  %1899 = vmatprep.subr.mxu0 0.0
  %1900 = vmatpush2.msra.mxu0 0.0
  %1901 = vmatprep.subr.mxu0 0.0
  %1902 = vmatpush2.msra.mxu0 0.0
  %1903 = vmatprep.subr.mxu0 0.0
  %1904 = vmatpush2.msra.mxu0 0.0
  %1905 = vmatprep.subr.mxu0 0.0
  %1906 = vmatpush2.msra.mxu0 0.0
  %1907 = vmatprep.subr.mxu0 0.0
  %1908 = vmatpush2.msra.mxu0 0.0
  %1909 = vmatprep.subr.mxu0 0.0
  %1910 = vmatpush2.msra.mxu0 0.0
  %1911 = vmatprep.subr.mxu0 0.0
  %1912 = vmatpush2.msra.mxu0 0.0
  %1913 = vmatprep.subr.mxu0 0.0
  %1914 = vmatpush2.msra.mxu0 0.0
  %1915 = vmatprep.subr.mxu0 0.0
  %1916 = vmatpush2.msra.mxu0 0.0
  %1917 = vmatprep.subr.mxu0 0.0
  %1918 = vmatpush2.msra.mxu0 0.0
  %1919 = vmatprep.subr.mxu0 0.0
  %1920 = vmatpush2.msra.mxu0 0.0
  %1921 = vmatprep.subr.mxu0 0.0
  %1922 = vmatpush2.msra.mxu0 0.0
  %1923 = vmatprep.subr.mxu0 0.0
  %1924 = vmatpush2.msra.mxu0 0.0
  %1925 = vmatprep.mubr.f32.mxu0 0.0
  %1926 = vmatmul.mubr.f32.gmra.mxu0 %v1859
  %v1927 = vpop.f32.mrf.mxu0
  %v1928 = vadd.f32 0.0, %v1927
  %v1929 = vpop.f32.mrf.mxu0
  %1930 = vdwg.mxu0
  %v1931 = vsel %vm92, %v1928, %v1771
  %vm1932 = vcmask 785408
  %v1934 = vsel %vm1932, %v1931, 0
  %1936 = vmatprep.subr.mxu0 0.0
  %1937 = vmatpush1.msra.mxu0 0.0
  %1938 = vmatprep.subr.mxu0 0.0
  %1939 = vmatpush1.msra.mxu0 0.0
  %1940 = vmatprep.subr.mxu0 0.0
  %1941 = vmatpush1.msra.mxu0 0.0
  %1942 = vmatprep.subr.mxu0 0.0
  %1943 = vmatpush1.msra.mxu0 0.0
  %1944 = vmatprep.subr.mxu0 0.0
  %1945 = vmatpush1.msra.mxu0 %v1664
  %1946 = vmatprep.subr.mxu0 0.0
  %1947 = vmatpush1.msra.mxu0 %v1663
  %1948 = vmatprep.subr.mxu0 0.0
  %1949 = vmatpush1.msra.mxu0 %v1662
  %1950 = vmatprep.subr.mxu0 0.0
  %1951 = vmatpush1.msra.mxu0 %v1661
  %1952 = vmatprep.subr.mxu0 0.0
  %1953 = vmatpush1.msra.mxu0 %v1660
  %1954 = vmatprep.subr.mxu0 0.0
  %1955 = vmatpush1.msra.mxu0 %v1659
  %1956 = vmatprep.subr.mxu0 0.0
  %1957 = vmatpush1.msra.mxu0 %v1658
  %1958 = vmatprep.subr.mxu0 0.0
  %1959 = vmatpush1.msra.mxu0 %v1657
  %1960 = vmatprep.subr.mxu0 0.0
  %1961 = vmatpush1.msra.mxu0 %v1656
  %1962 = vmatprep.subr.mxu0 0.0
  %1963 = vmatpush1.msra.mxu0 %v1655
  %1964 = vmatprep.subr.mxu0 0.0
  %1965 = vmatpush1.msra.mxu0 %v1654
  %1966 = vmatprep.subr.mxu0 0.0
  %1967 = vmatpush1.msra.mxu0 %v1653
  %1968 = vmatprep.subr.mxu0 0.0
  %1969 = vmatpush2.msra.mxu0 0.0
  %1970 = vmatprep.subr.mxu0 0.0
  %1971 = vmatpush2.msra.mxu0 0.0
  %1972 = vmatprep.subr.mxu0 0.0
  %1973 = vmatpush2.msra.mxu0 0.0
  %1974 = vmatprep.subr.mxu0 0.0
  %1975 = vmatpush2.msra.mxu0 0.0
  %1976 = vmatprep.subr.mxu0 0.0
  %1977 = vmatpush2.msra.mxu0 0.0
  %1978 = vmatprep.subr.mxu0 0.0
  %1979 = vmatpush2.msra.mxu0 0.0
  %1980 = vmatprep.subr.mxu0 0.0
  %1981 = vmatpush2.msra.mxu0 0.0
  %1982 = vmatprep.subr.mxu0 0.0
  %1983 = vmatpush2.msra.mxu0 0.0
  %1984 = vmatprep.subr.mxu0 0.0
  %1985 = vmatpush2.msra.mxu0 0.0
  %1986 = vmatprep.subr.mxu0 0.0
  %1987 = vmatpush2.msra.mxu0 0.0
  %1988 = vmatprep.subr.mxu0 0.0
  %1989 = vmatpush2.msra.mxu0 0.0
  %1990 = vmatprep.subr.mxu0 0.0
  %1991 = vmatpush2.msra.mxu0 0.0
  %1992 = vmatprep.subr.mxu0 0.0
  %1993 = vmatpush2.msra.mxu0 0.0
  %1994 = vmatprep.subr.mxu0 0.0
  %1995 = vmatpush2.msra.mxu0 0.0
  %1996 = vmatprep.subr.mxu0 0.0
  %1997 = vmatpush2.msra.mxu0 0.0
  %1998 = vmatprep.subr.mxu0 0.0
  %1999 = vmatpush2.msra.mxu0 0.0
  %2000 = vmatprep.mubr.f32.mxu0 0.0
  %2001 = vmatmul.mubr.f32.gmra.mxu0 %v1934
  %v2002 = vpop.f32.mrf.mxu0
  %v2003 = vadd.f32 0.0, %v2002
  %v2004 = vpop.f32.mrf.mxu0
  %2005 = vdwg.mxu0
  %v2006 = vtanh.pop %v2003
  %2007 = vrot.lane.b32.xlu0 %v1771, 96
  %v2008 = vpop.permute.xlu0 %2007
  %v2010 = vsel %vm1217, %v2006, %v2008
  %v2012 = vsel %vm92, %v2010, 0
  %2014 = vmatprep.subr.mxu0 0.0
  %2015 = vmatpush1.msra.mxu0 0.0
  %2016 = vmatprep.subr.mxu0 0.0
  %2017 = vmatpush1.msra.mxu0 0.0
  %2018 = vmatprep.subr.mxu0 0.0
  %2019 = vmatpush1.msra.mxu0 0.0
  %2020 = vmatprep.subr.mxu0 0.0
  %2021 = vmatpush1.msra.mxu0 0.0
  %2022 = vmatprep.subr.mxu0 0.0
  %2023 = vmatpush1.msra.mxu0 0.0
  %2024 = vmatprep.subr.mxu0 0.0
  %2025 = vmatpush1.msra.mxu0 0.0
  %2026 = vmatprep.subr.mxu0 0.0
  %2027 = vmatpush1.msra.mxu0 0.0
  %2028 = vmatprep.subr.mxu0 0.0
  %2029 = vmatpush1.msra.mxu0 0.0
  %2030 = vmatprep.subr.mxu0 0.0
  %2031 = vmatpush1.msra.mxu0 %v1652
  %2032 = vmatprep.subr.mxu0 0.0
  %2033 = vmatpush1.msra.mxu0 %v1651
  %2034 = vmatprep.subr.mxu0 0.0
  %2035 = vmatpush1.msra.mxu0 %v1650
  %2036 = vmatprep.subr.mxu0 0.0
  %2037 = vmatpush1.msra.mxu0 %v1649
  %2038 = vmatprep.subr.mxu0 0.0
  %2039 = vmatpush1.msra.mxu0 %v1648
  %2040 = vmatprep.subr.mxu0 0.0
  %2041 = vmatpush1.msra.mxu0 %v1647
  %2042 = vmatprep.subr.mxu0 0.0
  %2043 = vmatpush1.msra.mxu0 %v1646
  %2044 = vmatprep.subr.mxu0 0.0
  %2045 = vmatpush1.msra.mxu0 %v1645
  %2046 = vmatprep.subr.mxu0 0.0
  %2047 = vmatpush2.msra.mxu0 0.0
  %2048 = vmatprep.subr.mxu0 0.0
  %2049 = vmatpush2.msra.mxu0 0.0
  %2050 = vmatprep.subr.mxu0 0.0
  %2051 = vmatpush2.msra.mxu0 0.0
  %2052 = vmatprep.subr.mxu0 0.0
  %2053 = vmatpush2.msra.mxu0 0.0
  %2054 = vmatprep.subr.mxu0 0.0
  %2055 = vmatpush2.msra.mxu0 0.0
  %2056 = vmatprep.subr.mxu0 0.0
  %2057 = vmatpush2.msra.mxu0 0.0
  %2058 = vmatprep.subr.mxu0 0.0
  %2059 = vmatpush2.msra.mxu0 0.0
  %2060 = vmatprep.subr.mxu0 0.0
  %2061 = vmatpush2.msra.mxu0 0.0
  %2062 = vmatprep.subr.mxu0 0.0
  %2063 = vmatpush2.msra.mxu0 0.0
  %2064 = vmatprep.subr.mxu0 0.0
  %2065 = vmatpush2.msra.mxu0 0.0
  %2066 = vmatprep.subr.mxu0 0.0
  %2067 = vmatpush2.msra.mxu0 0.0
  %2068 = vmatprep.subr.mxu0 0.0
  %2069 = vmatpush2.msra.mxu0 0.0
  %2070 = vmatprep.subr.mxu0 0.0
  %2071 = vmatpush2.msra.mxu0 0.0
  %2072 = vmatprep.subr.mxu0 0.0
  %2073 = vmatpush2.msra.mxu0 0.0
  %2074 = vmatprep.subr.mxu0 0.0
  %2075 = vmatpush2.msra.mxu0 0.0
  %2076 = vmatprep.subr.mxu0 0.0
  %2077 = vmatpush2.msra.mxu0 0.0
  %2078 = vmatprep.mubr.f32.mxu0 0.0
  %2079 = vmatmul.mubr.f32.gmra.mxu0 %v2012
  %v2080 = vpop.f32.mrf.mxu0
  %v2081 = vadd.f32 0.0, %v2080
  %v2082 = vpop.f32.mrf.mxu0
  %2083 = vdwg.mxu0
  %v2084 = vadd.f32 %v1616, %v2081
  %v2085 = vxor.u32 %v2084, 2147483648
  %v2086 = vmul.f32 %v2085, 1.442695
  %v2087 = vpow.pop %v2086
  %v2088 = vadd.f32 %v2087, 1.0
  %v2089 = vrcp.pop %v2088
  %v2090 = vmul.f32 1.0, %v2089
  %v2091 = vtanh.pop %v2084
  %v2092 = vmul.f32 %v2090, %v1765
  %2094 = vrot.lane.b32.xlu0 %v2091, 32
  %v2095 = vpop.permute.xlu0 %2094
  %v2097 = vmul.f32 %v2090, %v2095
  %2099 = vrot.lane.b32.xlu0 %v2097, 32
  %v2100 = vpop.permute.xlu0 %2099
  %v2102 = vadd.f32 %v2092, %v2100
  %v2103 = vtanh.pop %v2102
  %2105 = vrot.lane.b32.xlu0 %v2103, 32
  %v2106 = vpop.permute.xlu0 %2105
  %v2108 = vmul.f32 %v2090, %v2106
  %2110 = vrot.lane.b32.xlu0 %v2108, 64
  %v2111 = vpop.permute.xlu0 %2110
  %v2112 = vsel %vm1217, %v2111, 0
  %2114 = vmatprep.subr.mxu0 0.0
  %2115 = vmatpush1.msra.mxu0 0.0
  %2116 = vmatprep.subr.mxu0 0.0
  %2117 = vmatpush1.msra.mxu0 0.0
  %2118 = vmatprep.subr.mxu0 0.0
  %2119 = vmatpush1.msra.mxu0 0.0
  %2120 = vmatprep.subr.mxu0 0.0
  %2121 = vmatpush1.msra.mxu0 0.0
  %2122 = vmatprep.subr.mxu0 0.0
  %2123 = vmatpush1.msra.mxu0 0.0
  %2124 = vmatprep.subr.mxu0 0.0
  %2125 = vmatpush1.msra.mxu0 0.0
  %2126 = vmatprep.subr.mxu0 0.0
  %2127 = vmatpush1.msra.mxu0 0.0
  %2128 = vmatprep.subr.mxu0 0.0
  %2129 = vmatpush1.msra.mxu0 0.0
  %2130 = vmatprep.subr.mxu0 0.0
  %2131 = vmatpush1.msra.mxu0 0.0
  %2132 = vmatprep.subr.mxu0 0.0
  %2133 = vmatpush1.msra.mxu0 0.0
  %2134 = vmatprep.subr.mxu0 0.0
  %2135 = vmatpush1.msra.mxu0 0.0
  %2136 = vmatprep.subr.mxu0 0.0
  %2137 = vmatpush1.msra.mxu0 0.0
  %2138 = vmatprep.subr.mxu0 0.0
  %2139 = vmatpush1.msra.mxu0 %v1502
  %2140 = vmatprep.subr.mxu0 0.0
  %2141 = vmatpush1.msra.mxu0 %v1497
  %2142 = vmatprep.subr.mxu0 0.0
  %2143 = vmatpush1.msra.mxu0 %v1492
  %2144 = vmatprep.subr.mxu0 0.0
  %2145 = vmatpush1.msra.mxu0 %v1487
  %2146 = vmatprep.subr.mxu0 0.0
  %2147 = vmatpush2.msra.mxu0 0.0
  %2148 = vmatprep.subr.mxu0 0.0
  %2149 = vmatpush2.msra.mxu0 0.0
  %2150 = vmatprep.subr.mxu0 0.0
  %2151 = vmatpush2.msra.mxu0 0.0
  %2152 = vmatprep.subr.mxu0 0.0
  %2153 = vmatpush2.msra.mxu0 0.0
  %2154 = vmatprep.subr.mxu0 0.0
  %2155 = vmatpush2.msra.mxu0 0.0
  %2156 = vmatprep.subr.mxu0 0.0
  %2157 = vmatpush2.msra.mxu0 0.0
  %2158 = vmatprep.subr.mxu0 0.0
  %2159 = vmatpush2.msra.mxu0 0.0
  %2160 = vmatprep.subr.mxu0 0.0
  %2161 = vmatpush2.msra.mxu0 0.0
  %2162 = vmatprep.subr.mxu0 0.0
  %2163 = vmatpush2.msra.mxu0 0.0
  %2164 = vmatprep.subr.mxu0 0.0
  %2165 = vmatpush2.msra.mxu0 0.0
  %2166 = vmatprep.subr.mxu0 0.0
  %2167 = vmatpush2.msra.mxu0 0.0
  %2168 = vmatprep.subr.mxu0 0.0
  %2169 = vmatpush2.msra.mxu0 0.0
  %2170 = vmatprep.subr.mxu0 0.0
  %2171 = vmatpush2.msra.mxu0 0.0
  %2172 = vmatprep.subr.mxu0 0.0
  %2173 = vmatpush2.msra.mxu0 0.0
  %2174 = vmatprep.subr.mxu0 0.0
  %2175 = vmatpush2.msra.mxu0 0.0
  %2176 = vmatprep.subr.mxu0 0.0
  %2177 = vmatpush2.msra.mxu0 0.0
  %2178 = vmatprep.mubr.f32.mxu0 0.0
  %2179 = vmatmul.mubr.f32.gmra.mxu0 %v2112
  %v2180 = vpop.f32.mrf.mxu0
  %v2181 = vadd.f32 %v1644, %v2180
  %v2182 = vpop.f32.mrf.mxu0
  %2183 = vdwg.mxu0
  %v2184 = vsel %vm92, %v2181, -inf
  %2185 = vmax.xlane.f32.xlu0 %v2184
  %v2186 = vpop.xlane.xlu0 %2185
  %v2187 = vsub.f32 %v2181, %v2186
  %v2188 = vmul.f32 %v2187, 1.442695
  %v2189 = vpow.pop %v2188
  %v2190 = vsel %vm92, %v2189, 0.0
  %2191 = vadd.xlane.f32.xlu0 %v2190
  %v2192 = vpop.xlane.xlu0 %2191
  %v2193 = vrcp.pop %v2192
  %v2194 = vmul.f32 %v2189, %v2193
  %v2196 = vsel %vm92, %v2194, 0
  %2198 = vmatprep.subr.mxu0 0.0
  %2199 = vmatpush1.msra.mxu0 0.0
  %2200 = vmatprep.subr.mxu0 0.0
  %2201 = vmatpush1.msra.mxu0 0.0
  %2202 = vmatprep.subr.mxu0 0.0
  %2203 = vmatpush1.msra.mxu0 0.0
  %2204 = vmatprep.subr.mxu0 0.0
  %2205 = vmatpush1.msra.mxu0 0.0
  %2206 = vmatprep.subr.mxu0 0.0
  %2207 = vmatpush1.msra.mxu0 0.0
  %2208 = vmatprep.subr.mxu0 0.0
  %2209 = vmatpush1.msra.mxu0 0.0
  %2210 = vmatprep.subr.mxu0 0.0
  %2211 = vmatpush1.msra.mxu0 0.0
  %2212 = vmatprep.subr.mxu0 0.0
  %2213 = vmatpush1.msra.mxu0 0.0
  %2214 = vmatprep.subr.mxu0 0.0
  %2215 = vmatpush1.msra.mxu0 %v1225
  %2216 = vmatprep.subr.mxu0 0.0
  %2217 = vmatpush1.msra.mxu0 %v1224
  %2218 = vmatprep.subr.mxu0 0.0
  %2219 = vmatpush1.msra.mxu0 %v1223
  %2220 = vmatprep.subr.mxu0 0.0
  %2221 = vmatpush1.msra.mxu0 %v1222
  %2222 = vmatprep.subr.mxu0 0.0
  %2223 = vmatpush1.msra.mxu0 %v1221
  %2224 = vmatprep.subr.mxu0 0.0
  %2225 = vmatpush1.msra.mxu0 %v1220
  %2226 = vmatprep.subr.mxu0 0.0
  %2227 = vmatpush1.msra.mxu0 %v1219
  %2228 = vmatprep.subr.mxu0 0.0
  %2229 = vmatpush1.msra.mxu0 %v1218
  %2230 = vmatprep.subr.mxu0 0.0
  %2231 = vmatpush2.msra.mxu0 0.0
  %2232 = vmatprep.subr.mxu0 0.0
  %2233 = vmatpush2.msra.mxu0 0.0
  %2234 = vmatprep.subr.mxu0 0.0
  %2235 = vmatpush2.msra.mxu0 0.0
  %2236 = vmatprep.subr.mxu0 0.0
  %2237 = vmatpush2.msra.mxu0 0.0
  %2238 = vmatprep.subr.mxu0 0.0
  %2239 = vmatpush2.msra.mxu0 0.0
  %2240 = vmatprep.subr.mxu0 0.0
  %2241 = vmatpush2.msra.mxu0 0.0
  %2242 = vmatprep.subr.mxu0 0.0
  %2243 = vmatpush2.msra.mxu0 0.0
  %2244 = vmatprep.subr.mxu0 0.0
  %2245 = vmatpush2.msra.mxu0 0.0
  %2246 = vmatprep.subr.mxu0 0.0
  %2247 = vmatpush2.msra.mxu0 0.0
  %2248 = vmatprep.subr.mxu0 0.0
  %2249 = vmatpush2.msra.mxu0 0.0
  %2250 = vmatprep.subr.mxu0 0.0
  %2251 = vmatpush2.msra.mxu0 0.0
  %2252 = vmatprep.subr.mxu0 0.0
  %2253 = vmatpush2.msra.mxu0 0.0
  %2254 = vmatprep.subr.mxu0 0.0
  %2255 = vmatpush2.msra.mxu0 0.0
  %2256 = vmatprep.subr.mxu0 0.0
  %2257 = vmatpush2.msra.mxu0 0.0
  %2258 = vmatprep.subr.mxu0 0.0
  %2259 = vmatpush2.msra.mxu0 0.0
  %2260 = vmatprep.subr.mxu0 0.0
  %2261 = vmatpush2.msra.mxu0 0.0
  %2262 = vmatprep.mubr.f32.mxu0 0.0
  %2263 = vmatmul.mubr.f32.gmra.mxu0 %v2196
  %v2264 = vpop.f32.mrf.mxu0
  %v2265 = vadd.f32 0.0, %v2264
  %v2266 = vpop.f32.mrf.mxu0
  %2267 = vdwg.mxu0
  %v2268 = vsel %vm92, %v2265, %v2108
  %v2270 = vsel %vm1932, %v2268, 0
  %2272 = vmatprep.subr.mxu0 0.0
  %2273 = vmatpush1.msra.mxu0 0.0
  %2274 = vmatprep.subr.mxu0 0.0
  %2275 = vmatpush1.msra.mxu0 0.0
  %2276 = vmatprep.subr.mxu0 0.0
  %2277 = vmatpush1.msra.mxu0 0.0
  %2278 = vmatprep.subr.mxu0 0.0
  %2279 = vmatpush1.msra.mxu0 0.0
  %2280 = vmatprep.subr.mxu0 0.0
  %2281 = vmatpush1.msra.mxu0 %v1664
  %2282 = vmatprep.subr.mxu0 0.0
  %2283 = vmatpush1.msra.mxu0 %v1663
  %2284 = vmatprep.subr.mxu0 0.0
  %2285 = vmatpush1.msra.mxu0 %v1662
  %2286 = vmatprep.subr.mxu0 0.0
  %2287 = vmatpush1.msra.mxu0 %v1661
  %2288 = vmatprep.subr.mxu0 0.0
  %2289 = vmatpush1.msra.mxu0 %v1660
  %2290 = vmatprep.subr.mxu0 0.0
  %2291 = vmatpush1.msra.mxu0 %v1659
  %2292 = vmatprep.subr.mxu0 0.0
  %2293 = vmatpush1.msra.mxu0 %v1658
  %2294 = vmatprep.subr.mxu0 0.0
  %2295 = vmatpush1.msra.mxu0 %v1657
  %2296 = vmatprep.subr.mxu0 0.0
  %2297 = vmatpush1.msra.mxu0 %v1656
  %2298 = vmatprep.subr.mxu0 0.0
  %2299 = vmatpush1.msra.mxu0 %v1655
  %2300 = vmatprep.subr.mxu0 0.0
  %2301 = vmatpush1.msra.mxu0 %v1654
  %2302 = vmatprep.subr.mxu0 0.0
  %2303 = vmatpush1.msra.mxu0 %v1653
  %2304 = vmatprep.subr.mxu0 0.0
  %2305 = vmatpush2.msra.mxu0 0.0
  %2306 = vmatprep.subr.mxu0 0.0
  %2307 = vmatpush2.msra.mxu0 0.0
  %2308 = vmatprep.subr.mxu0 0.0
  %2309 = vmatpush2.msra.mxu0 0.0
  %2310 = vmatprep.subr.mxu0 0.0
  %2311 = vmatpush2.msra.mxu0 0.0
  %2312 = vmatprep.subr.mxu0 0.0
  %2313 = vmatpush2.msra.mxu0 0.0
  %2314 = vmatprep.subr.mxu0 0.0
  %2315 = vmatpush2.msra.mxu0 0.0
  %2316 = vmatprep.subr.mxu0 0.0
  %2317 = vmatpush2.msra.mxu0 0.0
  %2318 = vmatprep.subr.mxu0 0.0
  %2319 = vmatpush2.msra.mxu0 0.0
  %2320 = vmatprep.subr.mxu0 0.0
  %2321 = vmatpush2.msra.mxu0 0.0
  %2322 = vmatprep.subr.mxu0 0.0
  %2323 = vmatpush2.msra.mxu0 0.0
  %2324 = vmatprep.subr.mxu0 0.0
  %2325 = vmatpush2.msra.mxu0 0.0
  %2326 = vmatprep.subr.mxu0 0.0
  %2327 = vmatpush2.msra.mxu0 0.0
  %2328 = vmatprep.subr.mxu0 0.0
  %2329 = vmatpush2.msra.mxu0 0.0
  %2330 = vmatprep.subr.mxu0 0.0
  %2331 = vmatpush2.msra.mxu0 0.0
  %2332 = vmatprep.subr.mxu0 0.0
  %2333 = vmatpush2.msra.mxu0 0.0
  %2334 = vmatprep.subr.mxu0 0.0
  %2335 = vmatpush2.msra.mxu0 0.0
  %2336 = vmatprep.mubr.f32.mxu0 0.0
  %2337 = vmatmul.mubr.f32.gmra.mxu0 %v2270
  %v2338 = vpop.f32.mrf.mxu0
  %v2339 = vadd.f32 0.0, %v2338
  %v2340 = vpop.f32.mrf.mxu0
  %2341 = vdwg.mxu0
  %v2342 = vtanh.pop %v2339
  %2343 = vrot.lane.b32.xlu0 %v2108, 96
  %v2344 = vpop.permute.xlu0 %2343
  %v2346 = vsel %vm1217, %v2342, %v2344
  %v2348 = vsel %vm92, %v2346, 0
  %2350 = vmatprep.subr.mxu0 0.0
  %2351 = vmatpush1.msra.mxu0 0.0
  %2352 = vmatprep.subr.mxu0 0.0
  %2353 = vmatpush1.msra.mxu0 0.0
  %2354 = vmatprep.subr.mxu0 0.0
  %2355 = vmatpush1.msra.mxu0 0.0
  %2356 = vmatprep.subr.mxu0 0.0
  %2357 = vmatpush1.msra.mxu0 0.0
  %2358 = vmatprep.subr.mxu0 0.0
  %2359 = vmatpush1.msra.mxu0 0.0
  %2360 = vmatprep.subr.mxu0 0.0
  %2361 = vmatpush1.msra.mxu0 0.0
  %2362 = vmatprep.subr.mxu0 0.0
  %2363 = vmatpush1.msra.mxu0 0.0
  %2364 = vmatprep.subr.mxu0 0.0
  %2365 = vmatpush1.msra.mxu0 0.0
  %2366 = vmatprep.subr.mxu0 0.0
  %2367 = vmatpush1.msra.mxu0 %v1652
  %2368 = vmatprep.subr.mxu0 0.0
  %2369 = vmatpush1.msra.mxu0 %v1651
  %2370 = vmatprep.subr.mxu0 0.0
  %2371 = vmatpush1.msra.mxu0 %v1650
  %2372 = vmatprep.subr.mxu0 0.0
  %2373 = vmatpush1.msra.mxu0 %v1649
  %2374 = vmatprep.subr.mxu0 0.0
  %2375 = vmatpush1.msra.mxu0 %v1648
  %2376 = vmatprep.subr.mxu0 0.0
  %2377 = vmatpush1.msra.mxu0 %v1647
  %2378 = vmatprep.subr.mxu0 0.0
  %2379 = vmatpush1.msra.mxu0 %v1646
  %2380 = vmatprep.subr.mxu0 0.0
  %2381 = vmatpush1.msra.mxu0 %v1645
  %2382 = vmatprep.subr.mxu0 0.0
  %2383 = vmatpush2.msra.mxu0 0.0
  %2384 = vmatprep.subr.mxu0 0.0
  %2385 = vmatpush2.msra.mxu0 0.0
  %2386 = vmatprep.subr.mxu0 0.0
  %2387 = vmatpush2.msra.mxu0 0.0
  %2388 = vmatprep.subr.mxu0 0.0
  %2389 = vmatpush2.msra.mxu0 0.0
  %2390 = vmatprep.subr.mxu0 0.0
  %2391 = vmatpush2.msra.mxu0 0.0
  %2392 = vmatprep.subr.mxu0 0.0
  %2393 = vmatpush2.msra.mxu0 0.0
  %2394 = vmatprep.subr.mxu0 0.0
  %2395 = vmatpush2.msra.mxu0 0.0
  %2396 = vmatprep.subr.mxu0 0.0
  %2397 = vmatpush2.msra.mxu0 0.0
  %2398 = vmatprep.subr.mxu0 0.0
  %2399 = vmatpush2.msra.mxu0 0.0
  %2400 = vmatprep.subr.mxu0 0.0
  %2401 = vmatpush2.msra.mxu0 0.0
  %2402 = vmatprep.subr.mxu0 0.0
  %2403 = vmatpush2.msra.mxu0 0.0
  %2404 = vmatprep.subr.mxu0 0.0
  %2405 = vmatpush2.msra.mxu0 0.0
  %2406 = vmatprep.subr.mxu0 0.0
  %2407 = vmatpush2.msra.mxu0 0.0
  %2408 = vmatprep.subr.mxu0 0.0
  %2409 = vmatpush2.msra.mxu0 0.0
  %2410 = vmatprep.subr.mxu0 0.0
  %2411 = vmatpush2.msra.mxu0 0.0
  %2412 = vmatprep.subr.mxu0 0.0
  %2413 = vmatpush2.msra.mxu0 0.0
  %2414 = vmatprep.mubr.f32.mxu0 0.0
  %2415 = vmatmul.mubr.f32.gmra.mxu0 %v2348
  %v2416 = vpop.f32.mrf.mxu0
  %v2417 = vadd.f32 0.0, %v2416
  %v2418 = vpop.f32.mrf.mxu0
  %2419 = vdwg.mxu0
  %v2420 = vadd.f32 %v1621, %v2417
  %v2421 = vxor.u32 %v2420, 2147483648
  %v2422 = vmul.f32 %v2421, 1.442695
  %v2423 = vpow.pop %v2422
  %v2424 = vadd.f32 %v2423, 1.0
  %v2425 = vrcp.pop %v2424
  %v2426 = vmul.f32 1.0, %v2425
  %v2427 = vtanh.pop %v2420
  %v2428 = vmul.f32 %v2426, %v2102
  %2430 = vrot.lane.b32.xlu0 %v2427, 32
  %v2431 = vpop.permute.xlu0 %2430
  %v2433 = vmul.f32 %v2426, %v2431
  %2435 = vrot.lane.b32.xlu0 %v2433, 32
  %v2436 = vpop.permute.xlu0 %2435
  %v2438 = vadd.f32 %v2428, %v2436
  %v2439 = vtanh.pop %v2438
  %2441 = vrot.lane.b32.xlu0 %v2439, 32
  %v2442 = vpop.permute.xlu0 %2441
  %v2444 = vmul.f32 %v2426, %v2442
  %2446 = vrot.lane.b32.xlu0 %v2444, 64
  %v2447 = vpop.permute.xlu0 %2446
  %v2448 = vsel %vm1217, %v2447, 0
  %2450 = vmatprep.subr.mxu0 0.0
  %2451 = vmatpush1.msra.mxu0 0.0
  %2452 = vmatprep.subr.mxu0 0.0
  %2453 = vmatpush1.msra.mxu0 0.0
  %2454 = vmatprep.subr.mxu0 0.0
  %2455 = vmatpush1.msra.mxu0 0.0
  %2456 = vmatprep.subr.mxu0 0.0
  %2457 = vmatpush1.msra.mxu0 0.0
  %2458 = vmatprep.subr.mxu0 0.0
  %2459 = vmatpush1.msra.mxu0 0.0
  %2460 = vmatprep.subr.mxu0 0.0
  %2461 = vmatpush1.msra.mxu0 0.0
  %2462 = vmatprep.subr.mxu0 0.0
  %2463 = vmatpush1.msra.mxu0 0.0
  %2464 = vmatprep.subr.mxu0 0.0
  %2465 = vmatpush1.msra.mxu0 0.0
  %2466 = vmatprep.subr.mxu0 0.0
  %2467 = vmatpush1.msra.mxu0 0.0
  %2468 = vmatprep.subr.mxu0 0.0
  %2469 = vmatpush1.msra.mxu0 0.0
  %2470 = vmatprep.subr.mxu0 0.0
  %2471 = vmatpush1.msra.mxu0 0.0
  %2472 = vmatprep.subr.mxu0 0.0
  %2473 = vmatpush1.msra.mxu0 0.0
  %2474 = vmatprep.subr.mxu0 0.0
  %2475 = vmatpush1.msra.mxu0 %v1502
  %2476 = vmatprep.subr.mxu0 0.0
  %2477 = vmatpush1.msra.mxu0 %v1497
  %2478 = vmatprep.subr.mxu0 0.0
  %2479 = vmatpush1.msra.mxu0 %v1492
  %2480 = vmatprep.subr.mxu0 0.0
  %2481 = vmatpush1.msra.mxu0 %v1487
  %2482 = vmatprep.subr.mxu0 0.0
  %2483 = vmatpush2.msra.mxu0 0.0
  %2484 = vmatprep.subr.mxu0 0.0
  %2485 = vmatpush2.msra.mxu0 0.0
  %2486 = vmatprep.subr.mxu0 0.0
  %2487 = vmatpush2.msra.mxu0 0.0
  %2488 = vmatprep.subr.mxu0 0.0
  %2489 = vmatpush2.msra.mxu0 0.0
  %2490 = vmatprep.subr.mxu0 0.0
  %2491 = vmatpush2.msra.mxu0 0.0
  %2492 = vmatprep.subr.mxu0 0.0
  %2493 = vmatpush2.msra.mxu0 0.0
  %2494 = vmatprep.subr.mxu0 0.0
  %2495 = vmatpush2.msra.mxu0 0.0
  %2496 = vmatprep.subr.mxu0 0.0
  %2497 = vmatpush2.msra.mxu0 0.0
  %2498 = vmatprep.subr.mxu0 0.0
  %2499 = vmatpush2.msra.mxu0 0.0
  %2500 = vmatprep.subr.mxu0 0.0
  %2501 = vmatpush2.msra.mxu0 0.0
  %2502 = vmatprep.subr.mxu0 0.0
  %2503 = vmatpush2.msra.mxu0 0.0
  %2504 = vmatprep.subr.mxu0 0.0
  %2505 = vmatpush2.msra.mxu0 0.0
  %2506 = vmatprep.subr.mxu0 0.0
  %2507 = vmatpush2.msra.mxu0 0.0
  %2508 = vmatprep.subr.mxu0 0.0
  %2509 = vmatpush2.msra.mxu0 0.0
  %2510 = vmatprep.subr.mxu0 0.0
  %2511 = vmatpush2.msra.mxu0 0.0
  %2512 = vmatprep.subr.mxu0 0.0
  %2513 = vmatpush2.msra.mxu0 0.0
  %2514 = vmatprep.mubr.f32.mxu0 0.0
  %2515 = vmatmul.mubr.f32.gmra.mxu0 %v2448
  %v2516 = vpop.f32.mrf.mxu0
  %v2517 = vadd.f32 %v1644, %v2516
  %v2518 = vpop.f32.mrf.mxu0
  %2519 = vdwg.mxu0
  %v2520 = vsel %vm92, %v2517, -inf
  %2521 = vmax.xlane.f32.xlu0 %v2520
  %v2522 = vpop.xlane.xlu0 %2521
  %v2523 = vsub.f32 %v2517, %v2522
  %v2524 = vmul.f32 %v2523, 1.442695
  %v2525 = vpow.pop %v2524
  %v2526 = vsel %vm92, %v2525, 0.0
  %2527 = vadd.xlane.f32.xlu0 %v2526
  %v2528 = vpop.xlane.xlu0 %2527
  %v2529 = vrcp.pop %v2528
  %v2530 = vmul.f32 %v2525, %v2529
  %v2532 = vsel %vm92, %v2530, 0
  %2534 = vmatprep.subr.mxu0 0.0
  %2535 = vmatpush1.msra.mxu0 0.0
  %2536 = vmatprep.subr.mxu0 0.0
  %2537 = vmatpush1.msra.mxu0 0.0
  %2538 = vmatprep.subr.mxu0 0.0
  %2539 = vmatpush1.msra.mxu0 0.0
  %2540 = vmatprep.subr.mxu0 0.0
  %2541 = vmatpush1.msra.mxu0 0.0
  %2542 = vmatprep.subr.mxu0 0.0
  %2543 = vmatpush1.msra.mxu0 0.0
  %2544 = vmatprep.subr.mxu0 0.0
  %2545 = vmatpush1.msra.mxu0 0.0
  %2546 = vmatprep.subr.mxu0 0.0
  %2547 = vmatpush1.msra.mxu0 0.0
  %2548 = vmatprep.subr.mxu0 0.0
  %2549 = vmatpush1.msra.mxu0 0.0
  %2550 = vmatprep.subr.mxu0 0.0
  %2551 = vmatpush1.msra.mxu0 %v1225
  %2552 = vmatprep.subr.mxu0 0.0
  %2553 = vmatpush1.msra.mxu0 %v1224
  %2554 = vmatprep.subr.mxu0 0.0
  %2555 = vmatpush1.msra.mxu0 %v1223
  %2556 = vmatprep.subr.mxu0 0.0
  %2557 = vmatpush1.msra.mxu0 %v1222
  %2558 = vmatprep.subr.mxu0 0.0
  %2559 = vmatpush1.msra.mxu0 %v1221
  %2560 = vmatprep.subr.mxu0 0.0
  %2561 = vmatpush1.msra.mxu0 %v1220
  %2562 = vmatprep.subr.mxu0 0.0
  %2563 = vmatpush1.msra.mxu0 %v1219
  %2564 = vmatprep.subr.mxu0 0.0
  %2565 = vmatpush1.msra.mxu0 %v1218
  %2566 = vmatprep.subr.mxu0 0.0
  %2567 = vmatpush2.msra.mxu0 0.0
  %2568 = vmatprep.subr.mxu0 0.0
  %2569 = vmatpush2.msra.mxu0 0.0
  %2570 = vmatprep.subr.mxu0 0.0
  %2571 = vmatpush2.msra.mxu0 0.0
  %2572 = vmatprep.subr.mxu0 0.0
  %2573 = vmatpush2.msra.mxu0 0.0
  %2574 = vmatprep.subr.mxu0 0.0
  %2575 = vmatpush2.msra.mxu0 0.0
  %2576 = vmatprep.subr.mxu0 0.0
  %2577 = vmatpush2.msra.mxu0 0.0
  %2578 = vmatprep.subr.mxu0 0.0
  %2579 = vmatpush2.msra.mxu0 0.0
  %2580 = vmatprep.subr.mxu0 0.0
  %2581 = vmatpush2.msra.mxu0 0.0
  %2582 = vmatprep.subr.mxu0 0.0
  %2583 = vmatpush2.msra.mxu0 0.0
  %2584 = vmatprep.subr.mxu0 0.0
  %2585 = vmatpush2.msra.mxu0 0.0
  %2586 = vmatprep.subr.mxu0 0.0
  %2587 = vmatpush2.msra.mxu0 0.0
  %2588 = vmatprep.subr.mxu0 0.0
  %2589 = vmatpush2.msra.mxu0 0.0
  %2590 = vmatprep.subr.mxu0 0.0
  %2591 = vmatpush2.msra.mxu0 0.0
  %2592 = vmatprep.subr.mxu0 0.0
  %2593 = vmatpush2.msra.mxu0 0.0
  %2594 = vmatprep.subr.mxu0 0.0
  %2595 = vmatpush2.msra.mxu0 0.0
  %2596 = vmatprep.subr.mxu0 0.0
  %2597 = vmatpush2.msra.mxu0 0.0
  %2598 = vmatprep.mubr.f32.mxu0 0.0
  %2599 = vmatmul.mubr.f32.gmra.mxu0 %v2532
  %v2600 = vpop.f32.mrf.mxu0
  %v2601 = vadd.f32 0.0, %v2600
  %v2602 = vpop.f32.mrf.mxu0
  %2603 = vdwg.mxu0
  %v2604 = vsel %vm92, %v2601, %v2444
  %v2606 = vsel %vm1932, %v2604, 0
  %2608 = vmatprep.subr.mxu0 0.0
  %2609 = vmatpush1.msra.mxu0 0.0
  %2610 = vmatprep.subr.mxu0 0.0
  %2611 = vmatpush1.msra.mxu0 0.0
  %2612 = vmatprep.subr.mxu0 0.0
  %2613 = vmatpush1.msra.mxu0 0.0
  %2614 = vmatprep.subr.mxu0 0.0
  %2615 = vmatpush1.msra.mxu0 0.0
  %2616 = vmatprep.subr.mxu0 0.0
  %2617 = vmatpush1.msra.mxu0 %v1664
  %2618 = vmatprep.subr.mxu0 0.0
  %2619 = vmatpush1.msra.mxu0 %v1663
  %2620 = vmatprep.subr.mxu0 0.0
  %2621 = vmatpush1.msra.mxu0 %v1662
  %2622 = vmatprep.subr.mxu0 0.0
  %2623 = vmatpush1.msra.mxu0 %v1661
  %2624 = vmatprep.subr.mxu0 0.0
  %2625 = vmatpush1.msra.mxu0 %v1660
  %2626 = vmatprep.subr.mxu0 0.0
  %2627 = vmatpush1.msra.mxu0 %v1659
  %2628 = vmatprep.subr.mxu0 0.0
  %2629 = vmatpush1.msra.mxu0 %v1658
  %2630 = vmatprep.subr.mxu0 0.0
  %2631 = vmatpush1.msra.mxu0 %v1657
  %2632 = vmatprep.subr.mxu0 0.0
  %2633 = vmatpush1.msra.mxu0 %v1656
  %2634 = vmatprep.subr.mxu0 0.0
  %2635 = vmatpush1.msra.mxu0 %v1655
  %2636 = vmatprep.subr.mxu0 0.0
  %2637 = vmatpush1.msra.mxu0 %v1654
  %2638 = vmatprep.subr.mxu0 0.0
  %2639 = vmatpush1.msra.mxu0 %v1653
  %2640 = vmatprep.subr.mxu0 0.0
  %2641 = vmatpush2.msra.mxu0 0.0
  %2642 = vmatprep.subr.mxu0 0.0
  %2643 = vmatpush2.msra.mxu0 0.0
  %2644 = vmatprep.subr.mxu0 0.0
  %2645 = vmatpush2.msra.mxu0 0.0
  %2646 = vmatprep.subr.mxu0 0.0
  %2647 = vmatpush2.msra.mxu0 0.0
  %2648 = vmatprep.subr.mxu0 0.0
  %2649 = vmatpush2.msra.mxu0 0.0
  %2650 = vmatprep.subr.mxu0 0.0
  %2651 = vmatpush2.msra.mxu0 0.0
  %2652 = vmatprep.subr.mxu0 0.0
  %2653 = vmatpush2.msra.mxu0 0.0
  %2654 = vmatprep.subr.mxu0 0.0
  %2655 = vmatpush2.msra.mxu0 0.0
  %2656 = vmatprep.subr.mxu0 0.0
  %2657 = vmatpush2.msra.mxu0 0.0
  %2658 = vmatprep.subr.mxu0 0.0
  %2659 = vmatpush2.msra.mxu0 0.0
  %2660 = vmatprep.subr.mxu0 0.0
  %2661 = vmatpush2.msra.mxu0 0.0
  %2662 = vmatprep.subr.mxu0 0.0
  %2663 = vmatpush2.msra.mxu0 0.0
  %2664 = vmatprep.subr.mxu0 0.0
  %2665 = vmatpush2.msra.mxu0 0.0
  %2666 = vmatprep.subr.mxu0 0.0
  %2667 = vmatpush2.msra.mxu0 0.0
  %2668 = vmatprep.subr.mxu0 0.0
  %2669 = vmatpush2.msra.mxu0 0.0
  %2670 = vmatprep.subr.mxu0 0.0
  %2671 = vmatpush2.msra.mxu0 0.0
  %2672 = vmatprep.mubr.f32.mxu0 0.0
  %2673 = vmatmul.mubr.f32.gmra.mxu0 %v2606
  %v2674 = vpop.f32.mrf.mxu0
  %v2675 = vadd.f32 0.0, %v2674
  %v2676 = vpop.f32.mrf.mxu0
  %2677 = vdwg.mxu0
  %v2678 = vtanh.pop %v2675
  %2679 = vrot.lane.b32.xlu0 %v2444, 96
  %v2680 = vpop.permute.xlu0 %2679
  %v2682 = vsel %vm1217, %v2678, %v2680
  %v2684 = vsel %vm92, %v2682, 0
  %2686 = vmatprep.subr.mxu0 0.0
  %2687 = vmatpush1.msra.mxu0 0.0
  %2688 = vmatprep.subr.mxu0 0.0
  %2689 = vmatpush1.msra.mxu0 0.0
  %2690 = vmatprep.subr.mxu0 0.0
  %2691 = vmatpush1.msra.mxu0 0.0
  %2692 = vmatprep.subr.mxu0 0.0
  %2693 = vmatpush1.msra.mxu0 0.0
  %2694 = vmatprep.subr.mxu0 0.0
  %2695 = vmatpush1.msra.mxu0 0.0
  %2696 = vmatprep.subr.mxu0 0.0
  %2697 = vmatpush1.msra.mxu0 0.0
  %2698 = vmatprep.subr.mxu0 0.0
  %2699 = vmatpush1.msra.mxu0 0.0
  %2700 = vmatprep.subr.mxu0 0.0
  %2701 = vmatpush1.msra.mxu0 0.0
  %2702 = vmatprep.subr.mxu0 0.0
  %2703 = vmatpush1.msra.mxu0 %v1652
  %2704 = vmatprep.subr.mxu0 0.0
  %2705 = vmatpush1.msra.mxu0 %v1651
  %2706 = vmatprep.subr.mxu0 0.0
  %2707 = vmatpush1.msra.mxu0 %v1650
  %2708 = vmatprep.subr.mxu0 0.0
  %2709 = vmatpush1.msra.mxu0 %v1649
  %2710 = vmatprep.subr.mxu0 0.0
  %2711 = vmatpush1.msra.mxu0 %v1648
  %2712 = vmatprep.subr.mxu0 0.0
  %2713 = vmatpush1.msra.mxu0 %v1647
  %2714 = vmatprep.subr.mxu0 0.0
  %2715 = vmatpush1.msra.mxu0 %v1646
  %2716 = vmatprep.subr.mxu0 0.0
  %2717 = vmatpush1.msra.mxu0 %v1645
  %2718 = vmatprep.subr.mxu0 0.0
  %2719 = vmatpush2.msra.mxu0 0.0
  %2720 = vmatprep.subr.mxu0 0.0
  %2721 = vmatpush2.msra.mxu0 0.0
  %2722 = vmatprep.subr.mxu0 0.0
  %2723 = vmatpush2.msra.mxu0 0.0
  %2724 = vmatprep.subr.mxu0 0.0
  %2725 = vmatpush2.msra.mxu0 0.0
  %2726 = vmatprep.subr.mxu0 0.0
  %2727 = vmatpush2.msra.mxu0 0.0
  %2728 = vmatprep.subr.mxu0 0.0
  %2729 = vmatpush2.msra.mxu0 0.0
  %2730 = vmatprep.subr.mxu0 0.0
  %2731 = vmatpush2.msra.mxu0 0.0
  %2732 = vmatprep.subr.mxu0 0.0
  %2733 = vmatpush2.msra.mxu0 0.0
  %2734 = vmatprep.subr.mxu0 0.0
  %2735 = vmatpush2.msra.mxu0 0.0
  %2736 = vmatprep.subr.mxu0 0.0
  %2737 = vmatpush2.msra.mxu0 0.0
  %2738 = vmatprep.subr.mxu0 0.0
  %2739 = vmatpush2.msra.mxu0 0.0
  %2740 = vmatprep.subr.mxu0 0.0
  %2741 = vmatpush2.msra.mxu0 0.0
  %2742 = vmatprep.subr.mxu0 0.0
  %2743 = vmatpush2.msra.mxu0 0.0
  %2744 = vmatprep.subr.mxu0 0.0
  %2745 = vmatpush2.msra.mxu0 0.0
  %2746 = vmatprep.subr.mxu0 0.0
  %2747 = vmatpush2.msra.mxu0 0.0
  %2748 = vmatprep.subr.mxu0 0.0
  %2749 = vmatpush2.msra.mxu0 0.0
  %2750 = vmatprep.mubr.f32.mxu0 0.0
  %2751 = vmatmul.mubr.f32.gmra.mxu0 %v2684
  %v2752 = vpop.f32.mrf.mxu0
  %v2753 = vadd.f32 0.0, %v2752
  %v2754 = vpop.f32.mrf.mxu0
  %2755 = vdwg.mxu0
  %v2756 = vadd.f32 %v1626, %v2753
  %v2757 = vxor.u32 %v2756, 2147483648
  %v2758 = vmul.f32 %v2757, 1.442695
  %v2759 = vpow.pop %v2758
  %v2760 = vadd.f32 %v2759, 1.0
  %v2761 = vrcp.pop %v2760
  %v2762 = vmul.f32 1.0, %v2761
  %v2763 = vtanh.pop %v2756
  %v2764 = vmul.f32 %v2762, %v2438
  %2766 = vrot.lane.b32.xlu0 %v2763, 32
  %v2767 = vpop.permute.xlu0 %2766
  %v2769 = vmul.f32 %v2762, %v2767
  %2771 = vrot.lane.b32.xlu0 %v2769, 32
  %v2772 = vpop.permute.xlu0 %2771
  %v2774 = vadd.f32 %v2764, %v2772
  %v2775 = vtanh.pop %v2774
  %2777 = vrot.lane.b32.xlu0 %v2775, 32
  %v2778 = vpop.permute.xlu0 %2777
  %v2780 = vmul.f32 %v2762, %v2778
  %2782 = vrot.lane.b32.xlu0 %v2780, 64
  %v2783 = vpop.permute.xlu0 %2782
  %v2784 = vsel %vm1217, %v2783, 0
  %2786 = vmatprep.subr.mxu0 0.0
  %2787 = vmatpush1.msra.mxu0 0.0
  %2788 = vmatprep.subr.mxu0 0.0
  %2789 = vmatpush1.msra.mxu0 0.0
  %2790 = vmatprep.subr.mxu0 0.0
  %2791 = vmatpush1.msra.mxu0 0.0
  %2792 = vmatprep.subr.mxu0 0.0
  %2793 = vmatpush1.msra.mxu0 0.0
  %2794 = vmatprep.subr.mxu0 0.0
  %2795 = vmatpush1.msra.mxu0 0.0
  %2796 = vmatprep.subr.mxu0 0.0
  %2797 = vmatpush1.msra.mxu0 0.0
  %2798 = vmatprep.subr.mxu0 0.0
  %2799 = vmatpush1.msra.mxu0 0.0
  %2800 = vmatprep.subr.mxu0 0.0
  %2801 = vmatpush1.msra.mxu0 0.0
  %2802 = vmatprep.subr.mxu0 0.0
  %2803 = vmatpush1.msra.mxu0 0.0
  %2804 = vmatprep.subr.mxu0 0.0
  %2805 = vmatpush1.msra.mxu0 0.0
  %2806 = vmatprep.subr.mxu0 0.0
  %2807 = vmatpush1.msra.mxu0 0.0
  %2808 = vmatprep.subr.mxu0 0.0
  %2809 = vmatpush1.msra.mxu0 0.0
  %2810 = vmatprep.subr.mxu0 0.0
  %2811 = vmatpush1.msra.mxu0 %v1502
  %2812 = vmatprep.subr.mxu0 0.0
  %2813 = vmatpush1.msra.mxu0 %v1497
  %2814 = vmatprep.subr.mxu0 0.0
  %2815 = vmatpush1.msra.mxu0 %v1492
  %2816 = vmatprep.subr.mxu0 0.0
  %2817 = vmatpush1.msra.mxu0 %v1487
  %2818 = vmatprep.subr.mxu0 0.0
  %2819 = vmatpush2.msra.mxu0 0.0
  %2820 = vmatprep.subr.mxu0 0.0
  %2821 = vmatpush2.msra.mxu0 0.0
  %2822 = vmatprep.subr.mxu0 0.0
  %2823 = vmatpush2.msra.mxu0 0.0
  %2824 = vmatprep.subr.mxu0 0.0
  %2825 = vmatpush2.msra.mxu0 0.0
  %2826 = vmatprep.subr.mxu0 0.0
  %2827 = vmatpush2.msra.mxu0 0.0
  %2828 = vmatprep.subr.mxu0 0.0
  %2829 = vmatpush2.msra.mxu0 0.0
  %2830 = vmatprep.subr.mxu0 0.0
  %2831 = vmatpush2.msra.mxu0 0.0
  %2832 = vmatprep.subr.mxu0 0.0
  %2833 = vmatpush2.msra.mxu0 0.0
  %2834 = vmatprep.subr.mxu0 0.0
  %2835 = vmatpush2.msra.mxu0 0.0
  %2836 = vmatprep.subr.mxu0 0.0
  %2837 = vmatpush2.msra.mxu0 0.0
  %2838 = vmatprep.subr.mxu0 0.0
  %2839 = vmatpush2.msra.mxu0 0.0
  %2840 = vmatprep.subr.mxu0 0.0
  %2841 = vmatpush2.msra.mxu0 0.0
  %2842 = vmatprep.subr.mxu0 0.0
  %2843 = vmatpush2.msra.mxu0 0.0
  %2844 = vmatprep.subr.mxu0 0.0
  %2845 = vmatpush2.msra.mxu0 0.0
  %2846 = vmatprep.subr.mxu0 0.0
  %2847 = vmatpush2.msra.mxu0 0.0
  %2848 = vmatprep.subr.mxu0 0.0
  %2849 = vmatpush2.msra.mxu0 0.0
  %2850 = vmatprep.mubr.f32.mxu0 0.0
  %2851 = vmatmul.mubr.f32.gmra.mxu0 %v2784
  %v2852 = vpop.f32.mrf.mxu0
  %v2853 = vadd.f32 %v1644, %v2852
  %v2854 = vpop.f32.mrf.mxu0
  %2855 = vdwg.mxu0
  %v2856 = vsel %vm92, %v2853, -inf
  %2857 = vmax.xlane.f32.xlu0 %v2856
  %v2858 = vpop.xlane.xlu0 %2857
  %v2859 = vsub.f32 %v2853, %v2858
  %v2860 = vmul.f32 %v2859, 1.442695
  %v2861 = vpow.pop %v2860
  %v2862 = vsel %vm92, %v2861, 0.0
  %2863 = vadd.xlane.f32.xlu0 %v2862
  %v2864 = vpop.xlane.xlu0 %2863
  %v2865 = vrcp.pop %v2864
  %v2866 = vmul.f32 %v2861, %v2865
  %v2868 = vsel %vm92, %v2866, 0
  %2870 = vmatprep.subr.mxu0 0.0
  %2871 = vmatpush1.msra.mxu0 0.0
  %2872 = vmatprep.subr.mxu0 0.0
  %2873 = vmatpush1.msra.mxu0 0.0
  %2874 = vmatprep.subr.mxu0 0.0
  %2875 = vmatpush1.msra.mxu0 0.0
  %2876 = vmatprep.subr.mxu0 0.0
  %2877 = vmatpush1.msra.mxu0 0.0
  %2878 = vmatprep.subr.mxu0 0.0
  %2879 = vmatpush1.msra.mxu0 0.0
  %2880 = vmatprep.subr.mxu0 0.0
  %2881 = vmatpush1.msra.mxu0 0.0
  %2882 = vmatprep.subr.mxu0 0.0
  %2883 = vmatpush1.msra.mxu0 0.0
  %2884 = vmatprep.subr.mxu0 0.0
  %2885 = vmatpush1.msra.mxu0 0.0
  %2886 = vmatprep.subr.mxu0 0.0
  %2887 = vmatpush1.msra.mxu0 %v1225
  %2888 = vmatprep.subr.mxu0 0.0
  %2889 = vmatpush1.msra.mxu0 %v1224
  %2890 = vmatprep.subr.mxu0 0.0
  %2891 = vmatpush1.msra.mxu0 %v1223
  %2892 = vmatprep.subr.mxu0 0.0
  %2893 = vmatpush1.msra.mxu0 %v1222
  %2894 = vmatprep.subr.mxu0 0.0
  %2895 = vmatpush1.msra.mxu0 %v1221
  %2896 = vmatprep.subr.mxu0 0.0
  %2897 = vmatpush1.msra.mxu0 %v1220
  %2898 = vmatprep.subr.mxu0 0.0
  %2899 = vmatpush1.msra.mxu0 %v1219
  %2900 = vmatprep.subr.mxu0 0.0
  %2901 = vmatpush1.msra.mxu0 %v1218
  %2902 = vmatprep.subr.mxu0 0.0
  %2903 = vmatpush2.msra.mxu0 0.0
  %2904 = vmatprep.subr.mxu0 0.0
  %2905 = vmatpush2.msra.mxu0 0.0
  %2906 = vmatprep.subr.mxu0 0.0
  %2907 = vmatpush2.msra.mxu0 0.0
  %2908 = vmatprep.subr.mxu0 0.0
  %2909 = vmatpush2.msra.mxu0 0.0
  %2910 = vmatprep.subr.mxu0 0.0
  %2911 = vmatpush2.msra.mxu0 0.0
  %2912 = vmatprep.subr.mxu0 0.0
  %2913 = vmatpush2.msra.mxu0 0.0
  %2914 = vmatprep.subr.mxu0 0.0
  %2915 = vmatpush2.msra.mxu0 0.0
  %2916 = vmatprep.subr.mxu0 0.0
  %2917 = vmatpush2.msra.mxu0 0.0
  %2918 = vmatprep.subr.mxu0 0.0
  %2919 = vmatpush2.msra.mxu0 0.0
  %2920 = vmatprep.subr.mxu0 0.0
  %2921 = vmatpush2.msra.mxu0 0.0
  %2922 = vmatprep.subr.mxu0 0.0
  %2923 = vmatpush2.msra.mxu0 0.0
  %2924 = vmatprep.subr.mxu0 0.0
  %2925 = vmatpush2.msra.mxu0 0.0
  %2926 = vmatprep.subr.mxu0 0.0
  %2927 = vmatpush2.msra.mxu0 0.0
  %2928 = vmatprep.subr.mxu0 0.0
  %2929 = vmatpush2.msra.mxu0 0.0
  %2930 = vmatprep.subr.mxu0 0.0
  %2931 = vmatpush2.msra.mxu0 0.0
  %2932 = vmatprep.subr.mxu0 0.0
  %2933 = vmatpush2.msra.mxu0 0.0
  %2934 = vmatprep.mubr.f32.mxu0 0.0
  %2935 = vmatmul.mubr.f32.gmra.mxu0 %v2868
  %v2936 = vpop.f32.mrf.mxu0
  %v2937 = vadd.f32 0.0, %v2936
  %v2938 = vpop.f32.mrf.mxu0
  %2939 = vdwg.mxu0
  %v2940 = vsel %vm92, %v2937, %v2780
  %v2942 = vsel %vm1932, %v2940, 0
  %2944 = vmatprep.subr.mxu0 0.0
  %2945 = vmatpush1.msra.mxu0 0.0
  %2946 = vmatprep.subr.mxu0 0.0
  %2947 = vmatpush1.msra.mxu0 0.0
  %2948 = vmatprep.subr.mxu0 0.0
  %2949 = vmatpush1.msra.mxu0 0.0
  %2950 = vmatprep.subr.mxu0 0.0
  %2951 = vmatpush1.msra.mxu0 0.0
  %2952 = vmatprep.subr.mxu0 0.0
  %2953 = vmatpush1.msra.mxu0 %v1664
  %2954 = vmatprep.subr.mxu0 0.0
  %2955 = vmatpush1.msra.mxu0 %v1663
  %2956 = vmatprep.subr.mxu0 0.0
  %2957 = vmatpush1.msra.mxu0 %v1662
  %2958 = vmatprep.subr.mxu0 0.0
  %2959 = vmatpush1.msra.mxu0 %v1661
  %2960 = vmatprep.subr.mxu0 0.0
  %2961 = vmatpush1.msra.mxu0 %v1660
  %2962 = vmatprep.subr.mxu0 0.0
  %2963 = vmatpush1.msra.mxu0 %v1659
  %2964 = vmatprep.subr.mxu0 0.0
  %2965 = vmatpush1.msra.mxu0 %v1658
  %2966 = vmatprep.subr.mxu0 0.0
  %2967 = vmatpush1.msra.mxu0 %v1657
  %2968 = vmatprep.subr.mxu0 0.0
  %2969 = vmatpush1.msra.mxu0 %v1656
  %2970 = vmatprep.subr.mxu0 0.0
  %2971 = vmatpush1.msra.mxu0 %v1655
  %2972 = vmatprep.subr.mxu0 0.0
  %2973 = vmatpush1.msra.mxu0 %v1654
  %2974 = vmatprep.subr.mxu0 0.0
  %2975 = vmatpush1.msra.mxu0 %v1653
  %2976 = vmatprep.subr.mxu0 0.0
  %2977 = vmatpush2.msra.mxu0 0.0
  %2978 = vmatprep.subr.mxu0 0.0
  %2979 = vmatpush2.msra.mxu0 0.0
  %2980 = vmatprep.subr.mxu0 0.0
  %2981 = vmatpush2.msra.mxu0 0.0
  %2982 = vmatprep.subr.mxu0 0.0
  %2983 = vmatpush2.msra.mxu0 0.0
  %2984 = vmatprep.subr.mxu0 0.0
  %2985 = vmatpush2.msra.mxu0 0.0
  %2986 = vmatprep.subr.mxu0 0.0
  %2987 = vmatpush2.msra.mxu0 0.0
  %2988 = vmatprep.subr.mxu0 0.0
  %2989 = vmatpush2.msra.mxu0 0.0
  %2990 = vmatprep.subr.mxu0 0.0
  %2991 = vmatpush2.msra.mxu0 0.0
  %2992 = vmatprep.subr.mxu0 0.0
  %2993 = vmatpush2.msra.mxu0 0.0
  %2994 = vmatprep.subr.mxu0 0.0
  %2995 = vmatpush2.msra.mxu0 0.0
  %2996 = vmatprep.subr.mxu0 0.0
  %2997 = vmatpush2.msra.mxu0 0.0
  %2998 = vmatprep.subr.mxu0 0.0
  %2999 = vmatpush2.msra.mxu0 0.0
  %3000 = vmatprep.subr.mxu0 0.0
  %3001 = vmatpush2.msra.mxu0 0.0
  %3002 = vmatprep.subr.mxu0 0.0
  %3003 = vmatpush2.msra.mxu0 0.0
  %3004 = vmatprep.subr.mxu0 0.0
  %3005 = vmatpush2.msra.mxu0 0.0
  %3006 = vmatprep.subr.mxu0 0.0
  %3007 = vmatpush2.msra.mxu0 0.0
  %3008 = vmatprep.mubr.f32.mxu0 0.0
  %3009 = vmatmul.mubr.f32.gmra.mxu0 %v2942
  %v3010 = vpop.f32.mrf.mxu0
  %v3011 = vadd.f32 0.0, %v3010
  %v3012 = vpop.f32.mrf.mxu0
  %3013 = vdwg.mxu0
  %v3014 = vtanh.pop %v3011
  %3015 = vrot.lane.b32.xlu0 %v2780, 96
  %v3016 = vpop.permute.xlu0 %3015
  %v3018 = vsel %vm1217, %v3014, %v3016
  %v3020 = vsel %vm92, %v3018, 0
  %3022 = vmatprep.subr.mxu0 0.0
  %3023 = vmatpush1.msra.mxu0 0.0
  %3024 = vmatprep.subr.mxu0 0.0
  %3025 = vmatpush1.msra.mxu0 0.0
  %3026 = vmatprep.subr.mxu0 0.0
  %3027 = vmatpush1.msra.mxu0 0.0
  %3028 = vmatprep.subr.mxu0 0.0
  %3029 = vmatpush1.msra.mxu0 0.0
  %3030 = vmatprep.subr.mxu0 0.0
  %3031 = vmatpush1.msra.mxu0 0.0
  %3032 = vmatprep.subr.mxu0 0.0
  %3033 = vmatpush1.msra.mxu0 0.0
  %3034 = vmatprep.subr.mxu0 0.0
  %3035 = vmatpush1.msra.mxu0 0.0
  %3036 = vmatprep.subr.mxu0 0.0
  %3037 = vmatpush1.msra.mxu0 0.0
  %3038 = vmatprep.subr.mxu0 0.0
  %3039 = vmatpush1.msra.mxu0 %v1652
  %3040 = vmatprep.subr.mxu0 0.0
  %3041 = vmatpush1.msra.mxu0 %v1651
  %3042 = vmatprep.subr.mxu0 0.0
  %3043 = vmatpush1.msra.mxu0 %v1650
  %3044 = vmatprep.subr.mxu0 0.0
  %3045 = vmatpush1.msra.mxu0 %v1649
  %3046 = vmatprep.subr.mxu0 0.0
  %3047 = vmatpush1.msra.mxu0 %v1648
  %3048 = vmatprep.subr.mxu0 0.0
  %3049 = vmatpush1.msra.mxu0 %v1647
  %3050 = vmatprep.subr.mxu0 0.0
  %3051 = vmatpush1.msra.mxu0 %v1646
  %3052 = vmatprep.subr.mxu0 0.0
  %3053 = vmatpush1.msra.mxu0 %v1645
  %3054 = vmatprep.subr.mxu0 0.0
  %3055 = vmatpush2.msra.mxu0 0.0
  %3056 = vmatprep.subr.mxu0 0.0
  %3057 = vmatpush2.msra.mxu0 0.0
  %3058 = vmatprep.subr.mxu0 0.0
  %3059 = vmatpush2.msra.mxu0 0.0
  %3060 = vmatprep.subr.mxu0 0.0
  %3061 = vmatpush2.msra.mxu0 0.0
  %3062 = vmatprep.subr.mxu0 0.0
  %3063 = vmatpush2.msra.mxu0 0.0
  %3064 = vmatprep.subr.mxu0 0.0
  %3065 = vmatpush2.msra.mxu0 0.0
  %3066 = vmatprep.subr.mxu0 0.0
  %3067 = vmatpush2.msra.mxu0 0.0
  %3068 = vmatprep.subr.mxu0 0.0
  %3069 = vmatpush2.msra.mxu0 0.0
  %3070 = vmatprep.subr.mxu0 0.0
  %3071 = vmatpush2.msra.mxu0 0.0
  %3072 = vmatprep.subr.mxu0 0.0
  %3073 = vmatpush2.msra.mxu0 0.0
  %3074 = vmatprep.subr.mxu0 0.0
  %3075 = vmatpush2.msra.mxu0 0.0
  %3076 = vmatprep.subr.mxu0 0.0
  %3077 = vmatpush2.msra.mxu0 0.0
  %3078 = vmatprep.subr.mxu0 0.0
  %3079 = vmatpush2.msra.mxu0 0.0
  %3080 = vmatprep.subr.mxu0 0.0
  %3081 = vmatpush2.msra.mxu0 0.0
  %3082 = vmatprep.subr.mxu0 0.0
  %3083 = vmatpush2.msra.mxu0 0.0
  %3084 = vmatprep.subr.mxu0 0.0
  %3085 = vmatpush2.msra.mxu0 0.0
  %3086 = vmatprep.mubr.f32.mxu0 0.0
  %3087 = vmatmul.mubr.f32.gmra.mxu0 %v3020
  %v3088 = vpop.f32.mrf.mxu0
  %v3089 = vadd.f32 0.0, %v3088
  %v3090 = vpop.f32.mrf.mxu0
  %3091 = vdwg.mxu0
  %v3092 = vadd.f32 %v1631, %v3089
  %v3093 = vxor.u32 %v3092, 2147483648
  %v3094 = vmul.f32 %v3093, 1.442695
  %v3095 = vpow.pop %v3094
  %v3096 = vadd.f32 %v3095, 1.0
  %v3097 = vrcp.pop %v3096
  %v3098 = vmul.f32 1.0, %v3097
  %v3099 = vtanh.pop %v3092
  %v3100 = vmul.f32 %v3098, %v2774
  %3102 = vrot.lane.b32.xlu0 %v3099, 32
  %v3103 = vpop.permute.xlu0 %3102
  %v3105 = vmul.f32 %v3098, %v3103
  %3107 = vrot.lane.b32.xlu0 %v3105, 32
  %v3108 = vpop.permute.xlu0 %3107
  %v3110 = vadd.f32 %v3100, %v3108
  %v3111 = vtanh.pop %v3110
  %3113 = vrot.lane.b32.xlu0 %v3111, 32
  %v3114 = vpop.permute.xlu0 %3113
  %v3116 = vmul.f32 %v3098, %v3114
  %3118 = vrot.lane.b32.xlu0 %v3116, 64
  %v3119 = vpop.permute.xlu0 %3118
  %v3120 = vsel %vm1217, %v3119, 0
  %3122 = vmatprep.subr.mxu0 0.0
  %3123 = vmatpush1.msra.mxu0 0.0
  %3124 = vmatprep.subr.mxu0 0.0
  %3125 = vmatpush1.msra.mxu0 0.0
  %3126 = vmatprep.subr.mxu0 0.0
  %3127 = vmatpush1.msra.mxu0 0.0
  %3128 = vmatprep.subr.mxu0 0.0
  %3129 = vmatpush1.msra.mxu0 0.0
  %3130 = vmatprep.subr.mxu0 0.0
  %3131 = vmatpush1.msra.mxu0 0.0
  %3132 = vmatprep.subr.mxu0 0.0
  %3133 = vmatpush1.msra.mxu0 0.0
  %3134 = vmatprep.subr.mxu0 0.0
  %3135 = vmatpush1.msra.mxu0 0.0
  %3136 = vmatprep.subr.mxu0 0.0
  %3137 = vmatpush1.msra.mxu0 0.0
  %3138 = vmatprep.subr.mxu0 0.0
  %3139 = vmatpush1.msra.mxu0 0.0
  %3140 = vmatprep.subr.mxu0 0.0
  %3141 = vmatpush1.msra.mxu0 0.0
  %3142 = vmatprep.subr.mxu0 0.0
  %3143 = vmatpush1.msra.mxu0 0.0
  %3144 = vmatprep.subr.mxu0 0.0
  %3145 = vmatpush1.msra.mxu0 0.0
  %3146 = vmatprep.subr.mxu0 0.0
  %3147 = vmatpush1.msra.mxu0 %v1502
  %3148 = vmatprep.subr.mxu0 0.0
  %3149 = vmatpush1.msra.mxu0 %v1497
  %3150 = vmatprep.subr.mxu0 0.0
  %3151 = vmatpush1.msra.mxu0 %v1492
  %3152 = vmatprep.subr.mxu0 0.0
  %3153 = vmatpush1.msra.mxu0 %v1487
  %3154 = vmatprep.subr.mxu0 0.0
  %3155 = vmatpush2.msra.mxu0 0.0
  %3156 = vmatprep.subr.mxu0 0.0
  %3157 = vmatpush2.msra.mxu0 0.0
  %3158 = vmatprep.subr.mxu0 0.0
  %3159 = vmatpush2.msra.mxu0 0.0
  %3160 = vmatprep.subr.mxu0 0.0
  %3161 = vmatpush2.msra.mxu0 0.0
  %3162 = vmatprep.subr.mxu0 0.0
  %3163 = vmatpush2.msra.mxu0 0.0
  %3164 = vmatprep.subr.mxu0 0.0
  %3165 = vmatpush2.msra.mxu0 0.0
  %3166 = vmatprep.subr.mxu0 0.0
  %3167 = vmatpush2.msra.mxu0 0.0
  %3168 = vmatprep.subr.mxu0 0.0
  %3169 = vmatpush2.msra.mxu0 0.0
  %3170 = vmatprep.subr.mxu0 0.0
  %3171 = vmatpush2.msra.mxu0 0.0
  %3172 = vmatprep.subr.mxu0 0.0
  %3173 = vmatpush2.msra.mxu0 0.0
  %3174 = vmatprep.subr.mxu0 0.0
  %3175 = vmatpush2.msra.mxu0 0.0
  %3176 = vmatprep.subr.mxu0 0.0
  %3177 = vmatpush2.msra.mxu0 0.0
  %3178 = vmatprep.subr.mxu0 0.0
  %3179 = vmatpush2.msra.mxu0 0.0
  %3180 = vmatprep.subr.mxu0 0.0
  %3181 = vmatpush2.msra.mxu0 0.0
  %3182 = vmatprep.subr.mxu0 0.0
  %3183 = vmatpush2.msra.mxu0 0.0
  %3184 = vmatprep.subr.mxu0 0.0
  %3185 = vmatpush2.msra.mxu0 0.0
  %3186 = vmatprep.mubr.f32.mxu0 0.0
  %3187 = vmatmul.mubr.f32.gmra.mxu0 %v3120
  %v3188 = vpop.f32.mrf.mxu0
  %v3189 = vadd.f32 %v1644, %v3188
  %v3190 = vpop.f32.mrf.mxu0
  %3191 = vdwg.mxu0
  %v3192 = vsel %vm92, %v3189, -inf
  %3193 = vmax.xlane.f32.xlu0 %v3192
  %v3194 = vpop.xlane.xlu0 %3193
  %v3195 = vsub.f32 %v3189, %v3194
  %v3196 = vmul.f32 %v3195, 1.442695
  %v3197 = vpow.pop %v3196
  %v3198 = vsel %vm92, %v3197, 0.0
  %3199 = vadd.xlane.f32.xlu0 %v3198
  %v3200 = vpop.xlane.xlu0 %3199
  %v3201 = vrcp.pop %v3200
  %v3202 = vmul.f32 %v3197, %v3201
  %v3204 = vsel %vm92, %v3202, 0
  %3206 = vmatprep.subr.mxu0 0.0
  %3207 = vmatpush1.msra.mxu0 0.0
  %3208 = vmatprep.subr.mxu0 0.0
  %3209 = vmatpush1.msra.mxu0 0.0
  %3210 = vmatprep.subr.mxu0 0.0
  %3211 = vmatpush1.msra.mxu0 0.0
  %3212 = vmatprep.subr.mxu0 0.0
  %3213 = vmatpush1.msra.mxu0 0.0
  %3214 = vmatprep.subr.mxu0 0.0
  %3215 = vmatpush1.msra.mxu0 0.0
  %3216 = vmatprep.subr.mxu0 0.0
  %3217 = vmatpush1.msra.mxu0 0.0
  %3218 = vmatprep.subr.mxu0 0.0
  %3219 = vmatpush1.msra.mxu0 0.0
  %3220 = vmatprep.subr.mxu0 0.0
  %3221 = vmatpush1.msra.mxu0 0.0
  %3222 = vmatprep.subr.mxu0 0.0
  %3223 = vmatpush1.msra.mxu0 %v1225
  %3224 = vmatprep.subr.mxu0 0.0
  %3225 = vmatpush1.msra.mxu0 %v1224
  %3226 = vmatprep.subr.mxu0 0.0
  %3227 = vmatpush1.msra.mxu0 %v1223
  %3228 = vmatprep.subr.mxu0 0.0
  %3229 = vmatpush1.msra.mxu0 %v1222
  %3230 = vmatprep.subr.mxu0 0.0
  %3231 = vmatpush1.msra.mxu0 %v1221
  %3232 = vmatprep.subr.mxu0 0.0
  %3233 = vmatpush1.msra.mxu0 %v1220
  %3234 = vmatprep.subr.mxu0 0.0
  %3235 = vmatpush1.msra.mxu0 %v1219
  %3236 = vmatprep.subr.mxu0 0.0
  %3237 = vmatpush1.msra.mxu0 %v1218
  %3238 = vmatprep.subr.mxu0 0.0
  %3239 = vmatpush2.msra.mxu0 0.0
  %3240 = vmatprep.subr.mxu0 0.0
  %3241 = vmatpush2.msra.mxu0 0.0
  %3242 = vmatprep.subr.mxu0 0.0
  %3243 = vmatpush2.msra.mxu0 0.0
  %3244 = vmatprep.subr.mxu0 0.0
  %3245 = vmatpush2.msra.mxu0 0.0
  %3246 = vmatprep.subr.mxu0 0.0
  %3247 = vmatpush2.msra.mxu0 0.0
  %3248 = vmatprep.subr.mxu0 0.0
  %3249 = vmatpush2.msra.mxu0 0.0
  %3250 = vmatprep.subr.mxu0 0.0
  %3251 = vmatpush2.msra.mxu0 0.0
  %3252 = vmatprep.subr.mxu0 0.0
  %3253 = vmatpush2.msra.mxu0 0.0
  %3254 = vmatprep.subr.mxu0 0.0
  %3255 = vmatpush2.msra.mxu0 0.0
  %3256 = vmatprep.subr.mxu0 0.0
  %3257 = vmatpush2.msra.mxu0 0.0
  %3258 = vmatprep.subr.mxu0 0.0
  %3259 = vmatpush2.msra.mxu0 0.0
  %3260 = vmatprep.subr.mxu0 0.0
  %3261 = vmatpush2.msra.mxu0 0.0
  %3262 = vmatprep.subr.mxu0 0.0
  %3263 = vmatpush2.msra.mxu0 0.0
  %3264 = vmatprep.subr.mxu0 0.0
  %3265 = vmatpush2.msra.mxu0 0.0
  %3266 = vmatprep.subr.mxu0 0.0
  %3267 = vmatpush2.msra.mxu0 0.0
  %3268 = vmatprep.subr.mxu0 0.0
  %3269 = vmatpush2.msra.mxu0 0.0
  %3270 = vmatprep.mubr.f32.mxu0 0.0
  %3271 = vmatmul.mubr.f32.gmra.mxu0 %v3204
  %v3272 = vpop.f32.mrf.mxu0
  %v3273 = vadd.f32 0.0, %v3272
  %v3274 = vpop.f32.mrf.mxu0
  %3275 = vdwg.mxu0
  %v3276 = vsel %vm92, %v3273, %v3116
  %v3278 = vsel %vm1932, %v3276, 0
  %3280 = vmatprep.subr.mxu0 0.0
  %3281 = vmatpush1.msra.mxu0 0.0
  %3282 = vmatprep.subr.mxu0 0.0
  %3283 = vmatpush1.msra.mxu0 0.0
  %3284 = vmatprep.subr.mxu0 0.0
  %3285 = vmatpush1.msra.mxu0 0.0
  %3286 = vmatprep.subr.mxu0 0.0
  %3287 = vmatpush1.msra.mxu0 0.0
  %3288 = vmatprep.subr.mxu0 0.0
  %3289 = vmatpush1.msra.mxu0 %v1664
  %3290 = vmatprep.subr.mxu0 0.0
  %3291 = vmatpush1.msra.mxu0 %v1663
  %3292 = vmatprep.subr.mxu0 0.0
  %3293 = vmatpush1.msra.mxu0 %v1662
  %3294 = vmatprep.subr.mxu0 0.0
  %3295 = vmatpush1.msra.mxu0 %v1661
  %3296 = vmatprep.subr.mxu0 0.0
  %3297 = vmatpush1.msra.mxu0 %v1660
  %3298 = vmatprep.subr.mxu0 0.0
  %3299 = vmatpush1.msra.mxu0 %v1659
  %3300 = vmatprep.subr.mxu0 0.0
  %3301 = vmatpush1.msra.mxu0 %v1658
  %3302 = vmatprep.subr.mxu0 0.0
  %3303 = vmatpush1.msra.mxu0 %v1657
  %3304 = vmatprep.subr.mxu0 0.0
  %3305 = vmatpush1.msra.mxu0 %v1656
  %3306 = vmatprep.subr.mxu0 0.0
  %3307 = vmatpush1.msra.mxu0 %v1655
  %3308 = vmatprep.subr.mxu0 0.0
  %3309 = vmatpush1.msra.mxu0 %v1654
  %3310 = vmatprep.subr.mxu0 0.0
  %3311 = vmatpush1.msra.mxu0 %v1653
  %3312 = vmatprep.subr.mxu0 0.0
  %3313 = vmatpush2.msra.mxu0 0.0
  %3314 = vmatprep.subr.mxu0 0.0
  %3315 = vmatpush2.msra.mxu0 0.0
  %3316 = vmatprep.subr.mxu0 0.0
  %3317 = vmatpush2.msra.mxu0 0.0
  %3318 = vmatprep.subr.mxu0 0.0
  %3319 = vmatpush2.msra.mxu0 0.0
  %3320 = vmatprep.subr.mxu0 0.0
  %3321 = vmatpush2.msra.mxu0 0.0
  %3322 = vmatprep.subr.mxu0 0.0
  %3323 = vmatpush2.msra.mxu0 0.0
  %3324 = vmatprep.subr.mxu0 0.0
  %3325 = vmatpush2.msra.mxu0 0.0
  %3326 = vmatprep.subr.mxu0 0.0
  %3327 = vmatpush2.msra.mxu0 0.0
  %3328 = vmatprep.subr.mxu0 0.0
  %3329 = vmatpush2.msra.mxu0 0.0
  %3330 = vmatprep.subr.mxu0 0.0
  %3331 = vmatpush2.msra.mxu0 0.0
  %3332 = vmatprep.subr.mxu0 0.0
  %3333 = vmatpush2.msra.mxu0 0.0
  %3334 = vmatprep.subr.mxu0 0.0
  %3335 = vmatpush2.msra.mxu0 0.0
  %3336 = vmatprep.subr.mxu0 0.0
  %3337 = vmatpush2.msra.mxu0 0.0
  %3338 = vmatprep.subr.mxu0 0.0
  %3339 = vmatpush2.msra.mxu0 0.0
  %3340 = vmatprep.subr.mxu0 0.0
  %3341 = vmatpush2.msra.mxu0 0.0
  %3342 = vmatprep.subr.mxu0 0.0
  %3343 = vmatpush2.msra.mxu0 0.0
  %3344 = vmatprep.mubr.f32.mxu0 0.0
  %3345 = vmatmul.mubr.f32.gmra.mxu0 %v3278
  %v3346 = vpop.f32.mrf.mxu0
  %v3347 = vadd.f32 0.0, %v3346
  %v3348 = vpop.f32.mrf.mxu0
  %3349 = vdwg.mxu0
  %v3350 = vtanh.pop %v3347
  %3351 = vrot.lane.b32.xlu0 %v3116, 96
  %v3352 = vpop.permute.xlu0 %3351
  %v3354 = vsel %vm1217, %v3350, %v3352
  %v3356 = vsel %vm92, %v3354, 0
  %3358 = vmatprep.subr.mxu0 0.0
  %3359 = vmatpush1.msra.mxu0 0.0
  %3360 = vmatprep.subr.mxu0 0.0
  %3361 = vmatpush1.msra.mxu0 0.0
  %3362 = vmatprep.subr.mxu0 0.0
  %3363 = vmatpush1.msra.mxu0 0.0
  %3364 = vmatprep.subr.mxu0 0.0
  %3365 = vmatpush1.msra.mxu0 0.0
  %3366 = vmatprep.subr.mxu0 0.0
  %3367 = vmatpush1.msra.mxu0 0.0
  %3368 = vmatprep.subr.mxu0 0.0
  %3369 = vmatpush1.msra.mxu0 0.0
  %3370 = vmatprep.subr.mxu0 0.0
  %3371 = vmatpush1.msra.mxu0 0.0
  %3372 = vmatprep.subr.mxu0 0.0
  %3373 = vmatpush1.msra.mxu0 0.0
  %3374 = vmatprep.subr.mxu0 0.0
  %3375 = vmatpush1.msra.mxu0 %v1652
  %3376 = vmatprep.subr.mxu0 0.0
  %3377 = vmatpush1.msra.mxu0 %v1651
  %3378 = vmatprep.subr.mxu0 0.0
  %3379 = vmatpush1.msra.mxu0 %v1650
  %3380 = vmatprep.subr.mxu0 0.0
  %3381 = vmatpush1.msra.mxu0 %v1649
  %3382 = vmatprep.subr.mxu0 0.0
  %3383 = vmatpush1.msra.mxu0 %v1648
  %3384 = vmatprep.subr.mxu0 0.0
  %3385 = vmatpush1.msra.mxu0 %v1647
  %3386 = vmatprep.subr.mxu0 0.0
  %3387 = vmatpush1.msra.mxu0 %v1646
  %3388 = vmatprep.subr.mxu0 0.0
  %3389 = vmatpush1.msra.mxu0 %v1645
  %3390 = vmatprep.subr.mxu0 0.0
  %3391 = vmatpush2.msra.mxu0 0.0
  %3392 = vmatprep.subr.mxu0 0.0
  %3393 = vmatpush2.msra.mxu0 0.0
  %3394 = vmatprep.subr.mxu0 0.0
  %3395 = vmatpush2.msra.mxu0 0.0
  %3396 = vmatprep.subr.mxu0 0.0
  %3397 = vmatpush2.msra.mxu0 0.0
  %3398 = vmatprep.subr.mxu0 0.0
  %3399 = vmatpush2.msra.mxu0 0.0
  %3400 = vmatprep.subr.mxu0 0.0
  %3401 = vmatpush2.msra.mxu0 0.0
  %3402 = vmatprep.subr.mxu0 0.0
  %3403 = vmatpush2.msra.mxu0 0.0
  %3404 = vmatprep.subr.mxu0 0.0
  %3405 = vmatpush2.msra.mxu0 0.0
  %3406 = vmatprep.subr.mxu0 0.0
  %3407 = vmatpush2.msra.mxu0 0.0
  %3408 = vmatprep.subr.mxu0 0.0
  %3409 = vmatpush2.msra.mxu0 0.0
  %3410 = vmatprep.subr.mxu0 0.0
  %3411 = vmatpush2.msra.mxu0 0.0
  %3412 = vmatprep.subr.mxu0 0.0
  %3413 = vmatpush2.msra.mxu0 0.0
  %3414 = vmatprep.subr.mxu0 0.0
  %3415 = vmatpush2.msra.mxu0 0.0
  %3416 = vmatprep.subr.mxu0 0.0
  %3417 = vmatpush2.msra.mxu0 0.0
  %3418 = vmatprep.subr.mxu0 0.0
  %3419 = vmatpush2.msra.mxu0 0.0
  %3420 = vmatprep.subr.mxu0 0.0
  %3421 = vmatpush2.msra.mxu0 0.0
  %3422 = vmatprep.mubr.f32.mxu0 0.0
  %3423 = vmatmul.mubr.f32.gmra.mxu0 %v3356
  %v3424 = vpop.f32.mrf.mxu0
  %v3425 = vadd.f32 0.0, %v3424
  %v3426 = vpop.f32.mrf.mxu0
  %3427 = vdwg.mxu0
  %v3428 = vadd.f32 %v1636, %v3425
  %v3429 = vxor.u32 %v3428, 2147483648
  %v3430 = vmul.f32 %v3429, 1.442695
  %v3431 = vpow.pop %v3430
  %v3432 = vadd.f32 %v3431, 1.0
  %v3433 = vrcp.pop %v3432
  %v3434 = vmul.f32 1.0, %v3433
  %v3435 = vtanh.pop %v3428
  %v3436 = vmul.f32 %v3434, %v3110
  %3438 = vrot.lane.b32.xlu0 %v3435, 32
  %v3439 = vpop.permute.xlu0 %3438
  %v3441 = vmul.f32 %v3434, %v3439
  %3443 = vrot.lane.b32.xlu0 %v3441, 32
  %v3444 = vpop.permute.xlu0 %3443
  %v3446 = vadd.f32 %v3436, %v3444
  %v3447 = vtanh.pop %v3446
  %3449 = vrot.lane.b32.xlu0 %v3447, 32
  %v3450 = vpop.permute.xlu0 %3449
  %v3452 = vmul.f32 %v3434, %v3450
  %3454 = vrot.lane.b32.xlu0 %v3452, 64
  %v3455 = vpop.permute.xlu0 %3454
  %v3456 = vsel %vm1217, %v3455, 0
  %3458 = vmatprep.subr.mxu0 0.0
  %3459 = vmatpush1.msra.mxu0 0.0
  %3460 = vmatprep.subr.mxu0 0.0
  %3461 = vmatpush1.msra.mxu0 0.0
  %3462 = vmatprep.subr.mxu0 0.0
  %3463 = vmatpush1.msra.mxu0 0.0
  %3464 = vmatprep.subr.mxu0 0.0
  %3465 = vmatpush1.msra.mxu0 0.0
  %3466 = vmatprep.subr.mxu0 0.0
  %3467 = vmatpush1.msra.mxu0 0.0
  %3468 = vmatprep.subr.mxu0 0.0
  %3469 = vmatpush1.msra.mxu0 0.0
  %3470 = vmatprep.subr.mxu0 0.0
  %3471 = vmatpush1.msra.mxu0 0.0
  %3472 = vmatprep.subr.mxu0 0.0
  %3473 = vmatpush1.msra.mxu0 0.0
  %3474 = vmatprep.subr.mxu0 0.0
  %3475 = vmatpush1.msra.mxu0 0.0
  %3476 = vmatprep.subr.mxu0 0.0
  %3477 = vmatpush1.msra.mxu0 0.0
  %3478 = vmatprep.subr.mxu0 0.0
  %3479 = vmatpush1.msra.mxu0 0.0
  %3480 = vmatprep.subr.mxu0 0.0
  %3481 = vmatpush1.msra.mxu0 0.0
  %3482 = vmatprep.subr.mxu0 0.0
  %3483 = vmatpush1.msra.mxu0 %v1502
  %3484 = vmatprep.subr.mxu0 0.0
  %3485 = vmatpush1.msra.mxu0 %v1497
  %3486 = vmatprep.subr.mxu0 0.0
  %3487 = vmatpush1.msra.mxu0 %v1492
  %3488 = vmatprep.subr.mxu0 0.0
  %3489 = vmatpush1.msra.mxu0 %v1487
  %3490 = vmatprep.subr.mxu0 0.0
  %3491 = vmatpush2.msra.mxu0 0.0
  %3492 = vmatprep.subr.mxu0 0.0
  %3493 = vmatpush2.msra.mxu0 0.0
  %3494 = vmatprep.subr.mxu0 0.0
  %3495 = vmatpush2.msra.mxu0 0.0
  %3496 = vmatprep.subr.mxu0 0.0
  %3497 = vmatpush2.msra.mxu0 0.0
  %3498 = vmatprep.subr.mxu0 0.0
  %3499 = vmatpush2.msra.mxu0 0.0
  %3500 = vmatprep.subr.mxu0 0.0
  %3501 = vmatpush2.msra.mxu0 0.0
  %3502 = vmatprep.subr.mxu0 0.0
  %3503 = vmatpush2.msra.mxu0 0.0
  %3504 = vmatprep.subr.mxu0 0.0
  %3505 = vmatpush2.msra.mxu0 0.0
  %3506 = vmatprep.subr.mxu0 0.0
  %3507 = vmatpush2.msra.mxu0 0.0
  %3508 = vmatprep.subr.mxu0 0.0
  %3509 = vmatpush2.msra.mxu0 0.0
  %3510 = vmatprep.subr.mxu0 0.0
  %3511 = vmatpush2.msra.mxu0 0.0
  %3512 = vmatprep.subr.mxu0 0.0
  %3513 = vmatpush2.msra.mxu0 0.0
  %3514 = vmatprep.subr.mxu0 0.0
  %3515 = vmatpush2.msra.mxu0 0.0
  %3516 = vmatprep.subr.mxu0 0.0
  %3517 = vmatpush2.msra.mxu0 0.0
  %3518 = vmatprep.subr.mxu0 0.0
  %3519 = vmatpush2.msra.mxu0 0.0
  %3520 = vmatprep.subr.mxu0 0.0
  %3521 = vmatpush2.msra.mxu0 0.0
  %3522 = vmatprep.mubr.f32.mxu0 0.0
  %3523 = vmatmul.mubr.f32.gmra.mxu0 %v3456
  %v3524 = vpop.f32.mrf.mxu0
  %v3525 = vadd.f32 %v1644, %v3524
  %v3526 = vpop.f32.mrf.mxu0
  %3527 = vdwg.mxu0
  %v3528 = vsel %vm92, %v3525, -inf
  %3529 = vmax.xlane.f32.xlu0 %v3528
  %v3530 = vpop.xlane.xlu0 %3529
  %v3531 = vsub.f32 %v3525, %v3530
  %v3532 = vmul.f32 %v3531, 1.442695
  %v3533 = vpow.pop %v3532
  %v3534 = vsel %vm92, %v3533, 0.0
  %3535 = vadd.xlane.f32.xlu0 %v3534
  %v3536 = vpop.xlane.xlu0 %3535
  %v3537 = vrcp.pop %v3536
  %v3538 = vmul.f32 %v3533, %v3537
  %v3540 = vsel %vm92, %v3538, 0
  %3542 = vmatprep.subr.mxu0 0.0
  %3543 = vmatpush1.msra.mxu0 0.0
  %3544 = vmatprep.subr.mxu0 0.0
  %3545 = vmatpush1.msra.mxu0 0.0
  %3546 = vmatprep.subr.mxu0 0.0
  %3547 = vmatpush1.msra.mxu0 0.0
  %3548 = vmatprep.subr.mxu0 0.0
  %3549 = vmatpush1.msra.mxu0 0.0
  %3550 = vmatprep.subr.mxu0 0.0
  %3551 = vmatpush1.msra.mxu0 0.0
  %3552 = vmatprep.subr.mxu0 0.0
  %3553 = vmatpush1.msra.mxu0 0.0
  %3554 = vmatprep.subr.mxu0 0.0
  %3555 = vmatpush1.msra.mxu0 0.0
  %3556 = vmatprep.subr.mxu0 0.0
  %3557 = vmatpush1.msra.mxu0 0.0
  %3558 = vmatprep.subr.mxu0 0.0
  %3559 = vmatpush1.msra.mxu0 %v1225
  %3560 = vmatprep.subr.mxu0 0.0
  %3561 = vmatpush1.msra.mxu0 %v1224
  %3562 = vmatprep.subr.mxu0 0.0
  %3563 = vmatpush1.msra.mxu0 %v1223
  %3564 = vmatprep.subr.mxu0 0.0
  %3565 = vmatpush1.msra.mxu0 %v1222
  %3566 = vmatprep.subr.mxu0 0.0
  %3567 = vmatpush1.msra.mxu0 %v1221
  %3568 = vmatprep.subr.mxu0 0.0
  %3569 = vmatpush1.msra.mxu0 %v1220
  %3570 = vmatprep.subr.mxu0 0.0
  %3571 = vmatpush1.msra.mxu0 %v1219
  %3572 = vmatprep.subr.mxu0 0.0
  %3573 = vmatpush1.msra.mxu0 %v1218
  %3574 = vmatprep.subr.mxu0 0.0
  %3575 = vmatpush2.msra.mxu0 0.0
  %3576 = vmatprep.subr.mxu0 0.0
  %3577 = vmatpush2.msra.mxu0 0.0
  %3578 = vmatprep.subr.mxu0 0.0
  %3579 = vmatpush2.msra.mxu0 0.0
  %3580 = vmatprep.subr.mxu0 0.0
  %3581 = vmatpush2.msra.mxu0 0.0
  %3582 = vmatprep.subr.mxu0 0.0
  %3583 = vmatpush2.msra.mxu0 0.0
  %3584 = vmatprep.subr.mxu0 0.0
  %3585 = vmatpush2.msra.mxu0 0.0
  %3586 = vmatprep.subr.mxu0 0.0
  %3587 = vmatpush2.msra.mxu0 0.0
  %3588 = vmatprep.subr.mxu0 0.0
  %3589 = vmatpush2.msra.mxu0 0.0
  %3590 = vmatprep.subr.mxu0 0.0
  %3591 = vmatpush2.msra.mxu0 0.0
  %3592 = vmatprep.subr.mxu0 0.0
  %3593 = vmatpush2.msra.mxu0 0.0
  %3594 = vmatprep.subr.mxu0 0.0
  %3595 = vmatpush2.msra.mxu0 0.0
  %3596 = vmatprep.subr.mxu0 0.0
  %3597 = vmatpush2.msra.mxu0 0.0
  %3598 = vmatprep.subr.mxu0 0.0
  %3599 = vmatpush2.msra.mxu0 0.0
  %3600 = vmatprep.subr.mxu0 0.0
  %3601 = vmatpush2.msra.mxu0 0.0
  %3602 = vmatprep.subr.mxu0 0.0
  %3603 = vmatpush2.msra.mxu0 0.0
  %3604 = vmatprep.subr.mxu0 0.0
  %3605 = vmatpush2.msra.mxu0 0.0
  %3606 = vmatprep.mubr.f32.mxu0 0.0
  %3607 = vmatmul.mubr.f32.gmra.mxu0 %v3540
  %v3608 = vpop.f32.mrf.mxu0
  %v3609 = vadd.f32 0.0, %v3608
  %v3610 = vpop.f32.mrf.mxu0
  %3611 = vdwg.mxu0
  %v3612 = vsel %vm92, %v3609, %v3452
  %v3614 = vsel %vm1932, %v3612, 0
  %3616 = vmatprep.subr.mxu0 0.0
  %3617 = vmatpush1.msra.mxu0 0.0
  %3618 = vmatprep.subr.mxu0 0.0
  %3619 = vmatpush1.msra.mxu0 0.0
  %3620 = vmatprep.subr.mxu0 0.0
  %3621 = vmatpush1.msra.mxu0 0.0
  %3622 = vmatprep.subr.mxu0 0.0
  %3623 = vmatpush1.msra.mxu0 0.0
  %3624 = vmatprep.subr.mxu0 0.0
  %3625 = vmatpush1.msra.mxu0 %v1664
  %3626 = vmatprep.subr.mxu0 0.0
  %3627 = vmatpush1.msra.mxu0 %v1663
  %3628 = vmatprep.subr.mxu0 0.0
  %3629 = vmatpush1.msra.mxu0 %v1662
  %3630 = vmatprep.subr.mxu0 0.0
  %3631 = vmatpush1.msra.mxu0 %v1661
  %3632 = vmatprep.subr.mxu0 0.0
  %3633 = vmatpush1.msra.mxu0 %v1660
  %3634 = vmatprep.subr.mxu0 0.0
  %3635 = vmatpush1.msra.mxu0 %v1659
  %3636 = vmatprep.subr.mxu0 0.0
  %3637 = vmatpush1.msra.mxu0 %v1658
  %3638 = vmatprep.subr.mxu0 0.0
  %3639 = vmatpush1.msra.mxu0 %v1657
  %3640 = vmatprep.subr.mxu0 0.0
  %3641 = vmatpush1.msra.mxu0 %v1656
  %3642 = vmatprep.subr.mxu0 0.0
  %3643 = vmatpush1.msra.mxu0 %v1655
  %3644 = vmatprep.subr.mxu0 0.0
  %3645 = vmatpush1.msra.mxu0 %v1654
  %3646 = vmatprep.subr.mxu0 0.0
  %3647 = vmatpush1.msra.mxu0 %v1653
  %3648 = vmatprep.subr.mxu0 0.0
  %3649 = vmatpush2.msra.mxu0 0.0
  %3650 = vmatprep.subr.mxu0 0.0
  %3651 = vmatpush2.msra.mxu0 0.0
  %3652 = vmatprep.subr.mxu0 0.0
  %3653 = vmatpush2.msra.mxu0 0.0
  %3654 = vmatprep.subr.mxu0 0.0
  %3655 = vmatpush2.msra.mxu0 0.0
  %3656 = vmatprep.subr.mxu0 0.0
  %3657 = vmatpush2.msra.mxu0 0.0
  %3658 = vmatprep.subr.mxu0 0.0
  %3659 = vmatpush2.msra.mxu0 0.0
  %3660 = vmatprep.subr.mxu0 0.0
  %3661 = vmatpush2.msra.mxu0 0.0
  %3662 = vmatprep.subr.mxu0 0.0
  %3663 = vmatpush2.msra.mxu0 0.0
  %3664 = vmatprep.subr.mxu0 0.0
  %3665 = vmatpush2.msra.mxu0 0.0
  %3666 = vmatprep.subr.mxu0 0.0
  %3667 = vmatpush2.msra.mxu0 0.0
  %3668 = vmatprep.subr.mxu0 0.0
  %3669 = vmatpush2.msra.mxu0 0.0
  %3670 = vmatprep.subr.mxu0 0.0
  %3671 = vmatpush2.msra.mxu0 0.0
  %3672 = vmatprep.subr.mxu0 0.0
  %3673 = vmatpush2.msra.mxu0 0.0
  %3674 = vmatprep.subr.mxu0 0.0
  %3675 = vmatpush2.msra.mxu0 0.0
  %3676 = vmatprep.subr.mxu0 0.0
  %3677 = vmatpush2.msra.mxu0 0.0
  %3678 = vmatprep.subr.mxu0 0.0
  %3679 = vmatpush2.msra.mxu0 0.0
  %3680 = vmatprep.mubr.f32.mxu0 0.0
  %3681 = vmatmul.mubr.f32.gmra.mxu0 %v3614
  %v3682 = vpop.f32.mrf.mxu0
  %v3683 = vadd.f32 0.0, %v3682
  %v3684 = vpop.f32.mrf.mxu0
  %3685 = vdwg.mxu0
  %v3686 = vtanh.pop %v3683
  %3687 = vrot.lane.b32.xlu0 %v3452, 96
  %v3688 = vpop.permute.xlu0 %3687
  %v3690 = vsel %vm1217, %v3686, %v3688
  %v3692 = vsel %vm92, %v3690, 0
  %3694 = vmatprep.subr.mxu0 0.0
  %3695 = vmatpush1.msra.mxu0 0.0
  %3696 = vmatprep.subr.mxu0 0.0
  %3697 = vmatpush1.msra.mxu0 0.0
  %3698 = vmatprep.subr.mxu0 0.0
  %3699 = vmatpush1.msra.mxu0 0.0
  %3700 = vmatprep.subr.mxu0 0.0
  %3701 = vmatpush1.msra.mxu0 0.0
  %3702 = vmatprep.subr.mxu0 0.0
  %3703 = vmatpush1.msra.mxu0 0.0
  %3704 = vmatprep.subr.mxu0 0.0
  %3705 = vmatpush1.msra.mxu0 0.0
  %3706 = vmatprep.subr.mxu0 0.0
  %3707 = vmatpush1.msra.mxu0 0.0
  %3708 = vmatprep.subr.mxu0 0.0
  %3709 = vmatpush1.msra.mxu0 0.0
  %3710 = vmatprep.subr.mxu0 0.0
  %3711 = vmatpush1.msra.mxu0 %v1652
  %3712 = vmatprep.subr.mxu0 0.0
  %3713 = vmatpush1.msra.mxu0 %v1651
  %3714 = vmatprep.subr.mxu0 0.0
  %3715 = vmatpush1.msra.mxu0 %v1650
  %3716 = vmatprep.subr.mxu0 0.0
  %3717 = vmatpush1.msra.mxu0 %v1649
  %3718 = vmatprep.subr.mxu0 0.0
  %3719 = vmatpush1.msra.mxu0 %v1648
  %3720 = vmatprep.subr.mxu0 0.0
  %3721 = vmatpush1.msra.mxu0 %v1647
  %3722 = vmatprep.subr.mxu0 0.0
  %3723 = vmatpush1.msra.mxu0 %v1646
  %3724 = vmatprep.subr.mxu0 0.0
  %3725 = vmatpush1.msra.mxu0 %v1645
  %3726 = vmatprep.subr.mxu0 0.0
  %3727 = vmatpush2.msra.mxu0 0.0
  %3728 = vmatprep.subr.mxu0 0.0
  %3729 = vmatpush2.msra.mxu0 0.0
  %3730 = vmatprep.subr.mxu0 0.0
  %3731 = vmatpush2.msra.mxu0 0.0
  %3732 = vmatprep.subr.mxu0 0.0
  %3733 = vmatpush2.msra.mxu0 0.0
  %3734 = vmatprep.subr.mxu0 0.0
  %3735 = vmatpush2.msra.mxu0 0.0
  %3736 = vmatprep.subr.mxu0 0.0
  %3737 = vmatpush2.msra.mxu0 0.0
  %3738 = vmatprep.subr.mxu0 0.0
  %3739 = vmatpush2.msra.mxu0 0.0
  %3740 = vmatprep.subr.mxu0 0.0
  %3741 = vmatpush2.msra.mxu0 0.0
  %3742 = vmatprep.subr.mxu0 0.0
  %3743 = vmatpush2.msra.mxu0 0.0
  %3744 = vmatprep.subr.mxu0 0.0
  %3745 = vmatpush2.msra.mxu0 0.0
  %3746 = vmatprep.subr.mxu0 0.0
  %3747 = vmatpush2.msra.mxu0 0.0
  %3748 = vmatprep.subr.mxu0 0.0
  %3749 = vmatpush2.msra.mxu0 0.0
  %3750 = vmatprep.subr.mxu0 0.0
  %3751 = vmatpush2.msra.mxu0 0.0
  %3752 = vmatprep.subr.mxu0 0.0
  %3753 = vmatpush2.msra.mxu0 0.0
  %3754 = vmatprep.subr.mxu0 0.0
  %3755 = vmatpush2.msra.mxu0 0.0
  %3756 = vmatprep.subr.mxu0 0.0
  %3757 = vmatpush2.msra.mxu0 0.0
  %3758 = vmatprep.mubr.f32.mxu0 0.0
  %3759 = vmatmul.mubr.f32.gmra.mxu0 %v3692
  %v3760 = vpop.f32.mrf.mxu0
  %v3761 = vadd.f32 0.0, %v3760
  %v3762 = vpop.f32.mrf.mxu0
  %3763 = vdwg.mxu0
  %v3764 = vadd.f32 %v1641, %v3761
  %v3765 = vxor.u32 %v3764, 2147483648
  %v3766 = vmul.f32 %v3765, 1.442695
  %v3767 = vpow.pop %v3766
  %v3768 = vadd.f32 %v3767, 1.0
  %v3769 = vrcp.pop %v3768
  %v3770 = vmul.f32 1.0, %v3769
  %v3771 = vtanh.pop %v3764
  %v3772 = vmul.f32 %v3770, %v3446
  %3774 = vrot.lane.b32.xlu0 %v3771, 32
  %v3775 = vpop.permute.xlu0 %3774
  %v3777 = vmul.f32 %v3770, %v3775
  %3779 = vrot.lane.b32.xlu0 %v3777, 32
  %v3780 = vpop.permute.xlu0 %3779
  %v3782 = vadd.f32 %v3772, %v3780
  %v3783 = vtanh.pop %v3782
  %3785 = vrot.lane.b32.xlu0 %v3783, 32
  %v3786 = vpop.permute.xlu0 %3785
  %v3788 = vmul.f32 %v3770, %v3786
  %3790 = vrot.lane.b32.xlu0 %v3788, 64
  %v3791 = vpop.permute.xlu0 %3790
  %v3792 = vsel %vm1217, %v3791, 0
  %3794 = vmatprep.subr.mxu0 0.0
  %3795 = vmatpush1.msra.mxu0 0.0
  %3796 = vmatprep.subr.mxu0 0.0
  %3797 = vmatpush1.msra.mxu0 0.0
  %3798 = vmatprep.subr.mxu0 0.0
  %3799 = vmatpush1.msra.mxu0 0.0
  %3800 = vmatprep.subr.mxu0 0.0
  %3801 = vmatpush1.msra.mxu0 0.0
  %3802 = vmatprep.subr.mxu0 0.0
  %3803 = vmatpush1.msra.mxu0 0.0
  %3804 = vmatprep.subr.mxu0 0.0
  %3805 = vmatpush1.msra.mxu0 0.0
  %3806 = vmatprep.subr.mxu0 0.0
  %3807 = vmatpush1.msra.mxu0 0.0
  %3808 = vmatprep.subr.mxu0 0.0
  %3809 = vmatpush1.msra.mxu0 0.0
  %3810 = vmatprep.subr.mxu0 0.0
  %3811 = vmatpush1.msra.mxu0 0.0
  %3812 = vmatprep.subr.mxu0 0.0
  %3813 = vmatpush1.msra.mxu0 0.0
  %3814 = vmatprep.subr.mxu0 0.0
  %3815 = vmatpush1.msra.mxu0 0.0
  %3816 = vmatprep.subr.mxu0 0.0
  %3817 = vmatpush1.msra.mxu0 0.0
  %3818 = vmatprep.subr.mxu0 0.0
  %3819 = vmatpush1.msra.mxu0 %v1502
  %3820 = vmatprep.subr.mxu0 0.0
  %3821 = vmatpush1.msra.mxu0 %v1497
  %3822 = vmatprep.subr.mxu0 0.0
  %3823 = vmatpush1.msra.mxu0 %v1492
  %3824 = vmatprep.subr.mxu0 0.0
  %3825 = vmatpush1.msra.mxu0 %v1487
  %3826 = vmatprep.subr.mxu0 0.0
  %3827 = vmatpush2.msra.mxu0 0.0
  %3828 = vmatprep.subr.mxu0 0.0
  %3829 = vmatpush2.msra.mxu0 0.0
  %3830 = vmatprep.subr.mxu0 0.0
  %3831 = vmatpush2.msra.mxu0 0.0
  %3832 = vmatprep.subr.mxu0 0.0
  %3833 = vmatpush2.msra.mxu0 0.0
  %3834 = vmatprep.subr.mxu0 0.0
  %3835 = vmatpush2.msra.mxu0 0.0
  %3836 = vmatprep.subr.mxu0 0.0
  %3837 = vmatpush2.msra.mxu0 0.0
  %3838 = vmatprep.subr.mxu0 0.0
  %3839 = vmatpush2.msra.mxu0 0.0
  %3840 = vmatprep.subr.mxu0 0.0
  %3841 = vmatpush2.msra.mxu0 0.0
  %3842 = vmatprep.subr.mxu0 0.0
  %3843 = vmatpush2.msra.mxu0 0.0
  %3844 = vmatprep.subr.mxu0 0.0
  %3845 = vmatpush2.msra.mxu0 0.0
  %3846 = vmatprep.subr.mxu0 0.0
  %3847 = vmatpush2.msra.mxu0 0.0
  %3848 = vmatprep.subr.mxu0 0.0
  %3849 = vmatpush2.msra.mxu0 0.0
  %3850 = vmatprep.subr.mxu0 0.0
  %3851 = vmatpush2.msra.mxu0 0.0
  %3852 = vmatprep.subr.mxu0 0.0
  %3853 = vmatpush2.msra.mxu0 0.0
  %3854 = vmatprep.subr.mxu0 0.0
  %3855 = vmatpush2.msra.mxu0 0.0
  %3856 = vmatprep.subr.mxu0 0.0
  %3857 = vmatpush2.msra.mxu0 0.0
  %3858 = vmatprep.mubr.f32.mxu0 0.0
  %3859 = vmatmul.mubr.f32.gmra.mxu0 %v3792
  %v3860 = vpop.f32.mrf.mxu0
  %v3861 = vadd.f32 %v1644, %v3860
  %v3862 = vpop.f32.mrf.mxu0
  %3863 = vdwg.mxu0
  %v3864 = vsel %vm92, %v3861, -inf
  %3865 = vmax.xlane.f32.xlu0 %v3864
  %v3866 = vpop.xlane.xlu0 %3865
  %v3867 = vsub.f32 %v3861, %v3866
  %v3868 = vmul.f32 %v3867, 1.442695
  %v3869 = vpow.pop %v3868
  %v3870 = vsel %vm92, %v3869, 0.0
  %3871 = vadd.xlane.f32.xlu0 %v3870
  %v3872 = vpop.xlane.xlu0 %3871
  %v3873 = vrcp.pop %v3872
  %v3874 = vmul.f32 %v3869, %v3873
  %v3876 = vsel %vm92, %v3874, 0
  %3878 = vmatprep.subr.mxu0 0.0
  %3879 = vmatpush1.msra.mxu0 0.0
  %3880 = vmatprep.subr.mxu0 0.0
  %3881 = vmatpush1.msra.mxu0 0.0
  %3882 = vmatprep.subr.mxu0 0.0
  %3883 = vmatpush1.msra.mxu0 0.0
  %3884 = vmatprep.subr.mxu0 0.0
  %3885 = vmatpush1.msra.mxu0 0.0
  %3886 = vmatprep.subr.mxu0 0.0
  %3887 = vmatpush1.msra.mxu0 0.0
  %3888 = vmatprep.subr.mxu0 0.0
  %3889 = vmatpush1.msra.mxu0 0.0
  %3890 = vmatprep.subr.mxu0 0.0
  %3891 = vmatpush1.msra.mxu0 0.0
  %3892 = vmatprep.subr.mxu0 0.0
  %3893 = vmatpush1.msra.mxu0 0.0
  %3894 = vmatprep.subr.mxu0 0.0
  %3895 = vmatpush1.msra.mxu0 %v1225
  %3896 = vmatprep.subr.mxu0 0.0
  %3897 = vmatpush1.msra.mxu0 %v1224
  %3898 = vmatprep.subr.mxu0 0.0
  %3899 = vmatpush1.msra.mxu0 %v1223
  %3900 = vmatprep.subr.mxu0 0.0
  %3901 = vmatpush1.msra.mxu0 %v1222
  %3902 = vmatprep.subr.mxu0 0.0
  %3903 = vmatpush1.msra.mxu0 %v1221
  %3904 = vmatprep.subr.mxu0 0.0
  %3905 = vmatpush1.msra.mxu0 %v1220
  %3906 = vmatprep.subr.mxu0 0.0
  %3907 = vmatpush1.msra.mxu0 %v1219
  %3908 = vmatprep.subr.mxu0 0.0
  %3909 = vmatpush1.msra.mxu0 %v1218
  %3910 = vmatprep.subr.mxu0 0.0
  %3911 = vmatpush2.msra.mxu0 0.0
  %3912 = vmatprep.subr.mxu0 0.0
  %3913 = vmatpush2.msra.mxu0 0.0
  %3914 = vmatprep.subr.mxu0 0.0
  %3915 = vmatpush2.msra.mxu0 0.0
  %3916 = vmatprep.subr.mxu0 0.0
  %3917 = vmatpush2.msra.mxu0 0.0
  %3918 = vmatprep.subr.mxu0 0.0
  %3919 = vmatpush2.msra.mxu0 0.0
  %3920 = vmatprep.subr.mxu0 0.0
  %3921 = vmatpush2.msra.mxu0 0.0
  %3922 = vmatprep.subr.mxu0 0.0
  %3923 = vmatpush2.msra.mxu0 0.0
  %3924 = vmatprep.subr.mxu0 0.0
  %3925 = vmatpush2.msra.mxu0 0.0
  %3926 = vmatprep.subr.mxu0 0.0
  %3927 = vmatpush2.msra.mxu0 0.0
  %3928 = vmatprep.subr.mxu0 0.0
  %3929 = vmatpush2.msra.mxu0 0.0
  %3930 = vmatprep.subr.mxu0 0.0
  %3931 = vmatpush2.msra.mxu0 0.0
  %3932 = vmatprep.subr.mxu0 0.0
  %3933 = vmatpush2.msra.mxu0 0.0
  %3934 = vmatprep.subr.mxu0 0.0
  %3935 = vmatpush2.msra.mxu0 0.0
  %3936 = vmatprep.subr.mxu0 0.0
  %3937 = vmatpush2.msra.mxu0 0.0
  %3938 = vmatprep.subr.mxu0 0.0
  %3939 = vmatpush2.msra.mxu0 0.0
  %3940 = vmatprep.subr.mxu0 0.0
  %3941 = vmatpush2.msra.mxu0 0.0
  %3942 = vmatprep.mubr.f32.mxu0 0.0
  %3943 = vmatmul.mubr.f32.gmra.mxu0 %v3876
  %v3944 = vpop.f32.mrf.mxu0
  %v3945 = vadd.f32 0.0, %v3944
  %v3946 = vpop.f32.mrf.mxu0
  %3947 = vdwg.mxu0
  %v3948 = vsel %vm92, %v3945, %v3788
  %v3950 = vsel %vm1932, %v3948, 0
  %3952 = vmatprep.subr.mxu0 0.0
  %3953 = vmatpush1.msra.mxu0 0.0
  %3954 = vmatprep.subr.mxu0 0.0
  %3955 = vmatpush1.msra.mxu0 0.0
  %3956 = vmatprep.subr.mxu0 0.0
  %3957 = vmatpush1.msra.mxu0 0.0
  %3958 = vmatprep.subr.mxu0 0.0
  %3959 = vmatpush1.msra.mxu0 0.0
  %3960 = vmatprep.subr.mxu0 0.0
  %3961 = vmatpush1.msra.mxu0 %v1664
  %3962 = vmatprep.subr.mxu0 0.0
  %3963 = vmatpush1.msra.mxu0 %v1663
  %3964 = vmatprep.subr.mxu0 0.0
  %3965 = vmatpush1.msra.mxu0 %v1662
  %3966 = vmatprep.subr.mxu0 0.0
  %3967 = vmatpush1.msra.mxu0 %v1661
  %3968 = vmatprep.subr.mxu0 0.0
  %3969 = vmatpush1.msra.mxu0 %v1660
  %3970 = vmatprep.subr.mxu0 0.0
  %3971 = vmatpush1.msra.mxu0 %v1659
  %3972 = vmatprep.subr.mxu0 0.0
  %3973 = vmatpush1.msra.mxu0 %v1658
  %3974 = vmatprep.subr.mxu0 0.0
  %3975 = vmatpush1.msra.mxu0 %v1657
  %3976 = vmatprep.subr.mxu0 0.0
  %3977 = vmatpush1.msra.mxu0 %v1656
  %3978 = vmatprep.subr.mxu0 0.0
  %3979 = vmatpush1.msra.mxu0 %v1655
  %3980 = vmatprep.subr.mxu0 0.0
  %3981 = vmatpush1.msra.mxu0 %v1654
  %3982 = vmatprep.subr.mxu0 0.0
  %3983 = vmatpush1.msra.mxu0 %v1653
  %3984 = vmatprep.subr.mxu0 0.0
  %3985 = vmatpush2.msra.mxu0 0.0
  %3986 = vmatprep.subr.mxu0 0.0
  %3987 = vmatpush2.msra.mxu0 0.0
  %3988 = vmatprep.subr.mxu0 0.0
  %3989 = vmatpush2.msra.mxu0 0.0
  %3990 = vmatprep.subr.mxu0 0.0
  %3991 = vmatpush2.msra.mxu0 0.0
  %3992 = vmatprep.subr.mxu0 0.0
  %3993 = vmatpush2.msra.mxu0 0.0
  %3994 = vmatprep.subr.mxu0 0.0
  %3995 = vmatpush2.msra.mxu0 0.0
  %3996 = vmatprep.subr.mxu0 0.0
  %3997 = vmatpush2.msra.mxu0 0.0
  %3998 = vmatprep.subr.mxu0 0.0
  %3999 = vmatpush2.msra.mxu0 0.0
  %4000 = vmatprep.subr.mxu0 0.0
  %4001 = vmatpush2.msra.mxu0 0.0
  %4002 = vmatprep.subr.mxu0 0.0
  %4003 = vmatpush2.msra.mxu0 0.0
  %4004 = vmatprep.subr.mxu0 0.0
  %4005 = vmatpush2.msra.mxu0 0.0
  %4006 = vmatprep.subr.mxu0 0.0
  %4007 = vmatpush2.msra.mxu0 0.0
  %4008 = vmatprep.subr.mxu0 0.0
  %4009 = vmatpush2.msra.mxu0 0.0
  %4010 = vmatprep.subr.mxu0 0.0
  %4011 = vmatpush2.msra.mxu0 0.0
  %4012 = vmatprep.subr.mxu0 0.0
  %4013 = vmatpush2.msra.mxu0 0.0
  %4014 = vmatprep.subr.mxu0 0.0
  %4015 = vmatpush2.msra.mxu0 0.0
  %4016 = vmatprep.mubr.f32.mxu0 0.0
  %4017 = vmatmul.mubr.f32.gmra.mxu0 %v3950
  %v4018 = vpop.f32.mrf.mxu0
  %v4019 = vadd.f32 0.0, %v4018
  %v4020 = vpop.f32.mrf.mxu0
  %4021 = vdwg.mxu0
  %v4022 = vtanh.pop %v4019
  %v4023 = vld [vmem:[%s15] sm:$0xff]
  %v4024 = vld [vmem:[%s15 + $0x8] sm:$0xff]
  %v4025 = vld [vmem:[%s15 + $0x10] sm:$0xff]
  %v4026 = vld [vmem:[%s15 + $0x18] sm:$0xff]
  %v4027 = vld [vmem:[%s16] sm:$0x1]
  %v4029 = vlaneseq
  %v4030 = vshrl.u32 %v4029, 7
  %v4031 = vsub.s32 0, %v4030
  %v4032 = vrot.slane %v4027, %v4031
  %v4035 = vsel %vm1217, %v2006, 0
  %v4038 = vsel %vm1217, %v2342, 0
  %v4041 = vsel %vm1217, %v2678, 0
  %v4044 = vsel %vm1217, %v3014, 0
  %v4047 = vsel %vm1217, %v3350, 0
  %v4050 = vsel %vm1217, %v3686, 0
  %v4053 = vsel %vm1217, %v4022, 0
  %4055 = vmatprep.subr.mxu0 0.0
  %4056 = vmatpush1.msra.mxu0 0.0
  %4057 = vmatprep.subr.mxu0 0.0
  %4058 = vmatpush1.msra.mxu0 0.0
  %4059 = vmatprep.subr.mxu0 0.0
  %4060 = vmatpush1.msra.mxu0 0.0
  %4061 = vmatprep.subr.mxu0 0.0
  %4062 = vmatpush1.msra.mxu0 0.0
  %4063 = vmatprep.subr.mxu0 0.0
  %4064 = vmatpush1.msra.mxu0 0.0
  %4065 = vmatprep.subr.mxu0 0.0
  %4066 = vmatpush1.msra.mxu0 0.0
  %4067 = vmatprep.subr.mxu0 0.0
  %4068 = vmatpush1.msra.mxu0 0.0
  %4069 = vmatprep.subr.mxu0 0.0
  %4070 = vmatpush1.msra.mxu0 0.0
  %4071 = vmatprep.subr.mxu0 0.0
  %4072 = vmatpush1.msra.mxu0 0.0
  %4073 = vmatprep.subr.mxu0 0.0
  %4074 = vmatpush1.msra.mxu0 0.0
  %4075 = vmatprep.subr.mxu0 0.0
  %4076 = vmatpush1.msra.mxu0 0.0
  %4077 = vmatprep.subr.mxu0 0.0
  %4078 = vmatpush1.msra.mxu0 0.0
  %4079 = vmatprep.subr.mxu0 0.0
  %4080 = vmatpush1.msra.mxu0 %v4026
  %4081 = vmatprep.subr.mxu0 0.0
  %4082 = vmatpush1.msra.mxu0 %v4025
  %4083 = vmatprep.subr.mxu0 0.0
  %4084 = vmatpush1.msra.mxu0 %v4024
  %4085 = vmatprep.subr.mxu0 0.0
  %4086 = vmatpush1.msra.mxu0 %v4023
  %4087 = vmatprep.subr.mxu0 0.0
  %4088 = vmatpush2.msra.mxu0 0.0
  %4089 = vmatprep.subr.mxu0 0.0
  %4090 = vmatpush2.msra.mxu0 0.0
  %4091 = vmatprep.subr.mxu0 0.0
  %4092 = vmatpush2.msra.mxu0 0.0
  %4093 = vmatprep.subr.mxu0 0.0
  %4094 = vmatpush2.msra.mxu0 0.0
  %4095 = vmatprep.subr.mxu0 0.0
  %4096 = vmatpush2.msra.mxu0 0.0
  %4097 = vmatprep.subr.mxu0 0.0
  %4098 = vmatpush2.msra.mxu0 0.0
  %4099 = vmatprep.subr.mxu0 0.0
  %4100 = vmatpush2.msra.mxu0 0.0
  %4101 = vmatprep.subr.mxu0 0.0
  %4102 = vmatpush2.msra.mxu0 0.0
  %4103 = vmatprep.subr.mxu0 0.0
  %4104 = vmatpush2.msra.mxu0 0.0
  %4105 = vmatprep.subr.mxu0 0.0
  %4106 = vmatpush2.msra.mxu0 0.0
  %4107 = vmatprep.subr.mxu0 0.0
  %4108 = vmatpush2.msra.mxu0 0.0
  %4109 = vmatprep.subr.mxu0 0.0
  %4110 = vmatpush2.msra.mxu0 0.0
  %4111 = vmatprep.subr.mxu0 0.0
  %4112 = vmatpush2.msra.mxu0 0.0
  %4113 = vmatprep.subr.mxu0 0.0
  %4114 = vmatpush2.msra.mxu0 0.0
  %4115 = vmatprep.subr.mxu0 0.0
  %4116 = vmatpush2.msra.mxu0 0.0
  %4117 = vmatprep.subr.mxu0 0.0
  %4118 = vmatpush2.msra.mxu0 0.0
  %4119 = vmatprep.mubr.f32.mxu0 0.0
  %4120 = vmatmul.mubr.f32.gmra.mxu0 %v4035
  %v4121 = vpop.f32.mrf.mxu0
  %v4122 = vadd.f32 %v4032, %v4121
  %v4123 = vpop.f32.mrf.mxu0
  %4124 = vmatprep.mubr.f32.mxu0 0.0
  %4125 = vmatmul.mubr.f32.gmra.mxu0 %v4038
  %v4126 = vpop.f32.mrf.mxu0
  %v4127 = vadd.f32 %v4032, %v4126
  %v4128 = vpop.f32.mrf.mxu0
  %4129 = vmatprep.mubr.f32.mxu0 0.0
  %4130 = vmatmul.mubr.f32.gmra.mxu0 %v4041
  %v4131 = vpop.f32.mrf.mxu0
  %v4132 = vadd.f32 %v4032, %v4131
  %v4133 = vpop.f32.mrf.mxu0
  %4134 = vmatprep.mubr.f32.mxu0 0.0
  %4135 = vmatmul.mubr.f32.gmra.mxu0 %v4044
  %v4136 = vpop.f32.mrf.mxu0
  %v4137 = vadd.f32 %v4032, %v4136
  %v4138 = vpop.f32.mrf.mxu0
  %4139 = vmatprep.mubr.f32.mxu0 0.0
  %4140 = vmatmul.mubr.f32.gmra.mxu0 %v4047
  %v4141 = vpop.f32.mrf.mxu0
  %v4142 = vadd.f32 %v4032, %v4141
  %v4143 = vpop.f32.mrf.mxu0
  %4144 = vmatprep.mubr.f32.mxu0 0.0
  %4145 = vmatmul.mubr.f32.gmra.mxu0 %v4050
  %v4146 = vpop.f32.mrf.mxu0
  %v4147 = vadd.f32 %v4032, %v4146
  %v4148 = vpop.f32.mrf.mxu0
  %4149 = vmatprep.mubr.f32.mxu0 0.0
  %4150 = vmatmul.mubr.f32.gmra.mxu0 %v4053
  %v4151 = vpop.f32.mrf.mxu0
  %v4152 = vadd.f32 %v4032, %v4151
  %v4153 = vpop.f32.mrf.mxu0
  %4154 = vdwg.mxu0
  %4155 = vmax.xlane.f32.xlu0 %v4122
  %v4156 = vpop.xlane.xlu0 %4155
  %4157 = vmax.xlane.f32.xlu0 %v4127
  %v4158 = vpop.xlane.xlu0 %4157
  %4159 = vmax.xlane.f32.xlu0 %v4132
  %v4160 = vpop.xlane.xlu0 %4159
  %4161 = vmax.xlane.f32.xlu0 %v4137
  %v4162 = vpop.xlane.xlu0 %4161
  %4163 = vmax.xlane.f32.xlu0 %v4142
  %v4164 = vpop.xlane.xlu0 %4163
  %4165 = vmax.xlane.f32.xlu0 %v4147
  %v4166 = vpop.xlane.xlu0 %4165
  %4167 = vmax.xlane.f32.xlu0 %v4152
  %v4168 = vpop.xlane.xlu0 %4167
  %v4169 = vsub.f32 %v4122, %v4156
  %v4170 = vsub.f32 %v4127, %v4158
  %v4171 = vsub.f32 %v4132, %v4160
  %v4172 = vsub.f32 %v4137, %v4162
  %v4173 = vsub.f32 %v4142, %v4164
  %v4174 = vsub.f32 %v4147, %v4166
  %v4175 = vsub.f32 %v4152, %v4168
  %v4176 = vmul.f32 %v4169, 1.442695
  %v4177 = vpow.pop %v4176
  %v4178 = vmul.f32 %v4170, 1.442695
  %v4179 = vpow.pop %v4178
  %v4180 = vmul.f32 %v4171, 1.442695
  %v4181 = vpow.pop %v4180
  %v4182 = vmul.f32 %v4172, 1.442695
  %v4183 = vpow.pop %v4182
  %v4184 = vmul.f32 %v4173, 1.442695
  %v4185 = vpow.pop %v4184
  %v4186 = vmul.f32 %v4174, 1.442695
  %v4187 = vpow.pop %v4186
  %v4188 = vmul.f32 %v4175, 1.442695
  %v4189 = vpow.pop %v4188
  %4190 = vadd.xlane.f32.xlu0 %v4177
  %v4191 = vpop.xlane.xlu0 %4190
  %4192 = vadd.xlane.f32.xlu0 %v4179
  %v4193 = vpop.xlane.xlu0 %4192
  %4194 = vadd.xlane.f32.xlu0 %v4181
  %v4195 = vpop.xlane.xlu0 %4194
  %4196 = vadd.xlane.f32.xlu0 %v4183
  %v4197 = vpop.xlane.xlu0 %4196
  %4198 = vadd.xlane.f32.xlu0 %v4185
  %v4199 = vpop.xlane.xlu0 %4198
  %4200 = vadd.xlane.f32.xlu0 %v4187
  %v4201 = vpop.xlane.xlu0 %4200
  %4202 = vadd.xlane.f32.xlu0 %v4189
  %v4203 = vpop.xlane.xlu0 %4202
  %v4204 = vlog2.pop %v4191
  %v4205 = vmul.f32 %v4204, 0.6931472
  %v4206 = vlog2.pop %v4193
  %v4207 = vmul.f32 %v4206, 0.6931472
  %v4208 = vlog2.pop %v4195
  %v4209 = vmul.f32 %v4208, 0.6931472
  %v4210 = vlog2.pop %v4197
  %v4211 = vmul.f32 %v4210, 0.6931472
  %v4212 = vlog2.pop %v4199
  %v4213 = vmul.f32 %v4212, 0.6931472
  %v4214 = vlog2.pop %v4201
  %v4215 = vmul.f32 %v4214, 0.6931472
  %v4216 = vlog2.pop %v4203
  %v4217 = vmul.f32 %v4216, 0.6931472
  %v4218 = vadd.f32 %v4205, %v4156
  %v4219 = vadd.f32 %v4207, %v4158
  %v4220 = vadd.f32 %v4209, %v4160
  %v4221 = vadd.f32 %v4211, %v4162
  %v4222 = vadd.f32 %v4213, %v4164
  %v4223 = vadd.f32 %v4215, %v4166
  %v4224 = vadd.f32 %v4217, %v4168
  %v4225 = vsub.f32 %v4122, %v4218
  %v4226 = vsub.f32 %v4127, %v4219
  %v4227 = vsub.f32 %v4132, %v4220
  %v4228 = vsub.f32 %v4137, %v4221
  %v4229 = vsub.f32 %v4142, %v4222
  %v4230 = vsub.f32 %v4147, %v4223
  %v4231 = vsub.f32 %v4152, %v4224
  %v4232 = vld [vmem:[%s4] sm:$0xff]
  %v4233 = vld [vmem:[%s5] sm:$0xff]
  %v4234 = vld [vmem:[%s5 + $0x8] sm:$0xff]
  %v4235 = vld [vmem:[%s5 + $0x10] sm:$0xff]
  %v4236 = vld [vmem:[%s5 + $0x18] sm:$0xff]
  %v4237 = vld [vmem:[%s5 + $0x20] sm:$0xff]
  %v4238 = vld [vmem:[%s5 + $0x28] sm:$0xff]
  %v4239 = vld [vmem:[%s5 + $0x30] sm:$0xff]
  %v4240 = vmul.f32 %v4225, %v4233
  %v4241 = vmul.f32 %v4226, %v4234
  %v4242 = vmul.f32 %v4227, %v4235
  %v4243 = vmul.f32 %v4228, %v4236
  %v4244 = vmul.f32 %v4229, %v4237
  %v4245 = vmul.f32 %v4230, %v4238
  %v4246 = vmul.f32 %v4231, %v4239
  %vm4247 = vcmask 457728
  %v4249 = vsel %vm4247, %v4232, 0
  %4251 = vmatprep.subr.mxu0 0.0
  %4252 = vmatpush1.msra.mxu0 0.0
  %4253 = vmatprep.subr.mxu0 0.0
  %4254 = vmatpush1.msra.mxu0 0.0
  %4255 = vmatprep.subr.mxu0 0.0
  %4256 = vmatpush1.msra.mxu0 0.0
  %4257 = vmatprep.subr.mxu0 0.0
  %4258 = vmatpush1.msra.mxu0 0.0
  %4259 = vmatprep.subr.mxu0 0.0
  %4260 = vmatpush1.msra.mxu0 0.0
  %4261 = vmatprep.subr.mxu0 0.0
  %4262 = vmatpush1.msra.mxu0 0.0
  %4263 = vmatprep.subr.mxu0 0.0
  %4264 = vmatpush1.msra.mxu0 0.0
  %4265 = vmatprep.subr.mxu0 0.0
  %4266 = vmatpush1.msra.mxu0 0.0
  %4267 = vmatprep.subr.mxu0 0.0
  %4268 = vmatpush1.msra.mxu0 0.0
  %4269 = vmatprep.subr.mxu0 0.0
  %4270 = vmatpush1.msra.mxu0 %v4246
  %4271 = vmatprep.subr.mxu0 0.0
  %4272 = vmatpush1.msra.mxu0 %v4245
  %4273 = vmatprep.subr.mxu0 0.0
  %4274 = vmatpush1.msra.mxu0 %v4244
  %4275 = vmatprep.subr.mxu0 0.0
  %4276 = vmatpush1.msra.mxu0 %v4243
  %4277 = vmatprep.subr.mxu0 0.0
  %4278 = vmatpush1.msra.mxu0 %v4242
  %4279 = vmatprep.subr.mxu0 0.0
  %4280 = vmatpush1.msra.mxu0 %v4241
  %4281 = vmatprep.subr.mxu0 0.0
  %4282 = vmatpush1.msra.mxu0 %v4240
  %4283 = vmatprep.subr.mxu0 0.0
  %4284 = vmatpush2.msra.mxu0 0.0
  %4285 = vmatprep.subr.mxu0 0.0
  %4286 = vmatpush2.msra.mxu0 0.0
  %4287 = vmatprep.subr.mxu0 0.0
  %4288 = vmatpush2.msra.mxu0 0.0
  %4289 = vmatprep.subr.mxu0 0.0
  %4290 = vmatpush2.msra.mxu0 0.0
  %4291 = vmatprep.subr.mxu0 0.0
  %4292 = vmatpush2.msra.mxu0 0.0
  %4293 = vmatprep.subr.mxu0 0.0
  %4294 = vmatpush2.msra.mxu0 0.0
  %4295 = vmatprep.subr.mxu0 0.0
  %4296 = vmatpush2.msra.mxu0 0.0
  %4297 = vmatprep.subr.mxu0 0.0
  %4298 = vmatpush2.msra.mxu0 0.0
  %4299 = vmatprep.subr.mxu0 0.0
  %4300 = vmatpush2.msra.mxu0 0.0
  %4301 = vmatprep.subr.mxu0 0.0
  %4302 = vmatpush2.msra.mxu0 0.0
  %4303 = vmatprep.subr.mxu0 0.0
  %4304 = vmatpush2.msra.mxu0 0.0
  %4305 = vmatprep.subr.mxu0 0.0
  %4306 = vmatpush2.msra.mxu0 0.0
  %4307 = vmatprep.subr.mxu0 0.0
  %4308 = vmatpush2.msra.mxu0 0.0
  %4309 = vmatprep.subr.mxu0 0.0
  %4310 = vmatpush2.msra.mxu0 0.0
  %4311 = vmatprep.subr.mxu0 0.0
  %4312 = vmatpush2.msra.mxu0 0.0
  %4313 = vmatprep.subr.mxu0 0.0
  %4314 = vmatpush2.msra.mxu0 0.0
  %4315 = vmatprep.mubr.f32.mxu0 0.0
  %4316 = vmatmul.mubr.f32.gmra.mxu0 %v4249
  %v4317 = vpop.f32.mrf.mxu0
  %v4318 = vadd.f32 0.0, %v4317
  %v4319 = vpop.f32.mrf.mxu0
  %4320 = vdwg.mxu0
  %4321 = vst [vmem:[%s17] sm:$0xff] %v4318
  // Predicated region
  $region70: #{nmt_forward.1} parent=0 // pred_check
    _
  $region71: #{nmt_forward.1} parent=0 // pred_check_branch
    %4323 = sbr.rel (0) target = $region73
  $region72: #{nmt_forward.1} parent=0 // pred_region
    _
  $region73: #{nmt_forward.1} parent=0 // pred_fallthru
    _
  // Predicated region
  $region74: #{nmt_forward.1} parent=0 // pred_check
    _
  $region75: #{nmt_forward.1} parent=0 // pred_check_branch
    %4325 = sbr.rel (0) target = $region77
  $region76: #{nmt_forward.1} parent=0 // pred_region
    _
  $region77: #{nmt_forward.1} parent=0 // pred_fallthru
    _

</llo_original>
